<compile_context>
chip_gen: v5e
topology: v5e:2x2
jax: 0.10.0
libtpu: 0.0.40
codegen_flags: <defaults>
</compile_context>

<pallas_src>
import functools

import jax
import jax.numpy as jnp
from jax import lax
from jax.experimental import pallas as pl
from jax.experimental.pallas import tpu as pltpu

EXPANSION = 4
LANE = 128                           # keep channel dims multiples of the lane width
VMEM_LIMIT = 64 * 1024 * 1024        # <= physical VMEM on v5e/v6e/v7x
TILE_BYTE_BUDGET = 24 * 1024 * 1024  # double-buffered working-set budget per call


def _round_up(x, m):
    return ((x + m - 1) // m) * m


def _pad_axis(a, axis, target):
    if a.shape[axis] == target:
        return a
    widths = [(0, 0)] * a.ndim
    widths[axis] = (0, target - a.shape[axis])
    return jnp.pad(a, widths)


# ---------------------------------------------------------------------------
# Fused kernel: (M,K)x(K,C) matmul + BN affine
#               [+ second matmul + BN (projection shortcut)]
#               [+ residual add (identity shortcut)] [+ ReLU]
# ---------------------------------------------------------------------------
def _pw_kernel(*refs, apply_relu, has_proj, has_residual):
    refs = list(refs)
    x_ref, w_ref, sb_ref = refs[0], refs[1], refs[2]
    idx = 3
    if has_proj:
        xs_ref, ws_ref, sbs_ref = refs[idx], refs[idx + 1], refs[idx + 2]
        idx += 3
    if has_residual:
        res_ref = refs[idx]
        idx += 1
    o_ref = refs[idx]

    acc = jnp.dot(x_ref[...], w_ref[...], preferred_element_type=jnp.float32)
    sb = sb_ref[...]
    acc = acc * sb[0:1, :] + sb[1:2, :]
    if has_proj:
        accs = jnp.dot(xs_ref[...], ws_ref[...], preferred_element_type=jnp.float32)
        sbs = sbs_ref[...]
        acc = acc + accs * sbs[0:1, :] + sbs[1:2, :]
    if has_residual:
        acc = acc + res_ref[...].astype(jnp.float32)
    if apply_relu:
        acc = jnp.maximum(acc, 0.0)
    o_ref[...] = acc.astype(o_ref.dtype)


def fused_matmul_bn(x2d, w, sb, *, relu, residual=None, proj=None, out_dtype=None):
    """Fused matmul + BN affine (+ projection-shortcut matmul+BN) (+ residual) (+ ReLU).

    x2d: (M, K) flattened N*H*W rows; w: (K, C); sb: (2, C) [scale; bias].
    proj: optional (xs2d, ws, sbs) second matmul whose BN-affined result is added.
    K / C (and proj's Ks) are expected to be multiples of 128 (lane-dense).
    """
    M, K = x2d.shape
    Cout = w.shape[1]
    out_dtype = jnp.dtype(out_dtype or x2d.dtype)

    xs2d = ws = sbs = None
    Ks = 0
    if proj is not None:
        xs2d, ws, sbs = proj
        Ks = xs2d.shape[1]

    def itemsize(a):
        return jnp.dtype(a.dtype).itemsize

    # Big M tiles (512 rows) with a zero-padded tail; shrink only if the
    # double-buffered working set would exceed the VMEM budget (v7x: 64 MiB).
    def tile_bytes(tm):
        b = tm * K * itemsize(x2d) + K * Cout * itemsize(w) + 2 * Cout * 4
        b += tm * Cout * out_dtype.itemsize
        if proj is not None:
            b += tm * Ks * itemsize(xs2d) + Ks * Cout * itemsize(ws) + 2 * Cout * 4
        if residual is not None:
            b += tm * Cout * itemsize(residual)
        return 2 * b

    if M >= 512:
        TM = 512
        while TM > 64 and tile_bytes(TM) > TILE_BYTE_BUDGET:
            TM //= 2
    else:
        TM = _round_up(M, 8)
    Mp = _round_up(M, TM)

    def pad_rows(a):
        return a if a.shape[0] == Mp else jnp.pad(a, ((0, Mp - a.shape[0]), (0, 0)))

    args = [pad_rows(x2d), w, sb]
    in_specs = [
        pl.BlockSpec((TM, K), lambda i: (i, 0)),
        pl.BlockSpec((K, Cout), lambda i: (0, 0)),
        pl.BlockSpec((2, Cout), lambda i: (0, 0)),
    ]
    if proj is not None:
        args += [pad_rows(xs2d), ws, sbs]
        in_specs += [
            pl.BlockSpec((TM, Ks), lambda i: (i, 0)),
            pl.BlockSpec((Ks, Cout), lambda i: (0, 0)),
            pl.BlockSpec((2, Cout), lambda i: (0, 0)),
        ]
    io_aliases = {}
    if residual is not None:
        resp = pad_rows(residual)
        args.append(resp)
        in_specs.append(pl.BlockSpec((TM, Cout), lambda i: (i, 0)))
        if jnp.dtype(resp.dtype) == out_dtype:
            io_aliases = {len(args) - 1: 0}  # write result in place of the residual buf

    kernel = functools.partial(
        _pw_kernel,
        apply_relu=relu,
        has_proj=proj is not None,
        has_residual=residual is not None,
    )
    out = pl.pallas_call(
        kernel,
        out_shape=jax.ShapeDtypeStruct((Mp, Cout), out_dtype),
        grid_spec=pltpu.PrefetchScalarGridSpec(
            num_scalar_prefetch=0,
            grid=(Mp // TM,),
            in_specs=in_specs,
            out_specs=pl.BlockSpec((TM, Cout), lambda i: (i, 0)),
        ),
        compiler_params=pltpu.CompilerParams(
            dimension_semantics=("parallel",),
            vmem_limit_bytes=VMEM_LIMIT,
        ),
        input_output_aliases=io_aliases,
    )(*args)
    return out if Mp == M else out[:M]


# ---------------------------------------------------------------------------
# 3x3 conv lowering: stride-aware im2col tap gather (JAX glue).
# ---------------------------------------------------------------------------
def _im2col_3x3(x_nhwc, stride):
    """x: (N, H, W, C) -> (N, Ho, Wo, 9*C) with pad=1, given stride.

    Tap order is kh-major, kw-minor, channel-last, matching w.reshape(9*C, Cout)
    for w of shape (3, 3, C, Cout).
    """
    N, H, W, C = x_nhwc.shape
    Ho = (H - 1) // stride + 1
    Wo = (W - 1) // stride + 1
    xp = jnp.pad(x_nhwc, ((0, 0), (1, 1), (1, 1), (0, 0)))
    taps = []
    for kh in range(3):
        rows = xp[:, kh:kh + (Ho - 1) * stride + 1:stride]            # (N,Ho,W+2,C)
        for kw in range(3):
            taps.append(rows[:, :, kw:kw + (Wo - 1) * stride + 1:stride, :])
    return jnp.concatenate(taps, axis=-1)                             # (N,Ho,Wo,9*C)


# ---------------------------------------------------------------------------
# Bottleneck forward (Pallas-backed)
# ---------------------------------------------------------------------------
def bottleneck_forward(x_nhwc, params, stride=1, compute_dtype=jnp.float32):
    N, H, W, Cin = x_nhwc.shape
    planes = params["w1"].shape[1]
    cout_final = EXPANSION * planes
    has_shortcut = stride != 1 or Cin != cout_final

    cd = jnp.dtype(compute_dtype)
    Cin_p = _round_up(Cin, LANE)
    P_p = _round_up(planes, LANE)
    Cf_p = _round_up(cout_final, LANE)

    # Lane-dense parameter prep: weights in the matmul compute dtype, BN in f32.
    w1 = _pad_axis(_pad_axis(params["w1"], 0, Cin_p), 1, P_p).astype(cd)
    w2 = _pad_axis(_pad_axis(params["w2"], 2, P_p), 3, P_p).astype(cd)
    w2 = w2.reshape(9 * P_p, P_p)                 # [kh*3*C + kw*C + ci, co]
    w3 = _pad_axis(_pad_axis(params["w3"], 0, P_p), 1, Cf_p).astype(cd)
    sb1 = jnp.stack([_pad_axis(params["s1"], 0, P_p), _pad_axis(params["b1"], 0, P_p)])
    sb2 = jnp.stack([_pad_axis(params["s2"], 0, P_p), _pad_axis(params["b2"], 0, P_p)])
    sb3 = jnp.stack([_pad_axis(params["s3"], 0, Cf_p), _pad_axis(params["b3"], 0, Cf_p)])

    xq = _pad_axis(x_nhwc, 3, Cin_p).astype(cd)

    # conv1 (1x1) + bn1 + relu
    out1 = fused_matmul_bn(
        xq.reshape(N * H * W, Cin_p), w1, sb1, relu=True, out_dtype=cd
    ).reshape(N, H, W, P_p)

    # conv2 (3x3, pad=1, stride) + bn2 + relu — im2col (glue) + one fused matmul;
    # only the strided outputs are gathered/computed.
    Ho = (H - 1) // stride + 1
    Wo = (W - 1) // stride + 1
    patches = _im2col_3x3(out1, stride)                               # (N,Ho,Wo,9*P_p)
    out2 = fused_matmul_bn(
        patches.reshape(N * Ho * Wo, 9 * P_p), w2, sb2, relu=True, out_dtype=cd
    )

    # conv3 (1x1) + bn3 + shortcut + relu, all in one kernel call.
    if has_shortcut:
        ws = _pad_axis(_pad_axis(params["ws"], 0, Cin_p), 1, Cf_p).astype(cd)
        sbs = jnp.stack(
            [_pad_axis(params["ss"], 0, Cf_p), _pad_axis(params["bs"], 0, Cf_p)]
        )
        # strided 1x1 conv == spatial subsample + matmul; fused into the same kernel.
        xs = xq[:, ::stride, ::stride, :].reshape(N * Ho * Wo, Cin_p)
        out3 = fused_matmul_bn(
            out2, w3, sb3, relu=True, proj=(xs, ws, sbs), out_dtype=x_nhwc.dtype
        )
    else:
        sc = xq.reshape(N * Ho * Wo, Cin_p)       # identity shortcut (Cin_p == Cf_p)
        out3 = fused_matmul_bn(
            out2, w3, sb3, relu=True, residual=sc, out_dtype=x_nhwc.dtype
        )
    return out3.reshape(N, Ho, Wo, Cf_p)[..., :cout_final]


# ---------------------------------------------------------------------------
# Pure-JAX reference (same NHWC semantics) for correctness checking
# ---------------------------------------------------------------------------
def bottleneck_reference(x_nhwc, params, stride=1, round_dtype=None):
    """If round_dtype is set, weights/intermediate activations are rounded through
    that dtype to mirror the low-precision kernel path (f32 accumulation)."""
    if round_dtype is None:
        q = lambda a: a
    else:
        q = lambda a: a.astype(round_dtype).astype(jnp.float32)

    def conv(x_, w_, strides, padding):
        return lax.conv_general_dilated(
            q(x_), q(w_), window_strides=strides, padding=padding,
            dimension_numbers=("NHWC", "HWIO", "NHWC"),
            precision=lax.Precision.HIGHEST,
        )

    planes = params["w1"].shape[1]
    o1 = q(jax.nn.relu(
        conv(x_nhwc, params["w1"][None, None], (1, 1), "VALID") * params["s1"]
        + params["b1"]))
    o2 = q(jax.nn.relu(
        conv(o1, params["w2"], (stride, stride), [(1, 1), (1, 1)]) * params["s2"]
        + params["b2"]))
    o3 = conv(o2, params["w3"][None, None], (1, 1), "VALID") * params["s3"] + params["b3"]
    if stride != 1 or x_nhwc.shape[-1] != EXPANSION * planes:
        sc = q(
            conv(x_nhwc, params["ws"][None, None], (stride, stride), "VALID")
            * params["ss"] + params["bs"])
    else:
        sc = q(x_nhwc)
    return jax.nn.relu(o3 + sc)


def fold_bn(gamma, beta, mean, var, eps=1e-5):
    scale = gamma / jnp.sqrt(var + eps)
    bias = beta - mean * scale
    return scale, bias


if __name__ == "__main__":
    key = jax.random.PRNGKey(0)
    N, H, W = 2, 16, 16

    def bn_params(k, c):
        k1, k2, k3, k4 = jax.random.split(k, 4)
        gamma = jax.random.uniform(k1, (c,), jnp.float32, 0.5, 1.5)
        beta = 0.1 * jax.random.normal(k2, (c,), jnp.float32)
        mean = 0.1 * jax.random.normal(k3, (c,), jnp.float32)
        var = jax.random.uniform(k4, (c,), jnp.float32, 0.5, 1.5)
        return fold_bn(gamma, beta, mean, var)

    def make_params(k, in_planes, planes):
        ks = jax.random.split(k, 8)
        cout = EXPANSION * planes
        w1 = 0.2 * jax.random.normal(ks[0], (in_planes, planes), jnp.float32)
        w2 = 0.2 * jax.random.normal(ks[1], (3, 3, planes, planes), jnp.float32)
        w3 = 0.2 * jax.random.normal(ks[2], (planes, cout), jnp.float32)
        ws = 0.2 * jax.random.normal(ks[3], (in_planes, cout), jnp.float32)
        s1, b1 = bn_params(ks[4], planes)
        s2, b2 = bn_params(ks[5], planes)
        s3, b3 = bn_params(ks[6], cout)
        ss, bs = bn_params(ks[7], cout)
        return dict(w1=w1, w2=w2, w3=w3, ws=ws,
                    s1=s1, b1=b1, s2=s2, b2=b2, s3=s3, b3=b3, ss=ss, bs=bs)

    fwd = jax.jit(bottleneck_forward, static_argnames=("stride", "compute_dtype"))

    # (in_planes, planes, stride): projection shortcut, strided conv, identity shortcut.
    configs = [(4, 4, 1), (4, 4, 2), (16, 4, 1)]
    for idx, (in_planes, planes, stride) in enumerate(configs):
        kx, kp, key = jax.random.split(key, 3)
        # NHWC input (the PyTorch-equivalent NCHW shape is (N, in_planes, H, W))
        x = jax.random.normal(kx, (N, H, W, in_planes), jnp.float32)
        params = make_params(kp, in_planes, planes)

        out = jax.block_until_ready(fwd(x, params, stride=stride))
        ref = bottleneck_reference(x, params, stride)
        Ho = (H - 1) // stride + 1
        assert out.shape == ref.shape == (N, Ho, Ho, EXPANSION * planes)
        err = float(jnp.max(jnp.abs(out - ref)))
        # Tolerance covers possible reduced-precision MXU passes for f32 matmuls.
        assert jnp.allclose(out, ref, atol=2e-2, rtol=2e-2), (idx, "f32", err)

        if idx == 0:
            # bf16 MXU path (f32 accumulation), compared against a reference that
            # rounds weights/activations through bf16 the same way.
            out_bf = jax.block_until_ready(
                fwd(x, params, stride=stride, compute_dtype=jnp.bfloat16))
            ref_bf = bottleneck_reference(x, params, stride, round_dtype=jnp.bfloat16)
            err_bf = float(jnp.max(jnp.abs(out_bf - ref_bf)))
            assert jnp.allclose(out_bf, ref_bf, atol=5e-2, rtol=5e-2), ("bf16", err_bf)

    print("KERNEL_OK")
</pallas_src>

<mosaic_0001>
module attributes {stable_mosaic.version = 11 : i64} {
  func.func @_pw_kernel(%arg0: i32, %arg1: memref<512x128xf32, #tpu.memory_space<vmem>>, %arg2: memref<128x128xf32, #tpu.memory_space<vmem>>, %arg3: memref<2x128xf32, #tpu.memory_space<vmem>>, %arg4: memref<512x128xf32, #tpu.memory_space<vmem>>) attributes {dimension_semantics = [#tpu.dimension_semantics<parallel>], iteration_bounds = array<i64: 1>, scalar_prefetch = 0 : i64, scratch_operands = 0 : i64, tpu.core_type = #tpu.core_type<tc>, window_params = [{transform_indices = @transform_0, window_bounds = array<i64: 512, 128>}, {pipeline_mode = #tpu.pipeline_mode<synchronous>, transform_indices = @transform_1, window_bounds = array<i64: 128, 128>}, {pipeline_mode = #tpu.pipeline_mode<synchronous>, transform_indices = @transform_2, window_bounds = array<i64: 2, 128>}, {transform_indices = @transform_3, window_bounds = array<i64: 512, 128>}]} {
    %c0 = arith.constant 0 : index
    %c0_0 = arith.constant 0 : index
    %0 = vector.load %arg1[%c0, %c0_0] : memref<512x128xf32, #tpu.memory_space<vmem>>, vector<512x128xf32>
    %c0_1 = arith.constant 0 : index
    %c0_2 = arith.constant 0 : index
    %1 = vector.load %arg2[%c0_1, %c0_2] : memref<128x128xf32, #tpu.memory_space<vmem>>, vector<128x128xf32>
    %cst = arith.constant dense<0.000000e+00> : vector<512x128xf32>
    %2 = tpu.matmul %0, %1, %cst {dimension_numbers = #tpu.dot_dimension_numbers<[1], [0], [0], [1], [0, 0, 1, 1], [], []>} : vector<512x128xf32>, vector<128x128xf32>, vector<512x128xf32> -> vector<512x128xf32>
    %c0_3 = arith.constant 0 : index
    %c0_4 = arith.constant 0 : index
    %3 = vector.load %arg3[%c0_3, %c0_4] : memref<2x128xf32, #tpu.memory_space<vmem>>, vector<2x128xf32>
    %4 = vector.extract_strided_slice %3 {offsets = [0, 0], sizes = [1, 128], strides = [1, 1]} : vector<2x128xf32> to vector<1x128xf32>
    %5 = vector.broadcast %4 : vector<1x128xf32> to vector<512x128xf32>
    %6 = arith.mulf %2, %5 : vector<512x128xf32>
    %7 = vector.extract_strided_slice %3 {offsets = [1, 0], sizes = [1, 128], strides = [1, 1]} : vector<2x128xf32> to vector<1x128xf32>
    %8 = vector.broadcast %7 : vector<1x128xf32> to vector<512x128xf32>
    %9 = arith.addf %6, %8 : vector<512x128xf32>
    %cst_5 = arith.constant 0.000000e+00 : f32
    %10 = vector.broadcast %cst_5 : f32 to vector<512x128xf32>
    %11 = arith.maximumf %9, %10 : vector<512x128xf32>
    %c0_6 = arith.constant 0 : index
    %c0_7 = arith.constant 0 : index
    %12 = vector.load %arg4[%c0_6, %c0_7] : memref<512x128xf32, #tpu.memory_space<vmem>>, vector<512x128xf32>
    tpu.vector_store %arg4[%c0_6, %c0_7], %11 {strides = array<i32>} : memref<512x128xf32, #tpu.memory_space<vmem>>, vector<512x128xf32>,
    return
  }
  func.func @transform_0(%arg0: i32) -> (i32, i32) {
    %c0_i32 = arith.constant 0 : i32
    %c0_i32_0 = arith.constant 0 : i32
    return %arg0, %c0_i32 : i32, i32
  }
  func.func @transform_1(%arg0: i32) -> (i32, i32) {
    %c0_i32 = arith.constant 0 : i32
    %c0_i32_0 = arith.constant 0 : i32
    %c0_i32_1 = arith.constant 0 : i32
    return %c0_i32, %c0_i32_0 : i32, i32
  }
  func.func @transform_2(%arg0: i32) -> (i32, i32) {
    %c0_i32 = arith.constant 0 : i32
    %c0_i32_0 = arith.constant 0 : i32
    %c0_i32_1 = arith.constant 0 : i32
    return %c0_i32, %c0_i32_0 : i32, i32
  }
  func.func @transform_3(%arg0: i32) -> (i32, i32) {
    %c0_i32 = arith.constant 0 : i32
    %c0_i32_0 = arith.constant 0 : i32
    return %arg0, %c0_i32 : i32, i32
  }
}

module attributes {stable_mosaic.version = 11 : i64} {
  func.func @_pw_kernel(%arg0: i32, %arg1: memref<512x1152xf32, #tpu.memory_space<vmem>>, %arg2: memref<1152x128xf32, #tpu.memory_space<vmem>>, %arg3: memref<2x128xf32, #tpu.memory_space<vmem>>, %arg4: memref<512x128xf32, #tpu.memory_space<vmem>>) attributes {dimension_semantics = [#tpu.dimension_semantics<parallel>], iteration_bounds = array<i64: 1>, scalar_prefetch = 0 : i64, scratch_operands = 0 : i64, tpu.core_type = #tpu.core_type<tc>, window_params = [{transform_indices = @transform_0, window_bounds = array<i64: 512, 1152>}, {pipeline_mode = #tpu.pipeline_mode<synchronous>, transform_indices = @transform_1, window_bounds = array<i64: 1152, 128>}, {pipeline_mode = #tpu.pipeline_mode<synchronous>, transform_indices = @transform_2, window_bounds = array<i64: 2, 128>}, {transform_indices = @transform_3, window_bounds = array<i64: 512, 128>}]} {
    %c0 = arith.constant 0 : index
    %c0_0 = arith.constant 0 : index
    %0 = vector.load %arg1[%c0, %c0_0] : memref<512x1152xf32, #tpu.memory_space<vmem>>, vector<512x1152xf32>
    %c0_1 = arith.constant 0 : index
    %c0_2 = arith.constant 0 : index
    %1 = vector.load %arg2[%c0_1, %c0_2] : memref<1152x128xf32, #tpu.memory_space<vmem>>, vector<1152x128xf32>
    %cst = arith.constant dense<0.000000e+00> : vector<512x128xf32>
    %2 = tpu.matmul %0, %1, %cst {dimension_numbers = #tpu.dot_dimension_numbers<[1], [0], [0], [1], [0, 0, 1, 1], [], []>} : vector<512x1152xf32>, vector<1152x128xf32>, vector<512x128xf32> -> vector<512x128xf32>
    %c0_3 = arith.constant 0 : index
    %c0_4 = arith.constant 0 : index
    %3 = vector.load %arg3[%c0_3, %c0_4] : memref<2x128xf32, #tpu.memory_space<vmem>>, vector<2x128xf32>
    %4 = vector.extract_strided_slice %3 {offsets = [0, 0], sizes = [1, 128], strides = [1, 1]} : vector<2x128xf32> to vector<1x128xf32>
    %5 = vector.broadcast %4 : vector<1x128xf32> to vector<512x128xf32>
    %6 = arith.mulf %2, %5 : vector<512x128xf32>
    %7 = vector.extract_strided_slice %3 {offsets = [1, 0], sizes = [1, 128], strides = [1, 1]} : vector<2x128xf32> to vector<1x128xf32>
    %8 = vector.broadcast %7 : vector<1x128xf32> to vector<512x128xf32>
    %9 = arith.addf %6, %8 : vector<512x128xf32>
    %cst_5 = arith.constant 0.000000e+00 : f32
    %10 = vector.broadcast %cst_5 : f32 to vector<512x128xf32>
    %11 = arith.maximumf %9, %10 : vector<512x128xf32>
    %c0_6 = arith.constant 0 : index
    %c0_7 = arith.constant 0 : index
    %12 = vector.load %arg4[%c0_6, %c0_7] : memref<512x128xf32, #tpu.memory_space<vmem>>, vector<512x128xf32>
    tpu.vector_store %arg4[%c0_6, %c0_7], %11 {strides = array<i32>} : memref<512x128xf32, #tpu.memory_space<vmem>>, vector<512x128xf32>,
    return
  }
  func.func @transform_0(%arg0: i32) -> (i32, i32) {
    %c0_i32 = arith.constant 0 : i32
    %c0_i32_0 = arith.constant 0 : i32
    return %arg0, %c0_i32 : i32, i32
  }
  func.func @transform_1(%arg0: i32) -> (i32, i32) {
    %c0_i32 = arith.constant 0 : i32
    %c0_i32_0 = arith.constant 0 : i32
    %c0_i32_1 = arith.constant 0 : i32
    return %c0_i32, %c0_i32_0 : i32, i32
  }
  func.func @transform_2(%arg0: i32) -> (i32, i32) {
    %c0_i32 = arith.constant 0 : i32
    %c0_i32_0 = arith.constant 0 : i32
    %c0_i32_1 = arith.constant 0 : i32
    return %c0_i32, %c0_i32_0 : i32, i32
  }
  func.func @transform_3(%arg0: i32) -> (i32, i32) {
    %c0_i32 = arith.constant 0 : i32
    %c0_i32_0 = arith.constant 0 : i32
    return %arg0, %c0_i32 : i32, i32
  }
}

module attributes {stable_mosaic.version = 11 : i64} {
  func.func @_pw_kernel(%arg0: i32, %arg1: memref<512x128xf32, #tpu.memory_space<vmem>>, %arg2: memref<128x128xf32, #tpu.memory_space<vmem>>, %arg3: memref<2x128xf32, #tpu.memory_space<vmem>>, %arg4: memref<512x128xf32, #tpu.memory_space<vmem>>, %arg5: memref<128x128xf32, #tpu.memory_space<vmem>>, %arg6: memref<2x128xf32, #tpu.memory_space<vmem>>, %arg7: memref<512x128xf32, #tpu.memory_space<vmem>>) attributes {dimension_semantics = [#tpu.dimension_semantics<parallel>], iteration_bounds = array<i64: 1>, scalar_prefetch = 0 : i64, scratch_operands = 0 : i64, tpu.core_type = #tpu.core_type<tc>, window_params = [{transform_indices = @transform_0, window_bounds = array<i64: 512, 128>}, {pipeline_mode = #tpu.pipeline_mode<synchronous>, transform_indices = @transform_1, window_bounds = array<i64: 128, 128>}, {pipeline_mode = #tpu.pipeline_mode<synchronous>, transform_indices = @transform_2, window_bounds = array<i64: 2, 128>}, {transform_indices = @transform_3, window_bounds = array<i64: 512, 128>}, {pipeline_mode = #tpu.pipeline_mode<synchronous>, transform_indices = @transform_4, window_bounds = array<i64: 128, 128>}, {pipeline_mode = #tpu.pipeline_mode<synchronous>, transform_indices = @transform_5, window_bounds = array<i64: 2, 128>}, {transform_indices = @transform_6, window_bounds = array<i64: 512, 128>}]} {
    %c0 = arith.constant 0 : index
    %c0_0 = arith.constant 0 : index
    %0 = vector.load %arg1[%c0, %c0_0] : memref<512x128xf32, #tpu.memory_space<vmem>>, vector<512x128xf32>
    %c0_1 = arith.constant 0 : index
    %c0_2 = arith.constant 0 : index
    %1 = vector.load %arg2[%c0_1, %c0_2] : memref<128x128xf32, #tpu.memory_space<vmem>>, vector<128x128xf32>
    %cst = arith.constant dense<0.000000e+00> : vector<512x128xf32>
    %2 = tpu.matmul %0, %1, %cst {dimension_numbers = #tpu.dot_dimension_numbers<[1], [0], [0], [1], [0, 0, 1, 1], [], []>} : vector<512x128xf32>, vector<128x128xf32>, vector<512x128xf32> -> vector<512x128xf32>
    %c0_3 = arith.constant 0 : index
    %c0_4 = arith.constant 0 : index
    %3 = vector.load %arg3[%c0_3, %c0_4] : memref<2x128xf32, #tpu.memory_space<vmem>>, vector<2x128xf32>
    %4 = vector.extract_strided_slice %3 {offsets = [0, 0], sizes = [1, 128], strides = [1, 1]} : vector<2x128xf32> to vector<1x128xf32>
    %5 = vector.broadcast %4 : vector<1x128xf32> to vector<512x128xf32>
    %6 = arith.mulf %2, %5 : vector<512x128xf32>
    %7 = vector.extract_strided_slice %3 {offsets = [1, 0], sizes = [1, 128], strides = [1, 1]} : vector<2x128xf32> to vector<1x128xf32>
    %8 = vector.broadcast %7 : vector<1x128xf32> to vector<512x128xf32>
    %9 = arith.addf %6, %8 : vector<512x128xf32>
    %c0_5 = arith.constant 0 : index
    %c0_6 = arith.constant 0 : index
    %10 = vector.load %arg4[%c0_5, %c0_6] : memref<512x128xf32, #tpu.memory_space<vmem>>, vector<512x128xf32>
    %c0_7 = arith.constant 0 : index
    %c0_8 = arith.constant 0 : index
    %11 = vector.load %arg5[%c0_7, %c0_8] : memref<128x128xf32, #tpu.memory_space<vmem>>, vector<128x128xf32>
    %cst_9 = arith.constant dense<0.000000e+00> : vector<512x128xf32>
    %12 = tpu.matmul %10, %11, %cst_9 {dimension_numbers = #tpu.dot_dimension_numbers<[1], [0], [0], [1], [0, 0, 1, 1], [], []>} : vector<512x128xf32>, vector<128x128xf32>, vector<512x128xf32> -> vector<512x128xf32>
    %c0_10 = arith.constant 0 : index
    %c0_11 = arith.constant 0 : index
    %13 = vector.load %arg6[%c0_10, %c0_11] : memref<2x128xf32, #tpu.memory_space<vmem>>, vector<2x128xf32>
    %14 = vector.extract_strided_slice %13 {offsets = [0, 0], sizes = [1, 128], strides = [1, 1]} : vector<2x128xf32> to vector<1x128xf32>
    %15 = vector.broadcast %14 : vector<1x128xf32> to vector<512x128xf32>
    %16 = arith.mulf %12, %15 : vector<512x128xf32>
    %17 = arith.addf %9, %16 : vector<512x128xf32>
    %18 = vector.extract_strided_slice %13 {offsets = [1, 0], sizes = [1, 128], strides = [1, 1]} : vector<2x128xf32> to vector<1x128xf32>
    %19 = vector.broadcast %18 : vector<1x128xf32> to vector<512x128xf32>
    %20 = arith.addf %17, %19 : vector<512x128xf32>
    %cst_12 = arith.constant 0.000000e+00 : f32
    %21 = vector.broadcast %cst_12 : f32 to vector<512x128xf32>
    %22 = arith.maximumf %20, %21 : vector<512x128xf32>
    %c0_13 = arith.constant 0 : index
    %c0_14 = arith.constant 0 : index
    %23 = vector.load %arg7[%c0_13, %c0_14] : memref<512x128xf32, #tpu.memory_space<vmem>>, vector<512x128xf32>
    tpu.vector_store %arg7[%c0_13, %c0_14], %22 {strides = array<i32>} : memref<512x128xf32, #tpu.memory_space<vmem>>, vector<512x128xf32>,
    return
  }
  func.func @transform_0(%arg0: i32) -> (i32, i32) {
    %c0_i32 = arith.constant 0 : i32
    %c0_i32_0 = arith.constant 0 : i32
    return %arg0, %c0_i32 : i32, i32
  }
  func.func @transform_1(%arg0: i32) -> (i32, i32) {
    %c0_i32 = arith.constant 0 : i32
    %c0_i32_0 = arith.constant 0 : i32
    %c0_i32_1 = arith.constant 0 : i32
    return %c0_i32, %c0_i32_0 : i32, i32
  }
  func.func @transform_2(%arg0: i32) -> (i32, i32) {
    %c0_i32 = arith.constant 0 : i32
    %c0_i32_0 = arith.constant 0 : i32
    %c0_i32_1 = arith.constant 0 : i32
    return %c0_i32, %c0_i32_0 : i32, i32
  }
  func.func @transform_3(%arg0: i32) -> (i32, i32) {
    %c0_i32 = arith.constant 0 : i32
    %c0_i32_0 = arith.constant 0 : i32
    return %arg0, %c0_i32 : i32, i32
  }
  func.func @transform_4(%arg0: i32) -> (i32, i32) {
    %c0_i32 = arith.constant 0 : i32
    %c0_i32_0 = arith.constant 0 : i32
    %c0_i32_1 = arith.constant 0 : i32
    return %c0_i32, %c0_i32_0 : i32, i32
  }
  func.func @transform_5(%arg0: i32) -> (i32, i32) {
    %c0_i32 = arith.constant 0 : i32
    %c0_i32_0 = arith.constant 0 : i32
    %c0_i32_1 = arith.constant 0 : i32
    return %c0_i32, %c0_i32_0 : i32, i32
  }
  func.func @transform_6(%arg0: i32) -> (i32, i32) {
    %c0_i32 = arith.constant 0 : i32
    %c0_i32_0 = arith.constant 0 : i32
    return %arg0, %c0_i32 : i32, i32
  }
}

</mosaic_0001>

<llo_original>
// kernel: bottleneck_forward.3
$region0: #{bottleneck_forward.3}
  #allocation0 [shape = 'u32[]', space=smem, size = 0x4, offset = 0x4, fixed_abs, tag = 'smem constant byte address 0x4 - core index']
  #allocation1 [shape = 'u32[72,128]{1,0:T(1,128)}', space=vmem, size = 0x9000, scoped, tag = 'internal scratch']
  %s0 = inlined_call_operand.vmem [shape: f32[512,128], index: 0, kind: input, shape index: {}]
  %s1 = inlined_call_operand.vmem [shape: f32[128,128], index: 1, kind: input, shape index: {}]
  %s2 = inlined_call_operand.vmem [shape: f32[2,128], index: 2, kind: input, shape index: {}]
  %s3 = inlined_call_operand.vmem [shape: f32[512,128], index: 3, kind: output, shape index: {}]
  %s4 = sld [smem:[#allocation0]]
  $region22: #{bottleneck_forward.3} parent=0
    _
  %s6 = ssub.s32 1, %s4
  %s7 = scalar_select 0, %s6, %s4
  // Predicated region
  $region2: #{bottleneck_forward.3} parent=0 // pred_check
    _
  $region3: #{bottleneck_forward.3} parent=0 // pred_check_branch
    %9 = sbr.rel (0) target = $region5
  $region4: #{bottleneck_forward.3} parent=0 // pred_region
    _
  $region5: #{bottleneck_forward.3} parent=0 // pred_fallthru
    _
  // Predicated region
  $region6: #{bottleneck_forward.3} parent=0 // pred_check
    _
  $region7: #{bottleneck_forward.3} parent=0 // pred_check_branch
    %11 = sbr.rel (0) target = $region9
  $region8: #{bottleneck_forward.3} parent=0 // pred_region
    _
  $region9: #{bottleneck_forward.3} parent=0 // pred_fallthru
    _
  // Predicated region
  $region10: #{bottleneck_forward.3} parent=0 // pred_check
    _
  $region11: #{bottleneck_forward.3} parent=0 // pred_check_branch
    %13 = sbr.rel (0) target = $region13
  $region12: #{bottleneck_forward.3} parent=0 // pred_region
    _
  $region13: #{bottleneck_forward.3} parent=0 // pred_fallthru
    _
  %v14 = vld [vmem:[%s0] sm:$0xff]
  %v15 = vld [vmem:[%s0 + $0x8] sm:$0xff]
  %v16 = vld [vmem:[%s0 + $0x10] sm:$0xff]
  %v17 = vld [vmem:[%s0 + $0x18] sm:$0xff]
  %v18 = vld [vmem:[%s0 + $0x20] sm:$0xff]
  %v19 = vld [vmem:[%s0 + $0x28] sm:$0xff]
  %v20 = vld [vmem:[%s0 + $0x30] sm:$0xff]
  %v21 = vld [vmem:[%s0 + $0x38] sm:$0xff]
  %v22 = vld [vmem:[%s0 + $0x40] sm:$0xff]
  %v23 = vld [vmem:[%s0 + $0x48] sm:$0xff]
  %v24 = vld [vmem:[%s0 + $0x50] sm:$0xff]
  %v25 = vld [vmem:[%s0 + $0x58] sm:$0xff]
  %v26 = vld [vmem:[%s0 + $0x60] sm:$0xff]
  %v27 = vld [vmem:[%s0 + $0x68] sm:$0xff]
  %v28 = vld [vmem:[%s0 + $0x70] sm:$0xff]
  %v29 = vld [vmem:[%s0 + $0x78] sm:$0xff]
  %v30 = vld [vmem:[%s0 + $0x80] sm:$0xff]
  %v31 = vld [vmem:[%s0 + $0x88] sm:$0xff]
  %v32 = vld [vmem:[%s0 + $0x90] sm:$0xff]
  %v33 = vld [vmem:[%s0 + $0x98] sm:$0xff]
  %v34 = vld [vmem:[%s0 + $0xa0] sm:$0xff]
  %v35 = vld [vmem:[%s0 + $0xa8] sm:$0xff]
  %v36 = vld [vmem:[%s0 + $0xb0] sm:$0xff]
  %v37 = vld [vmem:[%s0 + $0xb8] sm:$0xff]
  %v38 = vld [vmem:[%s0 + $0xc0] sm:$0xff]
  %v39 = vld [vmem:[%s0 + $0xc8] sm:$0xff]
  %v40 = vld [vmem:[%s0 + $0xd0] sm:$0xff]
  %v41 = vld [vmem:[%s0 + $0xd8] sm:$0xff]
  %v42 = vld [vmem:[%s0 + $0xe0] sm:$0xff]
  %v43 = vld [vmem:[%s0 + $0xe8] sm:$0xff]
  %v44 = vld [vmem:[%s0 + $0xf0] sm:$0xff]
  %v45 = vld [vmem:[%s0 + $0xf8] sm:$0xff]
  %v46 = vld [vmem:[%s0 + $0x100] sm:$0xff]
  %v47 = vld [vmem:[%s0 + $0x108] sm:$0xff]
  %v48 = vld [vmem:[%s0 + $0x110] sm:$0xff]
  %v49 = vld [vmem:[%s0 + $0x118] sm:$0xff]
  %v50 = vld [vmem:[%s0 + $0x120] sm:$0xff]
  %v51 = vld [vmem:[%s0 + $0x128] sm:$0xff]
  %v52 = vld [vmem:[%s0 + $0x130] sm:$0xff]
  %v53 = vld [vmem:[%s0 + $0x138] sm:$0xff]
  %v54 = vld [vmem:[%s0 + $0x140] sm:$0xff]
  %v55 = vld [vmem:[%s0 + $0x148] sm:$0xff]
  %v56 = vld [vmem:[%s0 + $0x150] sm:$0xff]
  %v57 = vld [vmem:[%s0 + $0x158] sm:$0xff]
  %v58 = vld [vmem:[%s0 + $0x160] sm:$0xff]
  %v59 = vld [vmem:[%s0 + $0x168] sm:$0xff]
  %v60 = vld [vmem:[%s0 + $0x170] sm:$0xff]
  %v61 = vld [vmem:[%s0 + $0x178] sm:$0xff]
  %v62 = vld [vmem:[%s0 + $0x180] sm:$0xff]
  %v63 = vld [vmem:[%s0 + $0x188] sm:$0xff]
  %v64 = vld [vmem:[%s0 + $0x190] sm:$0xff]
  %v65 = vld [vmem:[%s0 + $0x198] sm:$0xff]
  %v66 = vld [vmem:[%s0 + $0x1a0] sm:$0xff]
  %v67 = vld [vmem:[%s0 + $0x1a8] sm:$0xff]
  %v68 = vld [vmem:[%s0 + $0x1b0] sm:$0xff]
  %v69 = vld [vmem:[%s0 + $0x1b8] sm:$0xff]
  %v70 = vld [vmem:[%s0 + $0x1c0] sm:$0xff]
  %v71 = vld [vmem:[%s0 + $0x1c8] sm:$0xff]
  %v72 = vld [vmem:[%s0 + $0x1d0] sm:$0xff]
  %v73 = vld [vmem:[%s0 + $0x1d8] sm:$0xff]
  %v74 = vld [vmem:[%s0 + $0x1e0] sm:$0xff]
  %v75 = vld [vmem:[%s0 + $0x1e8] sm:$0xff]
  %v76 = vld [vmem:[%s0 + $0x1f0] sm:$0xff]
  %v77 = vld [vmem:[%s0 + $0x1f8] sm:$0xff]
  %v78 = vld [vmem:[%s1] sm:$0xff]
  %v79 = vld [vmem:[%s1 + $0x8] sm:$0xff]
  %v80 = vld [vmem:[%s1 + $0x10] sm:$0xff]
  %v81 = vld [vmem:[%s1 + $0x18] sm:$0xff]
  %v82 = vld [vmem:[%s1 + $0x20] sm:$0xff]
  %v83 = vld [vmem:[%s1 + $0x28] sm:$0xff]
  %v84 = vld [vmem:[%s1 + $0x30] sm:$0xff]
  %v85 = vld [vmem:[%s1 + $0x38] sm:$0xff]
  %v86 = vld [vmem:[%s1 + $0x40] sm:$0xff]
  %v87 = vld [vmem:[%s1 + $0x48] sm:$0xff]
  %v88 = vld [vmem:[%s1 + $0x50] sm:$0xff]
  %v89 = vld [vmem:[%s1 + $0x58] sm:$0xff]
  %v90 = vld [vmem:[%s1 + $0x60] sm:$0xff]
  %v91 = vld [vmem:[%s1 + $0x68] sm:$0xff]
  %v92 = vld [vmem:[%s1 + $0x70] sm:$0xff]
  %v93 = vld [vmem:[%s1 + $0x78] sm:$0xff]
  %94 = vmatpush.msra.mxu0 %v93
  %95 = vmatpush.msra.mxu0 %v92
  %96 = vmatpush.msra.mxu0 %v91
  %97 = vmatpush.msra.mxu0 %v90
  %98 = vmatpush.msra.mxu0 %v89
  %99 = vmatpush.msra.mxu0 %v88
  %100 = vmatpush.msra.mxu0 %v87
  %101 = vmatpush.msra.mxu0 %v86
  %102 = vmatpush.msra.mxu0 %v85
  %103 = vmatpush.msra.mxu0 %v84
  %104 = vmatpush.msra.mxu0 %v83
  %105 = vmatpush.msra.mxu0 %v82
  %106 = vmatpush.msra.mxu0 %v81
  %107 = vmatpush.msra.mxu0 %v80
  %108 = vmatpush.msra.mxu0 %v79
  %109 = vmatpush.msra.mxu0 %v78
  %110 = vmatmul.f32.gmra.mxu0 %v14
  %v111 = vpop.f32.mrf.mxu0
  %v112 = vadd.f32 0.0, %v111
  %113 = vmatmul.f32.gmra.mxu0 %v15
  %v114 = vpop.f32.mrf.mxu0
  %v115 = vadd.f32 0.0, %v114
  %116 = vmatmul.f32.gmra.mxu0 %v16
  %v117 = vpop.f32.mrf.mxu0
  %v118 = vadd.f32 0.0, %v117
  %119 = vmatmul.f32.gmra.mxu0 %v17
  %v120 = vpop.f32.mrf.mxu0
  %v121 = vadd.f32 0.0, %v120
  %122 = vmatmul.f32.gmra.mxu0 %v18
  %v123 = vpop.f32.mrf.mxu0
  %v124 = vadd.f32 0.0, %v123
  %125 = vmatmul.f32.gmra.mxu0 %v19
  %v126 = vpop.f32.mrf.mxu0
  %v127 = vadd.f32 0.0, %v126
  %128 = vmatmul.f32.gmra.mxu0 %v20
  %v129 = vpop.f32.mrf.mxu0
  %v130 = vadd.f32 0.0, %v129
  %131 = vmatmul.f32.gmra.mxu0 %v21
  %v132 = vpop.f32.mrf.mxu0
  %v133 = vadd.f32 0.0, %v132
  %134 = vmatmul.f32.gmra.mxu0 %v22
  %v135 = vpop.f32.mrf.mxu0
  %v136 = vadd.f32 0.0, %v135
  %137 = vmatmul.f32.gmra.mxu0 %v23
  %v138 = vpop.f32.mrf.mxu0
  %v139 = vadd.f32 0.0, %v138
  %140 = vmatmul.f32.gmra.mxu0 %v24
  %v141 = vpop.f32.mrf.mxu0
  %v142 = vadd.f32 0.0, %v141
  %143 = vmatmul.f32.gmra.mxu0 %v25
  %v144 = vpop.f32.mrf.mxu0
  %v145 = vadd.f32 0.0, %v144
  %146 = vmatmul.f32.gmra.mxu0 %v26
  %v147 = vpop.f32.mrf.mxu0
  %v148 = vadd.f32 0.0, %v147
  %149 = vmatmul.f32.gmra.mxu0 %v27
  %v150 = vpop.f32.mrf.mxu0
  %v151 = vadd.f32 0.0, %v150
  %152 = vmatmul.f32.gmra.mxu0 %v28
  %v153 = vpop.f32.mrf.mxu0
  %v154 = vadd.f32 0.0, %v153
  %155 = vmatmul.f32.gmra.mxu0 %v29
  %v156 = vpop.f32.mrf.mxu0
  %v157 = vadd.f32 0.0, %v156
  %158 = vmatmul.f32.gmra.mxu0 %v30
  %v159 = vpop.f32.mrf.mxu0
  %v160 = vadd.f32 0.0, %v159
  %161 = vmatmul.f32.gmra.mxu0 %v31
  %v162 = vpop.f32.mrf.mxu0
  %v163 = vadd.f32 0.0, %v162
  %164 = vmatmul.f32.gmra.mxu0 %v32
  %v165 = vpop.f32.mrf.mxu0
  %v166 = vadd.f32 0.0, %v165
  %167 = vmatmul.f32.gmra.mxu0 %v33
  %v168 = vpop.f32.mrf.mxu0
  %v169 = vadd.f32 0.0, %v168
  %170 = vmatmul.f32.gmra.mxu0 %v34
  %v171 = vpop.f32.mrf.mxu0
  %v172 = vadd.f32 0.0, %v171
  %173 = vmatmul.f32.gmra.mxu0 %v35
  %v174 = vpop.f32.mrf.mxu0
  %v175 = vadd.f32 0.0, %v174
  %176 = vmatmul.f32.gmra.mxu0 %v36
  %v177 = vpop.f32.mrf.mxu0
  %v178 = vadd.f32 0.0, %v177
  %179 = vmatmul.f32.gmra.mxu0 %v37
  %v180 = vpop.f32.mrf.mxu0
  %v181 = vadd.f32 0.0, %v180
  %182 = vmatmul.f32.gmra.mxu0 %v38
  %v183 = vpop.f32.mrf.mxu0
  %v184 = vadd.f32 0.0, %v183
  %185 = vmatmul.f32.gmra.mxu0 %v39
  %v186 = vpop.f32.mrf.mxu0
  %v187 = vadd.f32 0.0, %v186
  %188 = vmatmul.f32.gmra.mxu0 %v40
  %v189 = vpop.f32.mrf.mxu0
  %v190 = vadd.f32 0.0, %v189
  %191 = vmatmul.f32.gmra.mxu0 %v41
  %v192 = vpop.f32.mrf.mxu0
  %v193 = vadd.f32 0.0, %v192
  %194 = vmatmul.f32.gmra.mxu0 %v42
  %v195 = vpop.f32.mrf.mxu0
  %v196 = vadd.f32 0.0, %v195
  %197 = vmatmul.f32.gmra.mxu0 %v43
  %v198 = vpop.f32.mrf.mxu0
  %v199 = vadd.f32 0.0, %v198
  %200 = vmatmul.f32.gmra.mxu0 %v44
  %v201 = vpop.f32.mrf.mxu0
  %v202 = vadd.f32 0.0, %v201
  %203 = vmatmul.f32.gmra.mxu0 %v45
  %v204 = vpop.f32.mrf.mxu0
  %v205 = vadd.f32 0.0, %v204
  %206 = vmatmul.f32.gmra.mxu0 %v46
  %v207 = vpop.f32.mrf.mxu0
  %v208 = vadd.f32 0.0, %v207
  %209 = vmatmul.f32.gmra.mxu0 %v47
  %v210 = vpop.f32.mrf.mxu0
  %v211 = vadd.f32 0.0, %v210
  %212 = vmatmul.f32.gmra.mxu0 %v48
  %v213 = vpop.f32.mrf.mxu0
  %v214 = vadd.f32 0.0, %v213
  %215 = vmatmul.f32.gmra.mxu0 %v49
  %v216 = vpop.f32.mrf.mxu0
  %v217 = vadd.f32 0.0, %v216
  %218 = vmatmul.f32.gmra.mxu0 %v50
  %v219 = vpop.f32.mrf.mxu0
  %v220 = vadd.f32 0.0, %v219
  %221 = vmatmul.f32.gmra.mxu0 %v51
  %v222 = vpop.f32.mrf.mxu0
  %v223 = vadd.f32 0.0, %v222
  %224 = vmatmul.f32.gmra.mxu0 %v52
  %v225 = vpop.f32.mrf.mxu0
  %v226 = vadd.f32 0.0, %v225
  %227 = vmatmul.f32.gmra.mxu0 %v53
  %v228 = vpop.f32.mrf.mxu0
  %v229 = vadd.f32 0.0, %v228
  %230 = vmatmul.f32.gmra.mxu0 %v54
  %v231 = vpop.f32.mrf.mxu0
  %v232 = vadd.f32 0.0, %v231
  %233 = vmatmul.f32.gmra.mxu0 %v55
  %v234 = vpop.f32.mrf.mxu0
  %v235 = vadd.f32 0.0, %v234
  %236 = vmatmul.f32.gmra.mxu0 %v56
  %v237 = vpop.f32.mrf.mxu0
  %v238 = vadd.f32 0.0, %v237
  %239 = vmatmul.f32.gmra.mxu0 %v57
  %v240 = vpop.f32.mrf.mxu0
  %v241 = vadd.f32 0.0, %v240
  %242 = vmatmul.f32.gmra.mxu0 %v58
  %v243 = vpop.f32.mrf.mxu0
  %v244 = vadd.f32 0.0, %v243
  %245 = vmatmul.f32.gmra.mxu0 %v59
  %v246 = vpop.f32.mrf.mxu0
  %v247 = vadd.f32 0.0, %v246
  %248 = vmatmul.f32.gmra.mxu0 %v60
  %v249 = vpop.f32.mrf.mxu0
  %v250 = vadd.f32 0.0, %v249
  %251 = vmatmul.f32.gmra.mxu0 %v61
  %v252 = vpop.f32.mrf.mxu0
  %v253 = vadd.f32 0.0, %v252
  %254 = vmatmul.f32.gmra.mxu0 %v62
  %v255 = vpop.f32.mrf.mxu0
  %v256 = vadd.f32 0.0, %v255
  %257 = vmatmul.f32.gmra.mxu0 %v63
  %v258 = vpop.f32.mrf.mxu0
  %v259 = vadd.f32 0.0, %v258
  %260 = vmatmul.f32.gmra.mxu0 %v64
  %v261 = vpop.f32.mrf.mxu0
  %v262 = vadd.f32 0.0, %v261
  %263 = vmatmul.f32.gmra.mxu0 %v65
  %v264 = vpop.f32.mrf.mxu0
  %v265 = vadd.f32 0.0, %v264
  %266 = vmatmul.f32.gmra.mxu0 %v66
  %v267 = vpop.f32.mrf.mxu0
  %v268 = vadd.f32 0.0, %v267
  %269 = vmatmul.f32.gmra.mxu0 %v67
  %v270 = vpop.f32.mrf.mxu0
  %v271 = vadd.f32 0.0, %v270
  %272 = vmatmul.f32.gmra.mxu0 %v68
  %v273 = vpop.f32.mrf.mxu0
  %v274 = vadd.f32 0.0, %v273
  %275 = vmatmul.f32.gmra.mxu0 %v69
  %v276 = vpop.f32.mrf.mxu0
  %v277 = vadd.f32 0.0, %v276
  %278 = vmatmul.f32.gmra.mxu0 %v70
  %v279 = vpop.f32.mrf.mxu0
  %v280 = vadd.f32 0.0, %v279
  %281 = vmatmul.f32.gmra.mxu0 %v71
  %v282 = vpop.f32.mrf.mxu0
  %v283 = vadd.f32 0.0, %v282
  %284 = vmatmul.f32.gmra.mxu0 %v72
  %v285 = vpop.f32.mrf.mxu0
  %v286 = vadd.f32 0.0, %v285
  %287 = vmatmul.f32.gmra.mxu0 %v73
  %v288 = vpop.f32.mrf.mxu0
  %v289 = vadd.f32 0.0, %v288
  %290 = vmatmul.f32.gmra.mxu0 %v74
  %v291 = vpop.f32.mrf.mxu0
  %v292 = vadd.f32 0.0, %v291
  %293 = vmatmul.f32.gmra.mxu0 %v75
  %v294 = vpop.f32.mrf.mxu0
  %v295 = vadd.f32 0.0, %v294
  %296 = vmatmul.f32.gmra.mxu0 %v76
  %v297 = vpop.f32.mrf.mxu0
  %v298 = vadd.f32 0.0, %v297
  %299 = vmatmul.f32.gmra.mxu0 %v77
  %v300 = vpop.f32.mrf.mxu0
  %v301 = vadd.f32 0.0, %v300
  %302 = vdwg.mxu0
  %v303 = vld [vmem:[%s2] sm:$0x3]
  %v304 = vperm.slane %v303, 0
  %v305 = vmul.f32 %v112, %v304
  %v306 = vmul.f32 %v115, %v304
  %v307 = vmul.f32 %v118, %v304
  %v308 = vmul.f32 %v121, %v304
  %v309 = vmul.f32 %v124, %v304
  %v310 = vmul.f32 %v127, %v304
  %v311 = vmul.f32 %v130, %v304
  %v312 = vmul.f32 %v133, %v304
  %v313 = vmul.f32 %v136, %v304
  %v314 = vmul.f32 %v139, %v304
  %v315 = vmul.f32 %v142, %v304
  %v316 = vmul.f32 %v145, %v304
  %v317 = vmul.f32 %v148, %v304
  %v318 = vmul.f32 %v151, %v304
  %v319 = vmul.f32 %v154, %v304
  %v320 = vmul.f32 %v157, %v304
  %v321 = vmul.f32 %v160, %v304
  %v322 = vmul.f32 %v163, %v304
  %v323 = vmul.f32 %v166, %v304
  %v324 = vmul.f32 %v169, %v304
  %v325 = vmul.f32 %v172, %v304
  %v326 = vmul.f32 %v175, %v304
  %v327 = vmul.f32 %v178, %v304
  %v328 = vmul.f32 %v181, %v304
  %v329 = vmul.f32 %v184, %v304
  %v330 = vmul.f32 %v187, %v304
  %v331 = vmul.f32 %v190, %v304
  %v332 = vmul.f32 %v193, %v304
  %v333 = vmul.f32 %v196, %v304
  %v334 = vmul.f32 %v199, %v304
  %v335 = vmul.f32 %v202, %v304
  %v336 = vmul.f32 %v205, %v304
  %v337 = vmul.f32 %v208, %v304
  %v338 = vmul.f32 %v211, %v304
  %v339 = vmul.f32 %v214, %v304
  %v340 = vmul.f32 %v217, %v304
  %v341 = vmul.f32 %v220, %v304
  %v342 = vmul.f32 %v223, %v304
  %v343 = vmul.f32 %v226, %v304
  %v344 = vmul.f32 %v229, %v304
  %v345 = vmul.f32 %v232, %v304
  %v346 = vmul.f32 %v235, %v304
  %v347 = vmul.f32 %v238, %v304
  %v348 = vmul.f32 %v241, %v304
  %v349 = vmul.f32 %v244, %v304
  %v350 = vmul.f32 %v247, %v304
  %v351 = vmul.f32 %v250, %v304
  %v352 = vmul.f32 %v253, %v304
  %v353 = vmul.f32 %v256, %v304
  %v354 = vmul.f32 %v259, %v304
  %v355 = vmul.f32 %v262, %v304
  %v356 = vmul.f32 %v265, %v304
  %v357 = vmul.f32 %v268, %v304
  %v358 = vmul.f32 %v271, %v304
  %v359 = vmul.f32 %v274, %v304
  %v360 = vmul.f32 %v277, %v304
  %v361 = vmul.f32 %v280, %v304
  %v362 = vmul.f32 %v283, %v304
  %v363 = vmul.f32 %v286, %v304
  %v364 = vmul.f32 %v289, %v304
  %v365 = vmul.f32 %v292, %v304
  %v366 = vmul.f32 %v295, %v304
  %v367 = vmul.f32 %v298, %v304
  %v368 = vmul.f32 %v301, %v304
  %v369 = vperm.slane %v303, 1
  %v370 = vadd.f32 %v305, %v369
  %v371 = vadd.f32 %v306, %v369
  %v372 = vadd.f32 %v307, %v369
  %v373 = vadd.f32 %v308, %v369
  %v374 = vadd.f32 %v309, %v369
  %v375 = vadd.f32 %v310, %v369
  %v376 = vadd.f32 %v311, %v369
  %v377 = vadd.f32 %v312, %v369
  %v378 = vadd.f32 %v313, %v369
  %v379 = vadd.f32 %v314, %v369
  %v380 = vadd.f32 %v315, %v369
  %v381 = vadd.f32 %v316, %v369
  %v382 = vadd.f32 %v317, %v369
  %v383 = vadd.f32 %v318, %v369
  %v384 = vadd.f32 %v319, %v369
  %v385 = vadd.f32 %v320, %v369
  %v386 = vadd.f32 %v321, %v369
  %v387 = vadd.f32 %v322, %v369
  %v388 = vadd.f32 %v323, %v369
  %v389 = vadd.f32 %v324, %v369
  %v390 = vadd.f32 %v325, %v369
  %v391 = vadd.f32 %v326, %v369
  %v392 = vadd.f32 %v327, %v369
  %v393 = vadd.f32 %v328, %v369
  %v394 = vadd.f32 %v329, %v369
  %v395 = vadd.f32 %v330, %v369
  %v396 = vadd.f32 %v331, %v369
  %v397 = vadd.f32 %v332, %v369
  %v398 = vadd.f32 %v333, %v369
  %v399 = vadd.f32 %v334, %v369
  %v400 = vadd.f32 %v335, %v369
  %v401 = vadd.f32 %v336, %v369
  %v402 = vadd.f32 %v337, %v369
  %v403 = vadd.f32 %v338, %v369
  %v404 = vadd.f32 %v339, %v369
  %v405 = vadd.f32 %v340, %v369
  %v406 = vadd.f32 %v341, %v369
  %v407 = vadd.f32 %v342, %v369
  %v408 = vadd.f32 %v343, %v369
  %v409 = vadd.f32 %v344, %v369
  %v410 = vadd.f32 %v345, %v369
  %v411 = vadd.f32 %v346, %v369
  %v412 = vadd.f32 %v347, %v369
  %v413 = vadd.f32 %v348, %v369
  %v414 = vadd.f32 %v349, %v369
  %v415 = vadd.f32 %v350, %v369
  %v416 = vadd.f32 %v351, %v369
  %v417 = vadd.f32 %v352, %v369
  %v418 = vadd.f32 %v353, %v369
  %v419 = vadd.f32 %v354, %v369
  %v420 = vadd.f32 %v355, %v369
  %v421 = vadd.f32 %v356, %v369
  %v422 = vadd.f32 %v357, %v369
  %v423 = vadd.f32 %v358, %v369
  %v424 = vadd.f32 %v359, %v369
  %v425 = vadd.f32 %v360, %v369
  %v426 = vadd.f32 %v361, %v369
  %v427 = vadd.f32 %v362, %v369
  %v428 = vadd.f32 %v363, %v369
  %v429 = vadd.f32 %v364, %v369
  %v430 = vadd.f32 %v365, %v369
  %v431 = vadd.f32 %v366, %v369
  %v432 = vadd.f32 %v367, %v369
  %v433 = vadd.f32 %v368, %v369
  %v434 = vmax.f32 %v370, 0.0
  %v435 = vmax.f32 %v371, 0.0
  %v436 = vmax.f32 %v372, 0.0
  %v437 = vmax.f32 %v373, 0.0
  %v438 = vmax.f32 %v374, 0.0
  %v439 = vmax.f32 %v375, 0.0
  %v440 = vmax.f32 %v376, 0.0
  %v441 = vmax.f32 %v377, 0.0
  %v442 = vmax.f32 %v378, 0.0
  %v443 = vmax.f32 %v379, 0.0
  %v444 = vmax.f32 %v380, 0.0
  %v445 = vmax.f32 %v381, 0.0
  %v446 = vmax.f32 %v382, 0.0
  %v447 = vmax.f32 %v383, 0.0
  %v448 = vmax.f32 %v384, 0.0
  %v449 = vmax.f32 %v385, 0.0
  %v450 = vmax.f32 %v386, 0.0
  %v451 = vmax.f32 %v387, 0.0
  %v452 = vmax.f32 %v388, 0.0
  %v453 = vmax.f32 %v389, 0.0
  %v454 = vmax.f32 %v390, 0.0
  %v455 = vmax.f32 %v391, 0.0
  %v456 = vmax.f32 %v392, 0.0
  %v457 = vmax.f32 %v393, 0.0
  %v458 = vmax.f32 %v394, 0.0
  %v459 = vmax.f32 %v395, 0.0
  %v460 = vmax.f32 %v396, 0.0
  %v461 = vmax.f32 %v397, 0.0
  %v462 = vmax.f32 %v398, 0.0
  %v463 = vmax.f32 %v399, 0.0
  %v464 = vmax.f32 %v400, 0.0
  %v465 = vmax.f32 %v401, 0.0
  %v466 = vmax.f32 %v402, 0.0
  %v467 = vmax.f32 %v403, 0.0
  %v468 = vmax.f32 %v404, 0.0
  %v469 = vmax.f32 %v405, 0.0
  %v470 = vmax.f32 %v406, 0.0
  %v471 = vmax.f32 %v407, 0.0
  %v472 = vmax.f32 %v408, 0.0
  %v473 = vmax.f32 %v409, 0.0
  %v474 = vmax.f32 %v410, 0.0
  %v475 = vmax.f32 %v411, 0.0
  %v476 = vmax.f32 %v412, 0.0
  %v477 = vmax.f32 %v413, 0.0
  %v478 = vmax.f32 %v414, 0.0
  %v479 = vmax.f32 %v415, 0.0
  %v480 = vmax.f32 %v416, 0.0
  %v481 = vmax.f32 %v417, 0.0
  %v482 = vmax.f32 %v418, 0.0
  %v483 = vmax.f32 %v419, 0.0
  %v484 = vmax.f32 %v420, 0.0
  %v485 = vmax.f32 %v421, 0.0
  %v486 = vmax.f32 %v422, 0.0
  %v487 = vmax.f32 %v423, 0.0
  %v488 = vmax.f32 %v424, 0.0
  %v489 = vmax.f32 %v425, 0.0
  %v490 = vmax.f32 %v426, 0.0
  %v491 = vmax.f32 %v427, 0.0
  %v492 = vmax.f32 %v428, 0.0
  %v493 = vmax.f32 %v429, 0.0
  %v494 = vmax.f32 %v430, 0.0
  %v495 = vmax.f32 %v431, 0.0
  %v496 = vmax.f32 %v432, 0.0
  %v497 = vmax.f32 %v433, 0.0
  %498 = vst [vmem:[%s3] sm:$0xff] %v434
  %499 = vst [vmem:[%s3 + $0x8] sm:$0xff] %v435
  %500 = vst [vmem:[%s3 + $0x10] sm:$0xff] %v436
  %501 = vst [vmem:[%s3 + $0x18] sm:$0xff] %v437
  %502 = vst [vmem:[%s3 + $0x20] sm:$0xff] %v438
  %503 = vst [vmem:[%s3 + $0x28] sm:$0xff] %v439
  %504 = vst [vmem:[%s3 + $0x30] sm:$0xff] %v440
  %505 = vst [vmem:[%s3 + $0x38] sm:$0xff] %v441
  %506 = vst [vmem:[%s3 + $0x40] sm:$0xff] %v442
  %507 = vst [vmem:[%s3 + $0x48] sm:$0xff] %v443
  %508 = vst [vmem:[%s3 + $0x50] sm:$0xff] %v444
  %509 = vst [vmem:[%s3 + $0x58] sm:$0xff] %v445
  %510 = vst [vmem:[%s3 + $0x60] sm:$0xff] %v446
  %511 = vst [vmem:[%s3 + $0x68] sm:$0xff] %v447
  %512 = vst [vmem:[%s3 + $0x70] sm:$0xff] %v448
  %513 = vst [vmem:[%s3 + $0x78] sm:$0xff] %v449
  %514 = vst [vmem:[%s3 + $0x80] sm:$0xff] %v450
  %515 = vst [vmem:[%s3 + $0x88] sm:$0xff] %v451
  %516 = vst [vmem:[%s3 + $0x90] sm:$0xff] %v452
  %517 = vst [vmem:[%s3 + $0x98] sm:$0xff] %v453
  %518 = vst [vmem:[%s3 + $0xa0] sm:$0xff] %v454
  %519 = vst [vmem:[%s3 + $0xa8] sm:$0xff] %v455
  %520 = vst [vmem:[%s3 + $0xb0] sm:$0xff] %v456
  %521 = vst [vmem:[%s3 + $0xb8] sm:$0xff] %v457
  %522 = vst [vmem:[%s3 + $0xc0] sm:$0xff] %v458
  %523 = vst [vmem:[%s3 + $0xc8] sm:$0xff] %v459
  %524 = vst [vmem:[%s3 + $0xd0] sm:$0xff] %v460
  %525 = vst [vmem:[%s3 + $0xd8] sm:$0xff] %v461
  %526 = vst [vmem:[%s3 + $0xe0] sm:$0xff] %v462
  %527 = vst [vmem:[%s3 + $0xe8] sm:$0xff] %v463
  %528 = vst [vmem:[%s3 + $0xf0] sm:$0xff] %v464
  %529 = vst [vmem:[%s3 + $0xf8] sm:$0xff] %v465
  %530 = vst [vmem:[%s3 + $0x100] sm:$0xff] %v466
  %531 = vst [vmem:[%s3 + $0x108] sm:$0xff] %v467
  %532 = vst [vmem:[%s3 + $0x110] sm:$0xff] %v468
  %533 = vst [vmem:[%s3 + $0x118] sm:$0xff] %v469
  %534 = vst [vmem:[%s3 + $0x120] sm:$0xff] %v470
  %535 = vst [vmem:[%s3 + $0x128] sm:$0xff] %v471
  %536 = vst [vmem:[%s3 + $0x130] sm:$0xff] %v472
  %537 = vst [vmem:[%s3 + $0x138] sm:$0xff] %v473
  %538 = vst [vmem:[%s3 + $0x140] sm:$0xff] %v474
  %539 = vst [vmem:[%s3 + $0x148] sm:$0xff] %v475
  %540 = vst [vmem:[%s3 + $0x150] sm:$0xff] %v476
  %541 = vst [vmem:[%s3 + $0x158] sm:$0xff] %v477
  %542 = vst [vmem:[%s3 + $0x160] sm:$0xff] %v478
  %543 = vst [vmem:[%s3 + $0x168] sm:$0xff] %v479
  %544 = vst [vmem:[%s3 + $0x170] sm:$0xff] %v480
  %545 = vst [vmem:[%s3 + $0x178] sm:$0xff] %v481
  %546 = vst [vmem:[%s3 + $0x180] sm:$0xff] %v482
  %547 = vst [vmem:[%s3 + $0x188] sm:$0xff] %v483
  %548 = vst [vmem:[%s3 + $0x190] sm:$0xff] %v484
  %549 = vst [vmem:[%s3 + $0x198] sm:$0xff] %v485
  %550 = vst [vmem:[%s3 + $0x1a0] sm:$0xff] %v486
  %551 = vst [vmem:[%s3 + $0x1a8] sm:$0xff] %v487
  %552 = vst [vmem:[%s3 + $0x1b0] sm:$0xff] %v488
  %553 = vst [vmem:[%s3 + $0x1b8] sm:$0xff] %v489
  %554 = vst [vmem:[%s3 + $0x1c0] sm:$0xff] %v490
  %555 = vst [vmem:[%s3 + $0x1c8] sm:$0xff] %v491
  %556 = vst [vmem:[%s3 + $0x1d0] sm:$0xff] %v492
  %557 = vst [vmem:[%s3 + $0x1d8] sm:$0xff] %v493
  %558 = vst [vmem:[%s3 + $0x1e0] sm:$0xff] %v494
  %559 = vst [vmem:[%s3 + $0x1e8] sm:$0xff] %v495
  %560 = vst [vmem:[%s3 + $0x1f0] sm:$0xff] %v496
  %561 = vst [vmem:[%s3 + $0x1f8] sm:$0xff] %v497
  // Predicated region
  $region14: #{bottleneck_forward.3} parent=0 // pred_check
    _
  $region15: #{bottleneck_forward.3} parent=0 // pred_check_branch
    %563 = sbr.rel (0) target = $region17
  $region16: #{bottleneck_forward.3} parent=0 // pred_region
    _
  $region17: #{bottleneck_forward.3} parent=0 // pred_fallthru
    _
  // Predicated region
  $region18: #{bottleneck_forward.3} parent=0 // pred_check
    _
  $region19: #{bottleneck_forward.3} parent=0 // pred_check_branch
    %565 = sbr.rel (0) target = $region21
  $region20: #{bottleneck_forward.3} parent=0 // pred_region
    _
  $region21: #{bottleneck_forward.3} parent=0 // pred_fallthru
    _

// kernel: bottleneck_forward.5
$region0: #{bottleneck_forward.5}
  #allocation0 [shape = 'u32[]', space=smem, size = 0x4, offset = 0x4, fixed_abs, tag = 'smem constant byte address 0x4 - core index']
  #allocation1 [shape = 'u32[72,128]{1,0:T(1,128)}', space=vmem, size = 0x9000, scoped, tag = 'internal scratch']
  %s0 = inlined_call_operand.vmem [shape: f32[512,128], index: 0, kind: input, shape index: {}]
  %s1 = inlined_call_operand.vmem [shape: f32[128,128], index: 1, kind: input, shape index: {}]
  %s2 = inlined_call_operand.vmem [shape: f32[2,128], index: 2, kind: input, shape index: {}]
  %s3 = inlined_call_operand.vmem [shape: f32[512,128], index: 3, kind: input, shape index: {}]
  %s4 = inlined_call_operand.vmem [shape: f32[128,128], index: 4, kind: input, shape index: {}]
  %s5 = inlined_call_operand.vmem [shape: f32[2,128], index: 5, kind: input, shape index: {}]
  %s6 = inlined_call_operand.hbm [shape: f32[512,128], index: 6, kind: output, shape index: {}]
  %s7 = sld [smem:[#allocation0]]
  $region34: #{bottleneck_forward.5} parent=0
    _
  %s9 = ssub.s32 1, %s7
  %s10 = scalar_select 0, %s9, %s7
  $region1: #{bottleneck_forward.5} parent=0
    #allocation2 [shape = 'u8[262144]{0}', space=vmem, size = 0x40000, scoped, tag = 'output window, operand 0, single buffered']
    #allocation3 [shape = 's32[1]{0}', space=sflag, size = 0x4, scoped, tag = 'scoped memory for bottleneck_forward.5']
    %11 = vsyncpa [#allocation3], 0
    // Predicated region
    $region2: #{bottleneck_forward.5} parent=1 // pred_check
      _
    $region3: #{bottleneck_forward.5} parent=1 // pred_check_branch
      %13 = sbr.rel (0) target = $region5
    $region4: #{bottleneck_forward.5} parent=1 // pred_region
      _
    $region5: #{bottleneck_forward.5} parent=1 // pred_fallthru
      _
    // Predicated region
    $region6: #{bottleneck_forward.5} parent=1 // pred_check
      _
    $region7: #{bottleneck_forward.5} parent=1 // pred_check_branch
      %15 = sbr.rel (0) target = $region9
    $region8: #{bottleneck_forward.5} parent=1 // pred_region
      _
    $region9: #{bottleneck_forward.5} parent=1 // pred_fallthru
      _
    // Predicated region
    $region10: #{bottleneck_forward.5} parent=1 // pred_check
      _
    $region11: #{bottleneck_forward.5} parent=1 // pred_check_branch
      %17 = sbr.rel (0) target = $region13
    $region12: #{bottleneck_forward.5} parent=1 // pred_region
      _
    $region13: #{bottleneck_forward.5} parent=1 // pred_fallthru
      _
    // Predicated region
    $region14: #{bottleneck_forward.5} parent=1 // pred_check
      _
    $region15: #{bottleneck_forward.5} parent=1 // pred_check_branch
      %19 = sbr.rel (0) target = $region17
    $region16: #{bottleneck_forward.5} parent=1 // pred_region
      _
    $region17: #{bottleneck_forward.5} parent=1 // pred_fallthru
      _
    // Predicated region
    $region18: #{bottleneck_forward.5} parent=1 // pred_check
      _
    $region19: #{bottleneck_forward.5} parent=1 // pred_check_branch
      %21 = sbr.rel (0) target = $region21
    $region20: #{bottleneck_forward.5} parent=1 // pred_region
      _
    $region21: #{bottleneck_forward.5} parent=1 // pred_fallthru
      _
    // Predicated region
    $region22: #{bottleneck_forward.5} parent=1 // pred_check
      _
    $region23: #{bottleneck_forward.5} parent=1 // pred_check_branch
      %23 = sbr.rel (0) target = $region25
    $region24: #{bottleneck_forward.5} parent=1 // pred_region
      _
    $region25: #{bottleneck_forward.5} parent=1 // pred_fallthru
      _
    %v24 = vld [vmem:[%s0] sm:$0xff]
    %v25 = vld [vmem:[%s0 + $0x8] sm:$0xff]
    %v26 = vld [vmem:[%s0 + $0x10] sm:$0xff]
    %v27 = vld [vmem:[%s0 + $0x18] sm:$0xff]
    %v28 = vld [vmem:[%s0 + $0x20] sm:$0xff]
    %v29 = vld [vmem:[%s0 + $0x28] sm:$0xff]
    %v30 = vld [vmem:[%s0 + $0x30] sm:$0xff]
    %v31 = vld [vmem:[%s0 + $0x38] sm:$0xff]
    %v32 = vld [vmem:[%s0 + $0x40] sm:$0xff]
    %v33 = vld [vmem:[%s0 + $0x48] sm:$0xff]
    %v34 = vld [vmem:[%s0 + $0x50] sm:$0xff]
    %v35 = vld [vmem:[%s0 + $0x58] sm:$0xff]
    %v36 = vld [vmem:[%s0 + $0x60] sm:$0xff]
    %v37 = vld [vmem:[%s0 + $0x68] sm:$0xff]
    %v38 = vld [vmem:[%s0 + $0x70] sm:$0xff]
    %v39 = vld [vmem:[%s0 + $0x78] sm:$0xff]
    %v40 = vld [vmem:[%s0 + $0x80] sm:$0xff]
    %v41 = vld [vmem:[%s0 + $0x88] sm:$0xff]
    %v42 = vld [vmem:[%s0 + $0x90] sm:$0xff]
    %v43 = vld [vmem:[%s0 + $0x98] sm:$0xff]
    %v44 = vld [vmem:[%s0 + $0xa0] sm:$0xff]
    %v45 = vld [vmem:[%s0 + $0xa8] sm:$0xff]
    %v46 = vld [vmem:[%s0 + $0xb0] sm:$0xff]
    %v47 = vld [vmem:[%s0 + $0xb8] sm:$0xff]
    %v48 = vld [vmem:[%s0 + $0xc0] sm:$0xff]
    %v49 = vld [vmem:[%s0 + $0xc8] sm:$0xff]
    %v50 = vld [vmem:[%s0 + $0xd0] sm:$0xff]
    %v51 = vld [vmem:[%s0 + $0xd8] sm:$0xff]
    %v52 = vld [vmem:[%s0 + $0xe0] sm:$0xff]
    %v53 = vld [vmem:[%s0 + $0xe8] sm:$0xff]
    %v54 = vld [vmem:[%s0 + $0xf0] sm:$0xff]
    %v55 = vld [vmem:[%s0 + $0xf8] sm:$0xff]
    %v56 = vld [vmem:[%s0 + $0x100] sm:$0xff]
    %v57 = vld [vmem:[%s0 + $0x108] sm:$0xff]
    %v58 = vld [vmem:[%s0 + $0x110] sm:$0xff]
    %v59 = vld [vmem:[%s0 + $0x118] sm:$0xff]
    %v60 = vld [vmem:[%s0 + $0x120] sm:$0xff]
    %v61 = vld [vmem:[%s0 + $0x128] sm:$0xff]
    %v62 = vld [vmem:[%s0 + $0x130] sm:$0xff]
    %v63 = vld [vmem:[%s0 + $0x138] sm:$0xff]
    %v64 = vld [vmem:[%s0 + $0x140] sm:$0xff]
    %v65 = vld [vmem:[%s0 + $0x148] sm:$0xff]
    %v66 = vld [vmem:[%s0 + $0x150] sm:$0xff]
    %v67 = vld [vmem:[%s0 + $0x158] sm:$0xff]
    %v68 = vld [vmem:[%s0 + $0x160] sm:$0xff]
    %v69 = vld [vmem:[%s0 + $0x168] sm:$0xff]
    %v70 = vld [vmem:[%s0 + $0x170] sm:$0xff]
    %v71 = vld [vmem:[%s0 + $0x178] sm:$0xff]
    %v72 = vld [vmem:[%s0 + $0x180] sm:$0xff]
    %v73 = vld [vmem:[%s0 + $0x188] sm:$0xff]
    %v74 = vld [vmem:[%s0 + $0x190] sm:$0xff]
    %v75 = vld [vmem:[%s0 + $0x198] sm:$0xff]
    %v76 = vld [vmem:[%s0 + $0x1a0] sm:$0xff]
    %v77 = vld [vmem:[%s0 + $0x1a8] sm:$0xff]
    %v78 = vld [vmem:[%s0 + $0x1b0] sm:$0xff]
    %v79 = vld [vmem:[%s0 + $0x1b8] sm:$0xff]
    %v80 = vld [vmem:[%s0 + $0x1c0] sm:$0xff]
    %v81 = vld [vmem:[%s0 + $0x1c8] sm:$0xff]
    %v82 = vld [vmem:[%s0 + $0x1d0] sm:$0xff]
    %v83 = vld [vmem:[%s0 + $0x1d8] sm:$0xff]
    %v84 = vld [vmem:[%s0 + $0x1e0] sm:$0xff]
    %v85 = vld [vmem:[%s0 + $0x1e8] sm:$0xff]
    %v86 = vld [vmem:[%s0 + $0x1f0] sm:$0xff]
    %v87 = vld [vmem:[%s0 + $0x1f8] sm:$0xff]
    %v88 = vld [vmem:[%s1] sm:$0xff]
    %v89 = vld [vmem:[%s1 + $0x8] sm:$0xff]
    %v90 = vld [vmem:[%s1 + $0x10] sm:$0xff]
    %v91 = vld [vmem:[%s1 + $0x18] sm:$0xff]
    %v92 = vld [vmem:[%s1 + $0x20] sm:$0xff]
    %v93 = vld [vmem:[%s1 + $0x28] sm:$0xff]
    %v94 = vld [vmem:[%s1 + $0x30] sm:$0xff]
    %v95 = vld [vmem:[%s1 + $0x38] sm:$0xff]
    %v96 = vld [vmem:[%s1 + $0x40] sm:$0xff]
    %v97 = vld [vmem:[%s1 + $0x48] sm:$0xff]
    %v98 = vld [vmem:[%s1 + $0x50] sm:$0xff]
    %v99 = vld [vmem:[%s1 + $0x58] sm:$0xff]
    %v100 = vld [vmem:[%s1 + $0x60] sm:$0xff]
    %v101 = vld [vmem:[%s1 + $0x68] sm:$0xff]
    %v102 = vld [vmem:[%s1 + $0x70] sm:$0xff]
    %v103 = vld [vmem:[%s1 + $0x78] sm:$0xff]
    %104 = vmatpush.msra.mxu0 %v103
    %105 = vmatpush.msra.mxu0 %v102
    %106 = vmatpush.msra.mxu0 %v101
    %107 = vmatpush.msra.mxu0 %v100
    %108 = vmatpush.msra.mxu0 %v99
    %109 = vmatpush.msra.mxu0 %v98
    %110 = vmatpush.msra.mxu0 %v97
    %111 = vmatpush.msra.mxu0 %v96
    %112 = vmatpush.msra.mxu0 %v95
    %113 = vmatpush.msra.mxu0 %v94
    %114 = vmatpush.msra.mxu0 %v93
    %115 = vmatpush.msra.mxu0 %v92
    %116 = vmatpush.msra.mxu0 %v91
    %117 = vmatpush.msra.mxu0 %v90
    %118 = vmatpush.msra.mxu0 %v89
    %119 = vmatpush.msra.mxu0 %v88
    %120 = vmatmul.f32.gmra.mxu0 %v24
    %v121 = vpop.f32.mrf.mxu0
    %v122 = vadd.f32 0.0, %v121
    %123 = vmatmul.f32.gmra.mxu0 %v25
    %v124 = vpop.f32.mrf.mxu0
    %v125 = vadd.f32 0.0, %v124
    %126 = vmatmul.f32.gmra.mxu0 %v26
    %v127 = vpop.f32.mrf.mxu0
    %v128 = vadd.f32 0.0, %v127
    %129 = vmatmul.f32.gmra.mxu0 %v27
    %v130 = vpop.f32.mrf.mxu0
    %v131 = vadd.f32 0.0, %v130
    %132 = vmatmul.f32.gmra.mxu0 %v28
    %v133 = vpop.f32.mrf.mxu0
    %v134 = vadd.f32 0.0, %v133
    %135 = vmatmul.f32.gmra.mxu0 %v29
    %v136 = vpop.f32.mrf.mxu0
    %v137 = vadd.f32 0.0, %v136
    %138 = vmatmul.f32.gmra.mxu0 %v30
    %v139 = vpop.f32.mrf.mxu0
    %v140 = vadd.f32 0.0, %v139
    %141 = vmatmul.f32.gmra.mxu0 %v31
    %v142 = vpop.f32.mrf.mxu0
    %v143 = vadd.f32 0.0, %v142
    %144 = vmatmul.f32.gmra.mxu0 %v32
    %v145 = vpop.f32.mrf.mxu0
    %v146 = vadd.f32 0.0, %v145
    %147 = vmatmul.f32.gmra.mxu0 %v33
    %v148 = vpop.f32.mrf.mxu0
    %v149 = vadd.f32 0.0, %v148
    %150 = vmatmul.f32.gmra.mxu0 %v34
    %v151 = vpop.f32.mrf.mxu0
    %v152 = vadd.f32 0.0, %v151
    %153 = vmatmul.f32.gmra.mxu0 %v35
    %v154 = vpop.f32.mrf.mxu0
    %v155 = vadd.f32 0.0, %v154
    %156 = vmatmul.f32.gmra.mxu0 %v36
    %v157 = vpop.f32.mrf.mxu0
    %v158 = vadd.f32 0.0, %v157
    %159 = vmatmul.f32.gmra.mxu0 %v37
    %v160 = vpop.f32.mrf.mxu0
    %v161 = vadd.f32 0.0, %v160
    %162 = vmatmul.f32.gmra.mxu0 %v38
    %v163 = vpop.f32.mrf.mxu0
    %v164 = vadd.f32 0.0, %v163
    %165 = vmatmul.f32.gmra.mxu0 %v39
    %v166 = vpop.f32.mrf.mxu0
    %v167 = vadd.f32 0.0, %v166
    %168 = vmatmul.f32.gmra.mxu0 %v40
    %v169 = vpop.f32.mrf.mxu0
    %v170 = vadd.f32 0.0, %v169
    %171 = vmatmul.f32.gmra.mxu0 %v41
    %v172 = vpop.f32.mrf.mxu0
    %v173 = vadd.f32 0.0, %v172
    %174 = vmatmul.f32.gmra.mxu0 %v42
    %v175 = vpop.f32.mrf.mxu0
    %v176 = vadd.f32 0.0, %v175
    %177 = vmatmul.f32.gmra.mxu0 %v43
    %v178 = vpop.f32.mrf.mxu0
    %v179 = vadd.f32 0.0, %v178
    %180 = vmatmul.f32.gmra.mxu0 %v44
    %v181 = vpop.f32.mrf.mxu0
    %v182 = vadd.f32 0.0, %v181
    %183 = vmatmul.f32.gmra.mxu0 %v45
    %v184 = vpop.f32.mrf.mxu0
    %v185 = vadd.f32 0.0, %v184
    %186 = vmatmul.f32.gmra.mxu0 %v46
    %v187 = vpop.f32.mrf.mxu0
    %v188 = vadd.f32 0.0, %v187
    %189 = vmatmul.f32.gmra.mxu0 %v47
    %v190 = vpop.f32.mrf.mxu0
    %v191 = vadd.f32 0.0, %v190
    %192 = vmatmul.f32.gmra.mxu0 %v48
    %v193 = vpop.f32.mrf.mxu0
    %v194 = vadd.f32 0.0, %v193
    %195 = vmatmul.f32.gmra.mxu0 %v49
    %v196 = vpop.f32.mrf.mxu0
    %v197 = vadd.f32 0.0, %v196
    %198 = vmatmul.f32.gmra.mxu0 %v50
    %v199 = vpop.f32.mrf.mxu0
    %v200 = vadd.f32 0.0, %v199
    %201 = vmatmul.f32.gmra.mxu0 %v51
    %v202 = vpop.f32.mrf.mxu0
    %v203 = vadd.f32 0.0, %v202
    %204 = vmatmul.f32.gmra.mxu0 %v52
    %v205 = vpop.f32.mrf.mxu0
    %v206 = vadd.f32 0.0, %v205
    %207 = vmatmul.f32.gmra.mxu0 %v53
    %v208 = vpop.f32.mrf.mxu0
    %v209 = vadd.f32 0.0, %v208
    %210 = vmatmul.f32.gmra.mxu0 %v54
    %v211 = vpop.f32.mrf.mxu0
    %v212 = vadd.f32 0.0, %v211
    %213 = vmatmul.f32.gmra.mxu0 %v55
    %v214 = vpop.f32.mrf.mxu0
    %v215 = vadd.f32 0.0, %v214
    %216 = vmatmul.f32.gmra.mxu0 %v56
    %v217 = vpop.f32.mrf.mxu0
    %v218 = vadd.f32 0.0, %v217
    %219 = vmatmul.f32.gmra.mxu0 %v57
    %v220 = vpop.f32.mrf.mxu0
    %v221 = vadd.f32 0.0, %v220
    %222 = vmatmul.f32.gmra.mxu0 %v58
    %v223 = vpop.f32.mrf.mxu0
    %v224 = vadd.f32 0.0, %v223
    %225 = vmatmul.f32.gmra.mxu0 %v59
    %v226 = vpop.f32.mrf.mxu0
    %v227 = vadd.f32 0.0, %v226
    %228 = vmatmul.f32.gmra.mxu0 %v60
    %v229 = vpop.f32.mrf.mxu0
    %v230 = vadd.f32 0.0, %v229
    %231 = vmatmul.f32.gmra.mxu0 %v61
    %v232 = vpop.f32.mrf.mxu0
    %v233 = vadd.f32 0.0, %v232
    %234 = vmatmul.f32.gmra.mxu0 %v62
    %v235 = vpop.f32.mrf.mxu0
    %v236 = vadd.f32 0.0, %v235
    %237 = vmatmul.f32.gmra.mxu0 %v63
    %v238 = vpop.f32.mrf.mxu0
    %v239 = vadd.f32 0.0, %v238
    %240 = vmatmul.f32.gmra.mxu0 %v64
    %v241 = vpop.f32.mrf.mxu0
    %v242 = vadd.f32 0.0, %v241
    %243 = vmatmul.f32.gmra.mxu0 %v65
    %v244 = vpop.f32.mrf.mxu0
    %v245 = vadd.f32 0.0, %v244
    %246 = vmatmul.f32.gmra.mxu0 %v66
    %v247 = vpop.f32.mrf.mxu0
    %v248 = vadd.f32 0.0, %v247
    %249 = vmatmul.f32.gmra.mxu0 %v67
    %v250 = vpop.f32.mrf.mxu0
    %v251 = vadd.f32 0.0, %v250
    %252 = vmatmul.f32.gmra.mxu0 %v68
    %v253 = vpop.f32.mrf.mxu0
    %v254 = vadd.f32 0.0, %v253
    %255 = vmatmul.f32.gmra.mxu0 %v69
    %v256 = vpop.f32.mrf.mxu0
    %v257 = vadd.f32 0.0, %v256
    %258 = vmatmul.f32.gmra.mxu0 %v70
    %v259 = vpop.f32.mrf.mxu0
    %v260 = vadd.f32 0.0, %v259
    %261 = vmatmul.f32.gmra.mxu0 %v71
    %v262 = vpop.f32.mrf.mxu0
    %v263 = vadd.f32 0.0, %v262
    %264 = vmatmul.f32.gmra.mxu0 %v72
    %v265 = vpop.f32.mrf.mxu0
    %v266 = vadd.f32 0.0, %v265
    %267 = vmatmul.f32.gmra.mxu0 %v73
    %v268 = vpop.f32.mrf.mxu0
    %v269 = vadd.f32 0.0, %v268
    %270 = vmatmul.f32.gmra.mxu0 %v74
    %v271 = vpop.f32.mrf.mxu0
    %v272 = vadd.f32 0.0, %v271
    %273 = vmatmul.f32.gmra.mxu0 %v75
    %v274 = vpop.f32.mrf.mxu0
    %v275 = vadd.f32 0.0, %v274
    %276 = vmatmul.f32.gmra.mxu0 %v76
    %v277 = vpop.f32.mrf.mxu0
    %v278 = vadd.f32 0.0, %v277
    %279 = vmatmul.f32.gmra.mxu0 %v77
    %v280 = vpop.f32.mrf.mxu0
    %v281 = vadd.f32 0.0, %v280
    %282 = vmatmul.f32.gmra.mxu0 %v78
    %v283 = vpop.f32.mrf.mxu0
    %v284 = vadd.f32 0.0, %v283
    %285 = vmatmul.f32.gmra.mxu0 %v79
    %v286 = vpop.f32.mrf.mxu0
    %v287 = vadd.f32 0.0, %v286
    %288 = vmatmul.f32.gmra.mxu0 %v80
    %v289 = vpop.f32.mrf.mxu0
    %v290 = vadd.f32 0.0, %v289
    %291 = vmatmul.f32.gmra.mxu0 %v81
    %v292 = vpop.f32.mrf.mxu0
    %v293 = vadd.f32 0.0, %v292
    %294 = vmatmul.f32.gmra.mxu0 %v82
    %v295 = vpop.f32.mrf.mxu0
    %v296 = vadd.f32 0.0, %v295
    %297 = vmatmul.f32.gmra.mxu0 %v83
    %v298 = vpop.f32.mrf.mxu0
    %v299 = vadd.f32 0.0, %v298
    %300 = vmatmul.f32.gmra.mxu0 %v84
    %v301 = vpop.f32.mrf.mxu0
    %v302 = vadd.f32 0.0, %v301
    %303 = vmatmul.f32.gmra.mxu0 %v85
    %v304 = vpop.f32.mrf.mxu0
    %v305 = vadd.f32 0.0, %v304
    %306 = vmatmul.f32.gmra.mxu0 %v86
    %v307 = vpop.f32.mrf.mxu0
    %v308 = vadd.f32 0.0, %v307
    %309 = vmatmul.f32.gmra.mxu0 %v87
    %v310 = vpop.f32.mrf.mxu0
    %v311 = vadd.f32 0.0, %v310
    %312 = vdwg.mxu0
    %v313 = vld [vmem:[%s2] sm:$0x3]
    %v314 = vperm.slane %v313, 0
    %v315 = vmul.f32 %v122, %v314
    %v316 = vmul.f32 %v125, %v314
    %v317 = vmul.f32 %v128, %v314
    %v318 = vmul.f32 %v131, %v314
    %v319 = vmul.f32 %v134, %v314
    %v320 = vmul.f32 %v137, %v314
    %v321 = vmul.f32 %v140, %v314
    %v322 = vmul.f32 %v143, %v314
    %v323 = vmul.f32 %v146, %v314
    %v324 = vmul.f32 %v149, %v314
    %v325 = vmul.f32 %v152, %v314
    %v326 = vmul.f32 %v155, %v314
    %v327 = vmul.f32 %v158, %v314
    %v328 = vmul.f32 %v161, %v314
    %v329 = vmul.f32 %v164, %v314
    %v330 = vmul.f32 %v167, %v314
    %v331 = vmul.f32 %v170, %v314
    %v332 = vmul.f32 %v173, %v314
    %v333 = vmul.f32 %v176, %v314
    %v334 = vmul.f32 %v179, %v314
    %v335 = vmul.f32 %v182, %v314
    %v336 = vmul.f32 %v185, %v314
    %v337 = vmul.f32 %v188, %v314
    %v338 = vmul.f32 %v191, %v314
    %v339 = vmul.f32 %v194, %v314
    %v340 = vmul.f32 %v197, %v314
    %v341 = vmul.f32 %v200, %v314
    %v342 = vmul.f32 %v203, %v314
    %v343 = vmul.f32 %v206, %v314
    %v344 = vmul.f32 %v209, %v314
    %v345 = vmul.f32 %v212, %v314
    %v346 = vmul.f32 %v215, %v314
    %v347 = vmul.f32 %v218, %v314
    %v348 = vmul.f32 %v221, %v314
    %v349 = vmul.f32 %v224, %v314
    %v350 = vmul.f32 %v227, %v314
    %v351 = vmul.f32 %v230, %v314
    %v352 = vmul.f32 %v233, %v314
    %v353 = vmul.f32 %v236, %v314
    %v354 = vmul.f32 %v239, %v314
    %v355 = vmul.f32 %v242, %v314
    %v356 = vmul.f32 %v245, %v314
    %v357 = vmul.f32 %v248, %v314
    %v358 = vmul.f32 %v251, %v314
    %v359 = vmul.f32 %v254, %v314
    %v360 = vmul.f32 %v257, %v314
    %v361 = vmul.f32 %v260, %v314
    %v362 = vmul.f32 %v263, %v314
    %v363 = vmul.f32 %v266, %v314
    %v364 = vmul.f32 %v269, %v314
    %v365 = vmul.f32 %v272, %v314
    %v366 = vmul.f32 %v275, %v314
    %v367 = vmul.f32 %v278, %v314
    %v368 = vmul.f32 %v281, %v314
    %v369 = vmul.f32 %v284, %v314
    %v370 = vmul.f32 %v287, %v314
    %v371 = vmul.f32 %v290, %v314
    %v372 = vmul.f32 %v293, %v314
    %v373 = vmul.f32 %v296, %v314
    %v374 = vmul.f32 %v299, %v314
    %v375 = vmul.f32 %v302, %v314
    %v376 = vmul.f32 %v305, %v314
    %v377 = vmul.f32 %v308, %v314
    %v378 = vmul.f32 %v311, %v314
    %v379 = vperm.slane %v313, 1
    %v380 = vadd.f32 %v315, %v379
    %v381 = vadd.f32 %v316, %v379
    %v382 = vadd.f32 %v317, %v379
    %v383 = vadd.f32 %v318, %v379
    %v384 = vadd.f32 %v319, %v379
    %v385 = vadd.f32 %v320, %v379
    %v386 = vadd.f32 %v321, %v379
    %v387 = vadd.f32 %v322, %v379
    %v388 = vadd.f32 %v323, %v379
    %v389 = vadd.f32 %v324, %v379
    %v390 = vadd.f32 %v325, %v379
    %v391 = vadd.f32 %v326, %v379
    %v392 = vadd.f32 %v327, %v379
    %v393 = vadd.f32 %v328, %v379
    %v394 = vadd.f32 %v329, %v379
    %v395 = vadd.f32 %v330, %v379
    %v396 = vadd.f32 %v331, %v379
    %v397 = vadd.f32 %v332, %v379
    %v398 = vadd.f32 %v333, %v379
    %v399 = vadd.f32 %v334, %v379
    %v400 = vadd.f32 %v335, %v379
    %v401 = vadd.f32 %v336, %v379
    %v402 = vadd.f32 %v337, %v379
    %v403 = vadd.f32 %v338, %v379
    %v404 = vadd.f32 %v339, %v379
    %v405 = vadd.f32 %v340, %v379
    %v406 = vadd.f32 %v341, %v379
    %v407 = vadd.f32 %v342, %v379
    %v408 = vadd.f32 %v343, %v379
    %v409 = vadd.f32 %v344, %v379
    %v410 = vadd.f32 %v345, %v379
    %v411 = vadd.f32 %v346, %v379
    %v412 = vadd.f32 %v347, %v379
    %v413 = vadd.f32 %v348, %v379
    %v414 = vadd.f32 %v349, %v379
    %v415 = vadd.f32 %v350, %v379
    %v416 = vadd.f32 %v351, %v379
    %v417 = vadd.f32 %v352, %v379
    %v418 = vadd.f32 %v353, %v379
    %v419 = vadd.f32 %v354, %v379
    %v420 = vadd.f32 %v355, %v379
    %v421 = vadd.f32 %v356, %v379
    %v422 = vadd.f32 %v357, %v379
    %v423 = vadd.f32 %v358, %v379
    %v424 = vadd.f32 %v359, %v379
    %v425 = vadd.f32 %v360, %v379
    %v426 = vadd.f32 %v361, %v379
    %v427 = vadd.f32 %v362, %v379
    %v428 = vadd.f32 %v363, %v379
    %v429 = vadd.f32 %v364, %v379
    %v430 = vadd.f32 %v365, %v379
    %v431 = vadd.f32 %v366, %v379
    %v432 = vadd.f32 %v367, %v379
    %v433 = vadd.f32 %v368, %v379
    %v434 = vadd.f32 %v369, %v379
    %v435 = vadd.f32 %v370, %v379
    %v436 = vadd.f32 %v371, %v379
    %v437 = vadd.f32 %v372, %v379
    %v438 = vadd.f32 %v373, %v379
    %v439 = vadd.f32 %v374, %v379
    %v440 = vadd.f32 %v375, %v379
    %v441 = vadd.f32 %v376, %v379
    %v442 = vadd.f32 %v377, %v379
    %v443 = vadd.f32 %v378, %v379
    %v444 = vld [vmem:[%s3] sm:$0xff]
    %v445 = vld [vmem:[%s3 + $0x8] sm:$0xff]
    %v446 = vld [vmem:[%s3 + $0x10] sm:$0xff]
    %v447 = vld [vmem:[%s3 + $0x18] sm:$0xff]
    %v448 = vld [vmem:[%s3 + $0x20] sm:$0xff]
    %v449 = vld [vmem:[%s3 + $0x28] sm:$0xff]
    %v450 = vld [vmem:[%s3 + $0x30] sm:$0xff]
    %v451 = vld [vmem:[%s3 + $0x38] sm:$0xff]
    %v452 = vld [vmem:[%s3 + $0x40] sm:$0xff]
    %v453 = vld [vmem:[%s3 + $0x48] sm:$0xff]
    %v454 = vld [vmem:[%s3 + $0x50] sm:$0xff]
    %v455 = vld [vmem:[%s3 + $0x58] sm:$0xff]
    %v456 = vld [vmem:[%s3 + $0x60] sm:$0xff]
    %v457 = vld [vmem:[%s3 + $0x68] sm:$0xff]
    %v458 = vld [vmem:[%s3 + $0x70] sm:$0xff]
    %v459 = vld [vmem:[%s3 + $0x78] sm:$0xff]
    %v460 = vld [vmem:[%s3 + $0x80] sm:$0xff]
    %v461 = vld [vmem:[%s3 + $0x88] sm:$0xff]
    %v462 = vld [vmem:[%s3 + $0x90] sm:$0xff]
    %v463 = vld [vmem:[%s3 + $0x98] sm:$0xff]
    %v464 = vld [vmem:[%s3 + $0xa0] sm:$0xff]
    %v465 = vld [vmem:[%s3 + $0xa8] sm:$0xff]
    %v466 = vld [vmem:[%s3 + $0xb0] sm:$0xff]
    %v467 = vld [vmem:[%s3 + $0xb8] sm:$0xff]
    %v468 = vld [vmem:[%s3 + $0xc0] sm:$0xff]
    %v469 = vld [vmem:[%s3 + $0xc8] sm:$0xff]
    %v470 = vld [vmem:[%s3 + $0xd0] sm:$0xff]
    %v471 = vld [vmem:[%s3 + $0xd8] sm:$0xff]
    %v472 = vld [vmem:[%s3 + $0xe0] sm:$0xff]
    %v473 = vld [vmem:[%s3 + $0xe8] sm:$0xff]
    %v474 = vld [vmem:[%s3 + $0xf0] sm:$0xff]
    %v475 = vld [vmem:[%s3 + $0xf8] sm:$0xff]
    %v476 = vld [vmem:[%s3 + $0x100] sm:$0xff]
    %v477 = vld [vmem:[%s3 + $0x108] sm:$0xff]
    %v478 = vld [vmem:[%s3 + $0x110] sm:$0xff]
    %v479 = vld [vmem:[%s3 + $0x118] sm:$0xff]
    %v480 = vld [vmem:[%s3 + $0x120] sm:$0xff]
    %v481 = vld [vmem:[%s3 + $0x128] sm:$0xff]
    %v482 = vld [vmem:[%s3 + $0x130] sm:$0xff]
    %v483 = vld [vmem:[%s3 + $0x138] sm:$0xff]
    %v484 = vld [vmem:[%s3 + $0x140] sm:$0xff]
    %v485 = vld [vmem:[%s3 + $0x148] sm:$0xff]
    %v486 = vld [vmem:[%s3 + $0x150] sm:$0xff]
    %v487 = vld [vmem:[%s3 + $0x158] sm:$0xff]
    %v488 = vld [vmem:[%s3 + $0x160] sm:$0xff]
    %v489 = vld [vmem:[%s3 + $0x168] sm:$0xff]
    %v490 = vld [vmem:[%s3 + $0x170] sm:$0xff]
    %v491 = vld [vmem:[%s3 + $0x178] sm:$0xff]
    %v492 = vld [vmem:[%s3 + $0x180] sm:$0xff]
    %v493 = vld [vmem:[%s3 + $0x188] sm:$0xff]
    %v494 = vld [vmem:[%s3 + $0x190] sm:$0xff]
    %v495 = vld [vmem:[%s3 + $0x198] sm:$0xff]
    %v496 = vld [vmem:[%s3 + $0x1a0] sm:$0xff]
    %v497 = vld [vmem:[%s3 + $0x1a8] sm:$0xff]
    %v498 = vld [vmem:[%s3 + $0x1b0] sm:$0xff]
    %v499 = vld [vmem:[%s3 + $0x1b8] sm:$0xff]
    %v500 = vld [vmem:[%s3 + $0x1c0] sm:$0xff]
    %v501 = vld [vmem:[%s3 + $0x1c8] sm:$0xff]
    %v502 = vld [vmem:[%s3 + $0x1d0] sm:$0xff]
    %v503 = vld [vmem:[%s3 + $0x1d8] sm:$0xff]
    %v504 = vld [vmem:[%s3 + $0x1e0] sm:$0xff]
    %v505 = vld [vmem:[%s3 + $0x1e8] sm:$0xff]
    %v506 = vld [vmem:[%s3 + $0x1f0] sm:$0xff]
    %v507 = vld [vmem:[%s3 + $0x1f8] sm:$0xff]
    %v508 = vld [vmem:[%s4] sm:$0xff]
    %v509 = vld [vmem:[%s4 + $0x8] sm:$0xff]
    %v510 = vld [vmem:[%s4 + $0x10] sm:$0xff]
    %v511 = vld [vmem:[%s4 + $0x18] sm:$0xff]
    %v512 = vld [vmem:[%s4 + $0x20] sm:$0xff]
    %v513 = vld [vmem:[%s4 + $0x28] sm:$0xff]
    %v514 = vld [vmem:[%s4 + $0x30] sm:$0xff]
    %v515 = vld [vmem:[%s4 + $0x38] sm:$0xff]
    %v516 = vld [vmem:[%s4 + $0x40] sm:$0xff]
    %v517 = vld [vmem:[%s4 + $0x48] sm:$0xff]
    %v518 = vld [vmem:[%s4 + $0x50] sm:$0xff]
    %v519 = vld [vmem:[%s4 + $0x58] sm:$0xff]
    %v520 = vld [vmem:[%s4 + $0x60] sm:$0xff]
    %v521 = vld [vmem:[%s4 + $0x68] sm:$0xff]
    %v522 = vld [vmem:[%s4 + $0x70] sm:$0xff]
    %v523 = vld [vmem:[%s4 + $0x78] sm:$0xff]
    %524 = vmatpush.msra.mxu0 %v523
    %525 = vmatpush.msra.mxu0 %v522
    %526 = vmatpush.msra.mxu0 %v521
    %527 = vmatpush.msra.mxu0 %v520
    %528 = vmatpush.msra.mxu0 %v519
    %529 = vmatpush.msra.mxu0 %v518
    %530 = vmatpush.msra.mxu0 %v517
    %531 = vmatpush.msra.mxu0 %v516
    %532 = vmatpush.msra.mxu0 %v515
    %533 = vmatpush.msra.mxu0 %v514
    %534 = vmatpush.msra.mxu0 %v513
    %535 = vmatpush.msra.mxu0 %v512
    %536 = vmatpush.msra.mxu0 %v511
    %537 = vmatpush.msra.mxu0 %v510
    %538 = vmatpush.msra.mxu0 %v509
    %539 = vmatpush.msra.mxu0 %v508
    %540 = vmatmul.f32.gmra.mxu0 %v444
    %v541 = vpop.f32.mrf.mxu0
    %v542 = vadd.f32 0.0, %v541
    %543 = vmatmul.f32.gmra.mxu0 %v445
    %v544 = vpop.f32.mrf.mxu0
    %v545 = vadd.f32 0.0, %v544
    %546 = vmatmul.f32.gmra.mxu0 %v446
    %v547 = vpop.f32.mrf.mxu0
    %v548 = vadd.f32 0.0, %v547
    %549 = vmatmul.f32.gmra.mxu0 %v447
    %v550 = vpop.f32.mrf.mxu0
    %v551 = vadd.f32 0.0, %v550
    %552 = vmatmul.f32.gmra.mxu0 %v448
    %v553 = vpop.f32.mrf.mxu0
    %v554 = vadd.f32 0.0, %v553
    %555 = vmatmul.f32.gmra.mxu0 %v449
    %v556 = vpop.f32.mrf.mxu0
    %v557 = vadd.f32 0.0, %v556
    %558 = vmatmul.f32.gmra.mxu0 %v450
    %v559 = vpop.f32.mrf.mxu0
    %v560 = vadd.f32 0.0, %v559
    %561 = vmatmul.f32.gmra.mxu0 %v451
    %v562 = vpop.f32.mrf.mxu0
    %v563 = vadd.f32 0.0, %v562
    %564 = vmatmul.f32.gmra.mxu0 %v452
    %v565 = vpop.f32.mrf.mxu0
    %v566 = vadd.f32 0.0, %v565
    %567 = vmatmul.f32.gmra.mxu0 %v453
    %v568 = vpop.f32.mrf.mxu0
    %v569 = vadd.f32 0.0, %v568
    %570 = vmatmul.f32.gmra.mxu0 %v454
    %v571 = vpop.f32.mrf.mxu0
    %v572 = vadd.f32 0.0, %v571
    %573 = vmatmul.f32.gmra.mxu0 %v455
    %v574 = vpop.f32.mrf.mxu0
    %v575 = vadd.f32 0.0, %v574
    %576 = vmatmul.f32.gmra.mxu0 %v456
    %v577 = vpop.f32.mrf.mxu0
    %v578 = vadd.f32 0.0, %v577
    %579 = vmatmul.f32.gmra.mxu0 %v457
    %v580 = vpop.f32.mrf.mxu0
    %v581 = vadd.f32 0.0, %v580
    %582 = vmatmul.f32.gmra.mxu0 %v458
    %v583 = vpop.f32.mrf.mxu0
    %v584 = vadd.f32 0.0, %v583
    %585 = vmatmul.f32.gmra.mxu0 %v459
    %v586 = vpop.f32.mrf.mxu0
    %v587 = vadd.f32 0.0, %v586
    %588 = vmatmul.f32.gmra.mxu0 %v460
    %v589 = vpop.f32.mrf.mxu0
    %v590 = vadd.f32 0.0, %v589
    %591 = vmatmul.f32.gmra.mxu0 %v461
    %v592 = vpop.f32.mrf.mxu0
    %v593 = vadd.f32 0.0, %v592
    %594 = vmatmul.f32.gmra.mxu0 %v462
    %v595 = vpop.f32.mrf.mxu0
    %v596 = vadd.f32 0.0, %v595
    %597 = vmatmul.f32.gmra.mxu0 %v463
    %v598 = vpop.f32.mrf.mxu0
    %v599 = vadd.f32 0.0, %v598
    %600 = vmatmul.f32.gmra.mxu0 %v464
    %v601 = vpop.f32.mrf.mxu0
    %v602 = vadd.f32 0.0, %v601
    %603 = vmatmul.f32.gmra.mxu0 %v465
    %v604 = vpop.f32.mrf.mxu0
    %v605 = vadd.f32 0.0, %v604
    %606 = vmatmul.f32.gmra.mxu0 %v466
    %v607 = vpop.f32.mrf.mxu0
    %v608 = vadd.f32 0.0, %v607
    %609 = vmatmul.f32.gmra.mxu0 %v467
    %v610 = vpop.f32.mrf.mxu0
    %v611 = vadd.f32 0.0, %v610
    %612 = vmatmul.f32.gmra.mxu0 %v468
    %v613 = vpop.f32.mrf.mxu0
    %v614 = vadd.f32 0.0, %v613
    %615 = vmatmul.f32.gmra.mxu0 %v469
    %v616 = vpop.f32.mrf.mxu0
    %v617 = vadd.f32 0.0, %v616
    %618 = vmatmul.f32.gmra.mxu0 %v470
    %v619 = vpop.f32.mrf.mxu0
    %v620 = vadd.f32 0.0, %v619
    %621 = vmatmul.f32.gmra.mxu0 %v471
    %v622 = vpop.f32.mrf.mxu0
    %v623 = vadd.f32 0.0, %v622
    %624 = vmatmul.f32.gmra.mxu0 %v472
    %v625 = vpop.f32.mrf.mxu0
    %v626 = vadd.f32 0.0, %v625
    %627 = vmatmul.f32.gmra.mxu0 %v473
    %v628 = vpop.f32.mrf.mxu0
    %v629 = vadd.f32 0.0, %v628
    %630 = vmatmul.f32.gmra.mxu0 %v474
    %v631 = vpop.f32.mrf.mxu0
    %v632 = vadd.f32 0.0, %v631
    %633 = vmatmul.f32.gmra.mxu0 %v475
    %v634 = vpop.f32.mrf.mxu0
    %v635 = vadd.f32 0.0, %v634
    %636 = vmatmul.f32.gmra.mxu0 %v476
    %v637 = vpop.f32.mrf.mxu0
    %v638 = vadd.f32 0.0, %v637
    %639 = vmatmul.f32.gmra.mxu0 %v477
    %v640 = vpop.f32.mrf.mxu0
    %v641 = vadd.f32 0.0, %v640
    %642 = vmatmul.f32.gmra.mxu0 %v478
    %v643 = vpop.f32.mrf.mxu0
    %v644 = vadd.f32 0.0, %v643
    %645 = vmatmul.f32.gmra.mxu0 %v479
    %v646 = vpop.f32.mrf.mxu0
    %v647 = vadd.f32 0.0, %v646
    %648 = vmatmul.f32.gmra.mxu0 %v480
    %v649 = vpop.f32.mrf.mxu0
    %v650 = vadd.f32 0.0, %v649
    %651 = vmatmul.f32.gmra.mxu0 %v481
    %v652 = vpop.f32.mrf.mxu0
    %v653 = vadd.f32 0.0, %v652
    %654 = vmatmul.f32.gmra.mxu0 %v482
    %v655 = vpop.f32.mrf.mxu0
    %v656 = vadd.f32 0.0, %v655
    %657 = vmatmul.f32.gmra.mxu0 %v483
    %v658 = vpop.f32.mrf.mxu0
    %v659 = vadd.f32 0.0, %v658
    %660 = vmatmul.f32.gmra.mxu0 %v484
    %v661 = vpop.f32.mrf.mxu0
    %v662 = vadd.f32 0.0, %v661
    %663 = vmatmul.f32.gmra.mxu0 %v485
    %v664 = vpop.f32.mrf.mxu0
    %v665 = vadd.f32 0.0, %v664
    %666 = vmatmul.f32.gmra.mxu0 %v486
    %v667 = vpop.f32.mrf.mxu0
    %v668 = vadd.f32 0.0, %v667
    %669 = vmatmul.f32.gmra.mxu0 %v487
    %v670 = vpop.f32.mrf.mxu0
    %v671 = vadd.f32 0.0, %v670
    %672 = vmatmul.f32.gmra.mxu0 %v488
    %v673 = vpop.f32.mrf.mxu0
    %v674 = vadd.f32 0.0, %v673
    %675 = vmatmul.f32.gmra.mxu0 %v489
    %v676 = vpop.f32.mrf.mxu0
    %v677 = vadd.f32 0.0, %v676
    %678 = vmatmul.f32.gmra.mxu0 %v490
    %v679 = vpop.f32.mrf.mxu0
    %v680 = vadd.f32 0.0, %v679
    %681 = vmatmul.f32.gmra.mxu0 %v491
    %v682 = vpop.f32.mrf.mxu0
    %v683 = vadd.f32 0.0, %v682
    %684 = vmatmul.f32.gmra.mxu0 %v492
    %v685 = vpop.f32.mrf.mxu0
    %v686 = vadd.f32 0.0, %v685
    %687 = vmatmul.f32.gmra.mxu0 %v493
    %v688 = vpop.f32.mrf.mxu0
    %v689 = vadd.f32 0.0, %v688
    %690 = vmatmul.f32.gmra.mxu0 %v494
    %v691 = vpop.f32.mrf.mxu0
    %v692 = vadd.f32 0.0, %v691
    %693 = vmatmul.f32.gmra.mxu0 %v495
    %v694 = vpop.f32.mrf.mxu0
    %v695 = vadd.f32 0.0, %v694
    %696 = vmatmul.f32.gmra.mxu0 %v496
    %v697 = vpop.f32.mrf.mxu0
    %v698 = vadd.f32 0.0, %v697
    %699 = vmatmul.f32.gmra.mxu0 %v497
    %v700 = vpop.f32.mrf.mxu0
    %v701 = vadd.f32 0.0, %v700
    %702 = vmatmul.f32.gmra.mxu0 %v498
    %v703 = vpop.f32.mrf.mxu0
    %v704 = vadd.f32 0.0, %v703
    %705 = vmatmul.f32.gmra.mxu0 %v499
    %v706 = vpop.f32.mrf.mxu0
    %v707 = vadd.f32 0.0, %v706
    %708 = vmatmul.f32.gmra.mxu0 %v500
    %v709 = vpop.f32.mrf.mxu0
    %v710 = vadd.f32 0.0, %v709
    %711 = vmatmul.f32.gmra.mxu0 %v501
    %v712 = vpop.f32.mrf.mxu0
    %v713 = vadd.f32 0.0, %v712
    %714 = vmatmul.f32.gmra.mxu0 %v502
    %v715 = vpop.f32.mrf.mxu0
    %v716 = vadd.f32 0.0, %v715
    %717 = vmatmul.f32.gmra.mxu0 %v503
    %v718 = vpop.f32.mrf.mxu0
    %v719 = vadd.f32 0.0, %v718
    %720 = vmatmul.f32.gmra.mxu0 %v504
    %v721 = vpop.f32.mrf.mxu0
    %v722 = vadd.f32 0.0, %v721
    %723 = vmatmul.f32.gmra.mxu0 %v505
    %v724 = vpop.f32.mrf.mxu0
    %v725 = vadd.f32 0.0, %v724
    %726 = vmatmul.f32.gmra.mxu0 %v506
    %v727 = vpop.f32.mrf.mxu0
    %v728 = vadd.f32 0.0, %v727
    %729 = vmatmul.f32.gmra.mxu0 %v507
    %v730 = vpop.f32.mrf.mxu0
    %v731 = vadd.f32 0.0, %v730
    %732 = vdwg.mxu0
    %v733 = vld [vmem:[%s5] sm:$0x3]
    %v734 = vperm.slane %v733, 0
    %v735 = vmul.f32 %v542, %v734
    %v736 = vmul.f32 %v545, %v734
    %v737 = vmul.f32 %v548, %v734
    %v738 = vmul.f32 %v551, %v734
    %v739 = vmul.f32 %v554, %v734
    %v740 = vmul.f32 %v557, %v734
    %v741 = vmul.f32 %v560, %v734
    %v742 = vmul.f32 %v563, %v734
    %v743 = vmul.f32 %v566, %v734
    %v744 = vmul.f32 %v569, %v734
    %v745 = vmul.f32 %v572, %v734
    %v746 = vmul.f32 %v575, %v734
    %v747 = vmul.f32 %v578, %v734
    %v748 = vmul.f32 %v581, %v734
    %v749 = vmul.f32 %v584, %v734
    %v750 = vmul.f32 %v587, %v734
    %v751 = vmul.f32 %v590, %v734
    %v752 = vmul.f32 %v593, %v734
    %v753 = vmul.f32 %v596, %v734
    %v754 = vmul.f32 %v599, %v734
    %v755 = vmul.f32 %v602, %v734
    %v756 = vmul.f32 %v605, %v734
    %v757 = vmul.f32 %v608, %v734
    %v758 = vmul.f32 %v611, %v734
    %v759 = vmul.f32 %v614, %v734
    %v760 = vmul.f32 %v617, %v734
    %v761 = vmul.f32 %v620, %v734
    %v762 = vmul.f32 %v623, %v734
    %v763 = vmul.f32 %v626, %v734
    %v764 = vmul.f32 %v629, %v734
    %v765 = vmul.f32 %v632, %v734
    %v766 = vmul.f32 %v635, %v734
    %v767 = vmul.f32 %v638, %v734
    %v768 = vmul.f32 %v641, %v734
    %v769 = vmul.f32 %v644, %v734
    %v770 = vmul.f32 %v647, %v734
    %v771 = vmul.f32 %v650, %v734
    %v772 = vmul.f32 %v653, %v734
    %v773 = vmul.f32 %v656, %v734
    %v774 = vmul.f32 %v659, %v734
    %v775 = vmul.f32 %v662, %v734
    %v776 = vmul.f32 %v665, %v734
    %v777 = vmul.f32 %v668, %v734
    %v778 = vmul.f32 %v671, %v734
    %v779 = vmul.f32 %v674, %v734
    %v780 = vmul.f32 %v677, %v734
    %v781 = vmul.f32 %v680, %v734
    %v782 = vmul.f32 %v683, %v734
    %v783 = vmul.f32 %v686, %v734
    %v784 = vmul.f32 %v689, %v734
    %v785 = vmul.f32 %v692, %v734
    %v786 = vmul.f32 %v695, %v734
    %v787 = vmul.f32 %v698, %v734
    %v788 = vmul.f32 %v701, %v734
    %v789 = vmul.f32 %v704, %v734
    %v790 = vmul.f32 %v707, %v734
    %v791 = vmul.f32 %v710, %v734
    %v792 = vmul.f32 %v713, %v734
    %v793 = vmul.f32 %v716, %v734
    %v794 = vmul.f32 %v719, %v734
    %v795 = vmul.f32 %v722, %v734
    %v796 = vmul.f32 %v725, %v734
    %v797 = vmul.f32 %v728, %v734
    %v798 = vmul.f32 %v731, %v734
    %v799 = vadd.f32 %v380, %v735
    %v800 = vadd.f32 %v381, %v736
    %v801 = vadd.f32 %v382, %v737
    %v802 = vadd.f32 %v383, %v738
    %v803 = vadd.f32 %v384, %v739
    %v804 = vadd.f32 %v385, %v740
    %v805 = vadd.f32 %v386, %v741
    %v806 = vadd.f32 %v387, %v742
    %v807 = vadd.f32 %v388, %v743
    %v808 = vadd.f32 %v389, %v744
    %v809 = vadd.f32 %v390, %v745
    %v810 = vadd.f32 %v391, %v746
    %v811 = vadd.f32 %v392, %v747
    %v812 = vadd.f32 %v393, %v748
    %v813 = vadd.f32 %v394, %v749
    %v814 = vadd.f32 %v395, %v750
    %v815 = vadd.f32 %v396, %v751
    %v816 = vadd.f32 %v397, %v752
    %v817 = vadd.f32 %v398, %v753
    %v818 = vadd.f32 %v399, %v754
    %v819 = vadd.f32 %v400, %v755
    %v820 = vadd.f32 %v401, %v756
    %v821 = vadd.f32 %v402, %v757
    %v822 = vadd.f32 %v403, %v758
    %v823 = vadd.f32 %v404, %v759
    %v824 = vadd.f32 %v405, %v760
    %v825 = vadd.f32 %v406, %v761
    %v826 = vadd.f32 %v407, %v762
    %v827 = vadd.f32 %v408, %v763
    %v828 = vadd.f32 %v409, %v764
    %v829 = vadd.f32 %v410, %v765
    %v830 = vadd.f32 %v411, %v766
    %v831 = vadd.f32 %v412, %v767
    %v832 = vadd.f32 %v413, %v768
    %v833 = vadd.f32 %v414, %v769
    %v834 = vadd.f32 %v415, %v770
    %v835 = vadd.f32 %v416, %v771
    %v836 = vadd.f32 %v417, %v772
    %v837 = vadd.f32 %v418, %v773
    %v838 = vadd.f32 %v419, %v774
    %v839 = vadd.f32 %v420, %v775
    %v840 = vadd.f32 %v421, %v776
    %v841 = vadd.f32 %v422, %v777
    %v842 = vadd.f32 %v423, %v778
    %v843 = vadd.f32 %v424, %v779
    %v844 = vadd.f32 %v425, %v780
    %v845 = vadd.f32 %v426, %v781
    %v846 = vadd.f32 %v427, %v782
    %v847 = vadd.f32 %v428, %v783
    %v848 = vadd.f32 %v429, %v784
    %v849 = vadd.f32 %v430, %v785
    %v850 = vadd.f32 %v431, %v786
    %v851 = vadd.f32 %v432, %v787
    %v852 = vadd.f32 %v433, %v788
    %v853 = vadd.f32 %v434, %v789
    %v854 = vadd.f32 %v435, %v790
    %v855 = vadd.f32 %v436, %v791
    %v856 = vadd.f32 %v437, %v792
    %v857 = vadd.f32 %v438, %v793
    %v858 = vadd.f32 %v439, %v794
    %v859 = vadd.f32 %v440, %v795
    %v860 = vadd.f32 %v441, %v796
    %v861 = vadd.f32 %v442, %v797
    %v862 = vadd.f32 %v443, %v798
    %v863 = vperm.slane %v733, 1
    %v864 = vadd.f32 %v799, %v863
    %v865 = vadd.f32 %v800, %v863
    %v866 = vadd.f32 %v801, %v863
    %v867 = vadd.f32 %v802, %v863
    %v868 = vadd.f32 %v803, %v863
    %v869 = vadd.f32 %v804, %v863
    %v870 = vadd.f32 %v805, %v863
    %v871 = vadd.f32 %v806, %v863
    %v872 = vadd.f32 %v807, %v863
    %v873 = vadd.f32 %v808, %v863
    %v874 = vadd.f32 %v809, %v863
    %v875 = vadd.f32 %v810, %v863
    %v876 = vadd.f32 %v811, %v863
    %v877 = vadd.f32 %v812, %v863
    %v878 = vadd.f32 %v813, %v863
    %v879 = vadd.f32 %v814, %v863
    %v880 = vadd.f32 %v815, %v863
    %v881 = vadd.f32 %v816, %v863
    %v882 = vadd.f32 %v817, %v863
    %v883 = vadd.f32 %v818, %v863
    %v884 = vadd.f32 %v819, %v863
    %v885 = vadd.f32 %v820, %v863
    %v886 = vadd.f32 %v821, %v863
    %v887 = vadd.f32 %v822, %v863
    %v888 = vadd.f32 %v823, %v863
    %v889 = vadd.f32 %v824, %v863
    %v890 = vadd.f32 %v825, %v863
    %v891 = vadd.f32 %v826, %v863
    %v892 = vadd.f32 %v827, %v863
    %v893 = vadd.f32 %v828, %v863
    %v894 = vadd.f32 %v829, %v863
    %v895 = vadd.f32 %v830, %v863
    %v896 = vadd.f32 %v831, %v863
    %v897 = vadd.f32 %v832, %v863
    %v898 = vadd.f32 %v833, %v863
    %v899 = vadd.f32 %v834, %v863
    %v900 = vadd.f32 %v835, %v863
    %v901 = vadd.f32 %v836, %v863
    %v902 = vadd.f32 %v837, %v863
    %v903 = vadd.f32 %v838, %v863
    %v904 = vadd.f32 %v839, %v863
    %v905 = vadd.f32 %v840, %v863
    %v906 = vadd.f32 %v841, %v863
    %v907 = vadd.f32 %v842, %v863
    %v908 = vadd.f32 %v843, %v863
    %v909 = vadd.f32 %v844, %v863
    %v910 = vadd.f32 %v845, %v863
    %v911 = vadd.f32 %v846, %v863
    %v912 = vadd.f32 %v847, %v863
    %v913 = vadd.f32 %v848, %v863
    %v914 = vadd.f32 %v849, %v863
    %v915 = vadd.f32 %v850, %v863
    %v916 = vadd.f32 %v851, %v863
    %v917 = vadd.f32 %v852, %v863
    %v918 = vadd.f32 %v853, %v863
    %v919 = vadd.f32 %v854, %v863
    %v920 = vadd.f32 %v855, %v863
    %v921 = vadd.f32 %v856, %v863
    %v922 = vadd.f32 %v857, %v863
    %v923 = vadd.f32 %v858, %v863
    %v924 = vadd.f32 %v859, %v863
    %v925 = vadd.f32 %v860, %v863
    %v926 = vadd.f32 %v861, %v863
    %v927 = vadd.f32 %v862, %v863
    %v928 = vmax.f32 %v864, 0.0
    %v929 = vmax.f32 %v865, 0.0
    %v930 = vmax.f32 %v866, 0.0
    %v931 = vmax.f32 %v867, 0.0
    %v932 = vmax.f32 %v868, 0.0
    %v933 = vmax.f32 %v869, 0.0
    %v934 = vmax.f32 %v870, 0.0
    %v935 = vmax.f32 %v871, 0.0
    %v936 = vmax.f32 %v872, 0.0
    %v937 = vmax.f32 %v873, 0.0
    %v938 = vmax.f32 %v874, 0.0
    %v939 = vmax.f32 %v875, 0.0
    %v940 = vmax.f32 %v876, 0.0
    %v941 = vmax.f32 %v877, 0.0
    %v942 = vmax.f32 %v878, 0.0
    %v943 = vmax.f32 %v879, 0.0
    %v944 = vmax.f32 %v880, 0.0
    %v945 = vmax.f32 %v881, 0.0
    %v946 = vmax.f32 %v882, 0.0
    %v947 = vmax.f32 %v883, 0.0
    %v948 = vmax.f32 %v884, 0.0
    %v949 = vmax.f32 %v885, 0.0
    %v950 = vmax.f32 %v886, 0.0
    %v951 = vmax.f32 %v887, 0.0
    %v952 = vmax.f32 %v888, 0.0
    %v953 = vmax.f32 %v889, 0.0
    %v954 = vmax.f32 %v890, 0.0
    %v955 = vmax.f32 %v891, 0.0
    %v956 = vmax.f32 %v892, 0.0
    %v957 = vmax.f32 %v893, 0.0
    %v958 = vmax.f32 %v894, 0.0
    %v959 = vmax.f32 %v895, 0.0
    %v960 = vmax.f32 %v896, 0.0
    %v961 = vmax.f32 %v897, 0.0
    %v962 = vmax.f32 %v898, 0.0
    %v963 = vmax.f32 %v899, 0.0
    %v964 = vmax.f32 %v900, 0.0
    %v965 = vmax.f32 %v901, 0.0
    %v966 = vmax.f32 %v902, 0.0
    %v967 = vmax.f32 %v903, 0.0
    %v968 = vmax.f32 %v904, 0.0
    %v969 = vmax.f32 %v905, 0.0
    %v970 = vmax.f32 %v906, 0.0
    %v971 = vmax.f32 %v907, 0.0
    %v972 = vmax.f32 %v908, 0.0
    %v973 = vmax.f32 %v909, 0.0
    %v974 = vmax.f32 %v910, 0.0
    %v975 = vmax.f32 %v911, 0.0
    %v976 = vmax.f32 %v912, 0.0
    %v977 = vmax.f32 %v913, 0.0
    %v978 = vmax.f32 %v914, 0.0
    %v979 = vmax.f32 %v915, 0.0
    %v980 = vmax.f32 %v916, 0.0
    %v981 = vmax.f32 %v917, 0.0
    %v982 = vmax.f32 %v918, 0.0
    %v983 = vmax.f32 %v919, 0.0
    %v984 = vmax.f32 %v920, 0.0
    %v985 = vmax.f32 %v921, 0.0
    %v986 = vmax.f32 %v922, 0.0
    %v987 = vmax.f32 %v923, 0.0
    %v988 = vmax.f32 %v924, 0.0
    %v989 = vmax.f32 %v925, 0.0
    %v990 = vmax.f32 %v926, 0.0
    %v991 = vmax.f32 %v927, 0.0
    %992 = vst [vmem:[#allocation2] sm:$0xff] %v928
    %993 = vst [vmem:[#allocation2 + $0x8] sm:$0xff] %v929
    %994 = vst [vmem:[#allocation2 + $0x10] sm:$0xff] %v930
    %995 = vst [vmem:[#allocation2 + $0x18] sm:$0xff] %v931
    %996 = vst [vmem:[#allocation2 + $0x20] sm:$0xff] %v932
    %997 = vst [vmem:[#allocation2 + $0x28] sm:$0xff] %v933
    %998 = vst [vmem:[#allocation2 + $0x30] sm:$0xff] %v934
    %999 = vst [vmem:[#allocation2 + $0x38] sm:$0xff] %v935
    %1000 = vst [vmem:[#allocation2 + $0x40] sm:$0xff] %v936
    %1001 = vst [vmem:[#allocation2 + $0x48] sm:$0xff] %v937
    %1002 = vst [vmem:[#allocation2 + $0x50] sm:$0xff] %v938
    %1003 = vst [vmem:[#allocation2 + $0x58] sm:$0xff] %v939
    %1004 = vst [vmem:[#allocation2 + $0x60] sm:$0xff] %v940
    %1005 = vst [vmem:[#allocation2 + $0x68] sm:$0xff] %v941
    %1006 = vst [vmem:[#allocation2 + $0x70] sm:$0xff] %v942
    %1007 = vst [vmem:[#allocation2 + $0x78] sm:$0xff] %v943
    %1008 = vst [vmem:[#allocation2 + $0x80] sm:$0xff] %v944
    %1009 = vst [vmem:[#allocation2 + $0x88] sm:$0xff] %v945
    %1010 = vst [vmem:[#allocation2 + $0x90] sm:$0xff] %v946
    %1011 = vst [vmem:[#allocation2 + $0x98] sm:$0xff] %v947
    %1012 = vst [vmem:[#allocation2 + $0xa0] sm:$0xff] %v948
    %1013 = vst [vmem:[#allocation2 + $0xa8] sm:$0xff] %v949
    %1014 = vst [vmem:[#allocation2 + $0xb0] sm:$0xff] %v950
    %1015 = vst [vmem:[#allocation2 + $0xb8] sm:$0xff] %v951
    %1016 = vst [vmem:[#allocation2 + $0xc0] sm:$0xff] %v952
    %1017 = vst [vmem:[#allocation2 + $0xc8] sm:$0xff] %v953
    %1018 = vst [vmem:[#allocation2 + $0xd0] sm:$0xff] %v954
    %1019 = vst [vmem:[#allocation2 + $0xd8] sm:$0xff] %v955
    %1020 = vst [vmem:[#allocation2 + $0xe0] sm:$0xff] %v956
    %1021 = vst [vmem:[#allocation2 + $0xe8] sm:$0xff] %v957
    %1022 = vst [vmem:[#allocation2 + $0xf0] sm:$0xff] %v958
    %1023 = vst [vmem:[#allocation2 + $0xf8] sm:$0xff] %v959
    %1024 = vst [vmem:[#allocation2 + $0x100] sm:$0xff] %v960
    %1025 = vst [vmem:[#allocation2 + $0x108] sm:$0xff] %v961
    %1026 = vst [vmem:[#allocation2 + $0x110] sm:$0xff] %v962
    %1027 = vst [vmem:[#allocation2 + $0x118] sm:$0xff] %v963
    %1028 = vst [vmem:[#allocation2 + $0x120] sm:$0xff] %v964
    %1029 = vst [vmem:[#allocation2 + $0x128] sm:$0xff] %v965
    %1030 = vst [vmem:[#allocation2 + $0x130] sm:$0xff] %v966
    %1031 = vst [vmem:[#allocation2 + $0x138] sm:$0xff] %v967
    %1032 = vst [vmem:[#allocation2 + $0x140] sm:$0xff] %v968
    %1033 = vst [vmem:[#allocation2 + $0x148] sm:$0xff] %v969
    %1034 = vst [vmem:[#allocation2 + $0x150] sm:$0xff] %v970
    %1035 = vst [vmem:[#allocation2 + $0x158] sm:$0xff] %v971
    %1036 = vst [vmem:[#allocation2 + $0x160] sm:$0xff] %v972
    %1037 = vst [vmem:[#allocation2 + $0x168] sm:$0xff] %v973
    %1038 = vst [vmem:[#allocation2 + $0x170] sm:$0xff] %v974
    %1039 = vst [vmem:[#allocation2 + $0x178] sm:$0xff] %v975
    %1040 = vst [vmem:[#allocation2 + $0x180] sm:$0xff] %v976
    %1041 = vst [vmem:[#allocation2 + $0x188] sm:$0xff] %v977
    %1042 = vst [vmem:[#allocation2 + $0x190] sm:$0xff] %v978
    %1043 = vst [vmem:[#allocation2 + $0x198] sm:$0xff] %v979
    %1044 = vst [vmem:[#allocation2 + $0x1a0] sm:$0xff] %v980
    %1045 = vst [vmem:[#allocation2 + $0x1a8] sm:$0xff] %v981
    %1046 = vst [vmem:[#allocation2 + $0x1b0] sm:$0xff] %v982
    %1047 = vst [vmem:[#allocation2 + $0x1b8] sm:$0xff] %v983
    %1048 = vst [vmem:[#allocation2 + $0x1c0] sm:$0xff] %v984
    %1049 = vst [vmem:[#allocation2 + $0x1c8] sm:$0xff] %v985
    %1050 = vst [vmem:[#allocation2 + $0x1d0] sm:$0xff] %v986
    %1051 = vst [vmem:[#allocation2 + $0x1d8] sm:$0xff] %v987
    %1052 = vst [vmem:[#allocation2 + $0x1e0] sm:$0xff] %v988
    %1053 = vst [vmem:[#allocation2 + $0x1e8] sm:$0xff] %v989
    %1054 = vst [vmem:[#allocation2 + $0x1f0] sm:$0xff] %v990
    %1055 = vst [vmem:[#allocation2 + $0x1f8] sm:$0xff] %v991
    // Predicated region
    $region26: #{bottleneck_forward.5} parent=1 // pred_check
      _
    $region27: #{bottleneck_forward.5} parent=1 // pred_check_branch
      %1057 = sbr.rel (0) target = $region29
    $region28: #{bottleneck_forward.5} parent=1 // pred_region
      %1059 = vsyncadd [#allocation3], 0
      %s1060 = sshll.u32 [#allocation2], 4
      %s1061 = int_to_ptr.vmem [resolvable:$true] %s1060
      %s1062 = sshll.u32 %s6, 4
      %s1063 = int_to_ptr.hbm [resolvable:$true] %s1062
      %1068 = dma.vmem_to_hbm [thread:$0]  %s1061, 8192, %s1063, [#allocation3], 128, 128, 8
    $region29: #{bottleneck_forward.5} parent=1 // pred_fallthru
      _
    // Predicated region
    $region30: #{bottleneck_forward.5} parent=1 // pred_check
      _
    $region31: #{bottleneck_forward.5} parent=1 // pred_check_branch
      %1070 = sbr.rel (0) target = $region33
    $region32: #{bottleneck_forward.5} parent=1 // pred_region
      %1072 = dma.done [#allocation3], 8192
    $region33: #{bottleneck_forward.5} parent=1 // pred_fallthru
      _
    %1073 = vsyncpa [#allocation3], 1

// kernel: bottleneck_forward.4
$region0: #{bottleneck_forward.4}
  #allocation0 [shape = 'u32[]', space=smem, size = 0x4, offset = 0x4, fixed_abs, tag = 'smem constant byte address 0x4 - core index']
  #allocation1 [shape = 'u32[72,128]{1,0:T(1,128)}', space=vmem, size = 0x9000, scoped, tag = 'internal scratch']
  %s0 = inlined_call_operand.vmem [shape: f32[512,1152], index: 0, kind: input, shape index: {}]
  %s1 = inlined_call_operand.vmem [shape: f32[1152,128], index: 1, kind: input, shape index: {}]
  %s2 = inlined_call_operand.vmem [shape: f32[2,128], index: 2, kind: input, shape index: {}]
  %s3 = inlined_call_operand.vmem [shape: f32[512,128], index: 3, kind: output, shape index: {}]
  %s4 = sld [smem:[#allocation0]]
  $region22: #{bottleneck_forward.4} parent=0
    _
  %s6 = ssub.s32 1, %s4
  %s7 = scalar_select 0, %s6, %s4
  // Predicated region
  $region2: #{bottleneck_forward.4} parent=0 // pred_check
    _
  $region3: #{bottleneck_forward.4} parent=0 // pred_check_branch
    %9 = sbr.rel (0) target = $region5
  $region4: #{bottleneck_forward.4} parent=0 // pred_region
    _
  $region5: #{bottleneck_forward.4} parent=0 // pred_fallthru
    _
  // Predicated region
  $region6: #{bottleneck_forward.4} parent=0 // pred_check
    _
  $region7: #{bottleneck_forward.4} parent=0 // pred_check_branch
    %11 = sbr.rel (0) target = $region9
  $region8: #{bottleneck_forward.4} parent=0 // pred_region
    _
  $region9: #{bottleneck_forward.4} parent=0 // pred_fallthru
    _
  // Predicated region
  $region10: #{bottleneck_forward.4} parent=0 // pred_check
    _
  $region11: #{bottleneck_forward.4} parent=0 // pred_check_branch
    %13 = sbr.rel (0) target = $region13
  $region12: #{bottleneck_forward.4} parent=0 // pred_region
    _
  $region13: #{bottleneck_forward.4} parent=0 // pred_fallthru
    _
  %v14 = vld [vmem:[%s0] sm:$0xff]
  %v15 = vld [vmem:[%s0 + $0x8] sm:$0xff]
  %v16 = vld [vmem:[%s0 + $0x10] sm:$0xff]
  %v17 = vld [vmem:[%s0 + $0x18] sm:$0xff]
  %v18 = vld [vmem:[%s0 + $0x20] sm:$0xff]
  %v19 = vld [vmem:[%s0 + $0x28] sm:$0xff]
  %v20 = vld [vmem:[%s0 + $0x30] sm:$0xff]
  %v21 = vld [vmem:[%s0 + $0x38] sm:$0xff]
  %v22 = vld [vmem:[%s0 + $0x40] sm:$0xff]
  %v23 = vld [vmem:[%s0 + $0x48] sm:$0xff]
  %v24 = vld [vmem:[%s0 + $0x50] sm:$0xff]
  %v25 = vld [vmem:[%s0 + $0x58] sm:$0xff]
  %v26 = vld [vmem:[%s0 + $0x60] sm:$0xff]
  %v27 = vld [vmem:[%s0 + $0x68] sm:$0xff]
  %v28 = vld [vmem:[%s0 + $0x70] sm:$0xff]
  %v29 = vld [vmem:[%s0 + $0x78] sm:$0xff]
  %v30 = vld [vmem:[%s0 + $0x80] sm:$0xff]
  %v31 = vld [vmem:[%s0 + $0x88] sm:$0xff]
  %v32 = vld [vmem:[%s0 + $0x90] sm:$0xff]
  %v33 = vld [vmem:[%s0 + $0x98] sm:$0xff]
  %v34 = vld [vmem:[%s0 + $0xa0] sm:$0xff]
  %v35 = vld [vmem:[%s0 + $0xa8] sm:$0xff]
  %v36 = vld [vmem:[%s0 + $0xb0] sm:$0xff]
  %v37 = vld [vmem:[%s0 + $0xb8] sm:$0xff]
  %v38 = vld [vmem:[%s0 + $0xc0] sm:$0xff]
  %v39 = vld [vmem:[%s0 + $0xc8] sm:$0xff]
  %v40 = vld [vmem:[%s0 + $0xd0] sm:$0xff]
  %v41 = vld [vmem:[%s0 + $0xd8] sm:$0xff]
  %v42 = vld [vmem:[%s0 + $0xe0] sm:$0xff]
  %v43 = vld [vmem:[%s0 + $0xe8] sm:$0xff]
  %v44 = vld [vmem:[%s0 + $0xf0] sm:$0xff]
  %v45 = vld [vmem:[%s0 + $0xf8] sm:$0xff]
  %v46 = vld [vmem:[%s0 + $0x100] sm:$0xff]
  %v47 = vld [vmem:[%s0 + $0x108] sm:$0xff]
  %v48 = vld [vmem:[%s0 + $0x110] sm:$0xff]
  %v49 = vld [vmem:[%s0 + $0x118] sm:$0xff]
  %v50 = vld [vmem:[%s0 + $0x120] sm:$0xff]
  %v51 = vld [vmem:[%s0 + $0x128] sm:$0xff]
  %v52 = vld [vmem:[%s0 + $0x130] sm:$0xff]
  %v53 = vld [vmem:[%s0 + $0x138] sm:$0xff]
  %v54 = vld [vmem:[%s0 + $0x140] sm:$0xff]
  %v55 = vld [vmem:[%s0 + $0x148] sm:$0xff]
  %v56 = vld [vmem:[%s0 + $0x150] sm:$0xff]
  %v57 = vld [vmem:[%s0 + $0x158] sm:$0xff]
  %v58 = vld [vmem:[%s0 + $0x160] sm:$0xff]
  %v59 = vld [vmem:[%s0 + $0x168] sm:$0xff]
  %v60 = vld [vmem:[%s0 + $0x170] sm:$0xff]
  %v61 = vld [vmem:[%s0 + $0x178] sm:$0xff]
  %v62 = vld [vmem:[%s0 + $0x180] sm:$0xff]
  %v63 = vld [vmem:[%s0 + $0x188] sm:$0xff]
  %v64 = vld [vmem:[%s0 + $0x190] sm:$0xff]
  %v65 = vld [vmem:[%s0 + $0x198] sm:$0xff]
  %v66 = vld [vmem:[%s0 + $0x1a0] sm:$0xff]
  %v67 = vld [vmem:[%s0 + $0x1a8] sm:$0xff]
  %v68 = vld [vmem:[%s0 + $0x1b0] sm:$0xff]
  %v69 = vld [vmem:[%s0 + $0x1b8] sm:$0xff]
  %v70 = vld [vmem:[%s0 + $0x1c0] sm:$0xff]
  %v71 = vld [vmem:[%s0 + $0x1c8] sm:$0xff]
  %v72 = vld [vmem:[%s0 + $0x1d0] sm:$0xff]
  %v73 = vld [vmem:[%s0 + $0x1d8] sm:$0xff]
  %v74 = vld [vmem:[%s0 + $0x1e0] sm:$0xff]
  %v75 = vld [vmem:[%s0 + $0x1e8] sm:$0xff]
  %v76 = vld [vmem:[%s0 + $0x1f0] sm:$0xff]
  %v77 = vld [vmem:[%s0 + $0x1f8] sm:$0xff]
  %v78 = vld [vmem:[%s0 + $0x200] sm:$0xff]
  %v79 = vld [vmem:[%s0 + $0x208] sm:$0xff]
  %v80 = vld [vmem:[%s0 + $0x210] sm:$0xff]
  %v81 = vld [vmem:[%s0 + $0x218] sm:$0xff]
  %v82 = vld [vmem:[%s0 + $0x220] sm:$0xff]
  %v83 = vld [vmem:[%s0 + $0x228] sm:$0xff]
  %v84 = vld [vmem:[%s0 + $0x230] sm:$0xff]
  %v85 = vld [vmem:[%s0 + $0x238] sm:$0xff]
  %v86 = vld [vmem:[%s0 + $0x240] sm:$0xff]
  %v87 = vld [vmem:[%s0 + $0x248] sm:$0xff]
  %v88 = vld [vmem:[%s0 + $0x250] sm:$0xff]
  %v89 = vld [vmem:[%s0 + $0x258] sm:$0xff]
  %v90 = vld [vmem:[%s0 + $0x260] sm:$0xff]
  %v91 = vld [vmem:[%s0 + $0x268] sm:$0xff]
  %v92 = vld [vmem:[%s0 + $0x270] sm:$0xff]
  %v93 = vld [vmem:[%s0 + $0x278] sm:$0xff]
  %v94 = vld [vmem:[%s0 + $0x280] sm:$0xff]
  %v95 = vld [vmem:[%s0 + $0x288] sm:$0xff]
  %v96 = vld [vmem:[%s0 + $0x290] sm:$0xff]
  %v97 = vld [vmem:[%s0 + $0x298] sm:$0xff]
  %v98 = vld [vmem:[%s0 + $0x2a0] sm:$0xff]
  %v99 = vld [vmem:[%s0 + $0x2a8] sm:$0xff]
  %v100 = vld [vmem:[%s0 + $0x2b0] sm:$0xff]
  %v101 = vld [vmem:[%s0 + $0x2b8] sm:$0xff]
  %v102 = vld [vmem:[%s0 + $0x2c0] sm:$0xff]
  %v103 = vld [vmem:[%s0 + $0x2c8] sm:$0xff]
  %v104 = vld [vmem:[%s0 + $0x2d0] sm:$0xff]
  %v105 = vld [vmem:[%s0 + $0x2d8] sm:$0xff]
  %v106 = vld [vmem:[%s0 + $0x2e0] sm:$0xff]
  %v107 = vld [vmem:[%s0 + $0x2e8] sm:$0xff]
  %v108 = vld [vmem:[%s0 + $0x2f0] sm:$0xff]
  %v109 = vld [vmem:[%s0 + $0x2f8] sm:$0xff]
  %v110 = vld [vmem:[%s0 + $0x300] sm:$0xff]
  %v111 = vld [vmem:[%s0 + $0x308] sm:$0xff]
  %v112 = vld [vmem:[%s0 + $0x310] sm:$0xff]
  %v113 = vld [vmem:[%s0 + $0x318] sm:$0xff]
  %v114 = vld [vmem:[%s0 + $0x320] sm:$0xff]
  %v115 = vld [vmem:[%s0 + $0x328] sm:$0xff]
  %v116 = vld [vmem:[%s0 + $0x330] sm:$0xff]
  %v117 = vld [vmem:[%s0 + $0x338] sm:$0xff]
  %v118 = vld [vmem:[%s0 + $0x340] sm:$0xff]
  %v119 = vld [vmem:[%s0 + $0x348] sm:$0xff]
  %v120 = vld [vmem:[%s0 + $0x350] sm:$0xff]
  %v121 = vld [vmem:[%s0 + $0x358] sm:$0xff]
  %v122 = vld [vmem:[%s0 + $0x360] sm:$0xff]
  %v123 = vld [vmem:[%s0 + $0x368] sm:$0xff]
  %v124 = vld [vmem:[%s0 + $0x370] sm:$0xff]
  %v125 = vld [vmem:[%s0 + $0x378] sm:$0xff]
  %v126 = vld [vmem:[%s0 + $0x380] sm:$0xff]
  %v127 = vld [vmem:[%s0 + $0x388] sm:$0xff]
  %v128 = vld [vmem:[%s0 + $0x390] sm:$0xff]
  %v129 = vld [vmem:[%s0 + $0x398] sm:$0xff]
  %v130 = vld [vmem:[%s0 + $0x3a0] sm:$0xff]
  %v131 = vld [vmem:[%s0 + $0x3a8] sm:$0xff]
  %v132 = vld [vmem:[%s0 + $0x3b0] sm:$0xff]
  %v133 = vld [vmem:[%s0 + $0x3b8] sm:$0xff]
  %v134 = vld [vmem:[%s0 + $0x3c0] sm:$0xff]
  %v135 = vld [vmem:[%s0 + $0x3c8] sm:$0xff]
  %v136 = vld [vmem:[%s0 + $0x3d0] sm:$0xff]
  %v137 = vld [vmem:[%s0 + $0x3d8] sm:$0xff]
  %v138 = vld [vmem:[%s0 + $0x3e0] sm:$0xff]
  %v139 = vld [vmem:[%s0 + $0x3e8] sm:$0xff]
  %v140 = vld [vmem:[%s0 + $0x3f0] sm:$0xff]
  %v141 = vld [vmem:[%s0 + $0x3f8] sm:$0xff]
  %v142 = vld [vmem:[%s0 + $0x400] sm:$0xff]
  %v143 = vld [vmem:[%s0 + $0x408] sm:$0xff]
  %v144 = vld [vmem:[%s0 + $0x410] sm:$0xff]
  %v145 = vld [vmem:[%s0 + $0x418] sm:$0xff]
  %v146 = vld [vmem:[%s0 + $0x420] sm:$0xff]
  %v147 = vld [vmem:[%s0 + $0x428] sm:$0xff]
  %v148 = vld [vmem:[%s0 + $0x430] sm:$0xff]
  %v149 = vld [vmem:[%s0 + $0x438] sm:$0xff]
  %v150 = vld [vmem:[%s0 + $0x440] sm:$0xff]
  %v151 = vld [vmem:[%s0 + $0x448] sm:$0xff]
  %v152 = vld [vmem:[%s0 + $0x450] sm:$0xff]
  %v153 = vld [vmem:[%s0 + $0x458] sm:$0xff]
  %v154 = vld [vmem:[%s0 + $0x460] sm:$0xff]
  %v155 = vld [vmem:[%s0 + $0x468] sm:$0xff]
  %v156 = vld [vmem:[%s0 + $0x470] sm:$0xff]
  %v157 = vld [vmem:[%s0 + $0x478] sm:$0xff]
  %v158 = vld [vmem:[%s0 + $0x480] sm:$0xff]
  %v159 = vld [vmem:[%s0 + $0x488] sm:$0xff]
  %v160 = vld [vmem:[%s0 + $0x490] sm:$0xff]
  %v161 = vld [vmem:[%s0 + $0x498] sm:$0xff]
  %v162 = vld [vmem:[%s0 + $0x4a0] sm:$0xff]
  %v163 = vld [vmem:[%s0 + $0x4a8] sm:$0xff]
  %v164 = vld [vmem:[%s0 + $0x4b0] sm:$0xff]
  %v165 = vld [vmem:[%s0 + $0x4b8] sm:$0xff]
  %v166 = vld [vmem:[%s0 + $0x4c0] sm:$0xff]
  %v167 = vld [vmem:[%s0 + $0x4c8] sm:$0xff]
  %v168 = vld [vmem:[%s0 + $0x4d0] sm:$0xff]
  %v169 = vld [vmem:[%s0 + $0x4d8] sm:$0xff]
  %v170 = vld [vmem:[%s0 + $0x4e0] sm:$0xff]
  %v171 = vld [vmem:[%s0 + $0x4e8] sm:$0xff]
  %v172 = vld [vmem:[%s0 + $0x4f0] sm:$0xff]
  %v173 = vld [vmem:[%s0 + $0x4f8] sm:$0xff]
  %v174 = vld [vmem:[%s0 + $0x500] sm:$0xff]
  %v175 = vld [vmem:[%s0 + $0x508] sm:$0xff]
  %v176 = vld [vmem:[%s0 + $0x510] sm:$0xff]
  %v177 = vld [vmem:[%s0 + $0x518] sm:$0xff]
  %v178 = vld [vmem:[%s0 + $0x520] sm:$0xff]
  %v179 = vld [vmem:[%s0 + $0x528] sm:$0xff]
  %v180 = vld [vmem:[%s0 + $0x530] sm:$0xff]
  %v181 = vld [vmem:[%s0 + $0x538] sm:$0xff]
  %v182 = vld [vmem:[%s0 + $0x540] sm:$0xff]
  %v183 = vld [vmem:[%s0 + $0x548] sm:$0xff]
  %v184 = vld [vmem:[%s0 + $0x550] sm:$0xff]
  %v185 = vld [vmem:[%s0 + $0x558] sm:$0xff]
  %v186 = vld [vmem:[%s0 + $0x560] sm:$0xff]
  %v187 = vld [vmem:[%s0 + $0x568] sm:$0xff]
  %v188 = vld [vmem:[%s0 + $0x570] sm:$0xff]
  %v189 = vld [vmem:[%s0 + $0x578] sm:$0xff]
  %v190 = vld [vmem:[%s0 + $0x580] sm:$0xff]
  %v191 = vld [vmem:[%s0 + $0x588] sm:$0xff]
  %v192 = vld [vmem:[%s0 + $0x590] sm:$0xff]
  %v193 = vld [vmem:[%s0 + $0x598] sm:$0xff]
  %v194 = vld [vmem:[%s0 + $0x5a0] sm:$0xff]
  %v195 = vld [vmem:[%s0 + $0x5a8] sm:$0xff]
  %v196 = vld [vmem:[%s0 + $0x5b0] sm:$0xff]
  %v197 = vld [vmem:[%s0 + $0x5b8] sm:$0xff]
  %v198 = vld [vmem:[%s0 + $0x5c0] sm:$0xff]
  %v199 = vld [vmem:[%s0 + $0x5c8] sm:$0xff]
  %v200 = vld [vmem:[%s0 + $0x5d0] sm:$0xff]
  %v201 = vld [vmem:[%s0 + $0x5d8] sm:$0xff]
  %v202 = vld [vmem:[%s0 + $0x5e0] sm:$0xff]
  %v203 = vld [vmem:[%s0 + $0x5e8] sm:$0xff]
  %v204 = vld [vmem:[%s0 + $0x5f0] sm:$0xff]
  %v205 = vld [vmem:[%s0 + $0x5f8] sm:$0xff]
  %v206 = vld [vmem:[%s0 + $0x600] sm:$0xff]
  %v207 = vld [vmem:[%s0 + $0x608] sm:$0xff]
  %v208 = vld [vmem:[%s0 + $0x610] sm:$0xff]
  %v209 = vld [vmem:[%s0 + $0x618] sm:$0xff]
  %v210 = vld [vmem:[%s0 + $0x620] sm:$0xff]
  %v211 = vld [vmem:[%s0 + $0x628] sm:$0xff]
  %v212 = vld [vmem:[%s0 + $0x630] sm:$0xff]
  %v213 = vld [vmem:[%s0 + $0x638] sm:$0xff]
  %v214 = vld [vmem:[%s0 + $0x640] sm:$0xff]
  %v215 = vld [vmem:[%s0 + $0x648] sm:$0xff]
  %v216 = vld [vmem:[%s0 + $0x650] sm:$0xff]
  %v217 = vld [vmem:[%s0 + $0x658] sm:$0xff]
  %v218 = vld [vmem:[%s0 + $0x660] sm:$0xff]
  %v219 = vld [vmem:[%s0 + $0x668] sm:$0xff]
  %v220 = vld [vmem:[%s0 + $0x670] sm:$0xff]
  %v221 = vld [vmem:[%s0 + $0x678] sm:$0xff]
  %v222 = vld [vmem:[%s0 + $0x680] sm:$0xff]
  %v223 = vld [vmem:[%s0 + $0x688] sm:$0xff]
  %v224 = vld [vmem:[%s0 + $0x690] sm:$0xff]
  %v225 = vld [vmem:[%s0 + $0x698] sm:$0xff]
  %v226 = vld [vmem:[%s0 + $0x6a0] sm:$0xff]
  %v227 = vld [vmem:[%s0 + $0x6a8] sm:$0xff]
  %v228 = vld [vmem:[%s0 + $0x6b0] sm:$0xff]
  %v229 = vld [vmem:[%s0 + $0x6b8] sm:$0xff]
  %v230 = vld [vmem:[%s0 + $0x6c0] sm:$0xff]
  %v231 = vld [vmem:[%s0 + $0x6c8] sm:$0xff]
  %v232 = vld [vmem:[%s0 + $0x6d0] sm:$0xff]
  %v233 = vld [vmem:[%s0 + $0x6d8] sm:$0xff]
  %v234 = vld [vmem:[%s0 + $0x6e0] sm:$0xff]
  %v235 = vld [vmem:[%s0 + $0x6e8] sm:$0xff]
  %v236 = vld [vmem:[%s0 + $0x6f0] sm:$0xff]
  %v237 = vld [vmem:[%s0 + $0x6f8] sm:$0xff]
  %v238 = vld [vmem:[%s0 + $0x700] sm:$0xff]
  %v239 = vld [vmem:[%s0 + $0x708] sm:$0xff]
  %v240 = vld [vmem:[%s0 + $0x710] sm:$0xff]
  %v241 = vld [vmem:[%s0 + $0x718] sm:$0xff]
  %v242 = vld [vmem:[%s0 + $0x720] sm:$0xff]
  %v243 = vld [vmem:[%s0 + $0x728] sm:$0xff]
  %v244 = vld [vmem:[%s0 + $0x730] sm:$0xff]
  %v245 = vld [vmem:[%s0 + $0x738] sm:$0xff]
  %v246 = vld [vmem:[%s0 + $0x740] sm:$0xff]
  %v247 = vld [vmem:[%s0 + $0x748] sm:$0xff]
  %v248 = vld [vmem:[%s0 + $0x750] sm:$0xff]
  %v249 = vld [vmem:[%s0 + $0x758] sm:$0xff]
  %v250 = vld [vmem:[%s0 + $0x760] sm:$0xff]
  %v251 = vld [vmem:[%s0 + $0x768] sm:$0xff]
  %v252 = vld [vmem:[%s0 + $0x770] sm:$0xff]
  %v253 = vld [vmem:[%s0 + $0x778] sm:$0xff]
  %v254 = vld [vmem:[%s0 + $0x780] sm:$0xff]
  %v255 = vld [vmem:[%s0 + $0x788] sm:$0xff]
  %v256 = vld [vmem:[%s0 + $0x790] sm:$0xff]
  %v257 = vld [vmem:[%s0 + $0x798] sm:$0xff]
  %v258 = vld [vmem:[%s0 + $0x7a0] sm:$0xff]
  %v259 = vld [vmem:[%s0 + $0x7a8] sm:$0xff]
  %v260 = vld [vmem:[%s0 + $0x7b0] sm:$0xff]
  %v261 = vld [vmem:[%s0 + $0x7b8] sm:$0xff]
  %v262 = vld [vmem:[%s0 + $0x7c0] sm:$0xff]
  %v263 = vld [vmem:[%s0 + $0x7c8] sm:$0xff]
  %v264 = vld [vmem:[%s0 + $0x7d0] sm:$0xff]
  %v265 = vld [vmem:[%s0 + $0x7d8] sm:$0xff]
  %v266 = vld [vmem:[%s0 + $0x7e0] sm:$0xff]
  %v267 = vld [vmem:[%s0 + $0x7e8] sm:$0xff]
  %v268 = vld [vmem:[%s0 + $0x7f0] sm:$0xff]
  %v269 = vld [vmem:[%s0 + $0x7f8] sm:$0xff]
  %v270 = vld [vmem:[%s0 + $0x800] sm:$0xff]
  %v271 = vld [vmem:[%s0 + $0x808] sm:$0xff]
  %v272 = vld [vmem:[%s0 + $0x810] sm:$0xff]
  %v273 = vld [vmem:[%s0 + $0x818] sm:$0xff]
  %v274 = vld [vmem:[%s0 + $0x820] sm:$0xff]
  %v275 = vld [vmem:[%s0 + $0x828] sm:$0xff]
  %v276 = vld [vmem:[%s0 + $0x830] sm:$0xff]
  %v277 = vld [vmem:[%s0 + $0x838] sm:$0xff]
  %v278 = vld [vmem:[%s0 + $0x840] sm:$0xff]
  %v279 = vld [vmem:[%s0 + $0x848] sm:$0xff]
  %v280 = vld [vmem:[%s0 + $0x850] sm:$0xff]
  %v281 = vld [vmem:[%s0 + $0x858] sm:$0xff]
  %v282 = vld [vmem:[%s0 + $0x860] sm:$0xff]
  %v283 = vld [vmem:[%s0 + $0x868] sm:$0xff]
  %v284 = vld [vmem:[%s0 + $0x870] sm:$0xff]
  %v285 = vld [vmem:[%s0 + $0x878] sm:$0xff]
  %v286 = vld [vmem:[%s0 + $0x880] sm:$0xff]
  %v287 = vld [vmem:[%s0 + $0x888] sm:$0xff]
  %v288 = vld [vmem:[%s0 + $0x890] sm:$0xff]
  %v289 = vld [vmem:[%s0 + $0x898] sm:$0xff]
  %v290 = vld [vmem:[%s0 + $0x8a0] sm:$0xff]
  %v291 = vld [vmem:[%s0 + $0x8a8] sm:$0xff]
  %v292 = vld [vmem:[%s0 + $0x8b0] sm:$0xff]
  %v293 = vld [vmem:[%s0 + $0x8b8] sm:$0xff]
  %v294 = vld [vmem:[%s0 + $0x8c0] sm:$0xff]
  %v295 = vld [vmem:[%s0 + $0x8c8] sm:$0xff]
  %v296 = vld [vmem:[%s0 + $0x8d0] sm:$0xff]
  %v297 = vld [vmem:[%s0 + $0x8d8] sm:$0xff]
  %v298 = vld [vmem:[%s0 + $0x8e0] sm:$0xff]
  %v299 = vld [vmem:[%s0 + $0x8e8] sm:$0xff]
  %v300 = vld [vmem:[%s0 + $0x8f0] sm:$0xff]
  %v301 = vld [vmem:[%s0 + $0x8f8] sm:$0xff]
  %v302 = vld [vmem:[%s0 + $0x900] sm:$0xff]
  %v303 = vld [vmem:[%s0 + $0x908] sm:$0xff]
  %v304 = vld [vmem:[%s0 + $0x910] sm:$0xff]
  %v305 = vld [vmem:[%s0 + $0x918] sm:$0xff]
  %v306 = vld [vmem:[%s0 + $0x920] sm:$0xff]
  %v307 = vld [vmem:[%s0 + $0x928] sm:$0xff]
  %v308 = vld [vmem:[%s0 + $0x930] sm:$0xff]
  %v309 = vld [vmem:[%s0 + $0x938] sm:$0xff]
  %v310 = vld [vmem:[%s0 + $0x940] sm:$0xff]
  %v311 = vld [vmem:[%s0 + $0x948] sm:$0xff]
  %v312 = vld [vmem:[%s0 + $0x950] sm:$0xff]
  %v313 = vld [vmem:[%s0 + $0x958] sm:$0xff]
  %v314 = vld [vmem:[%s0 + $0x960] sm:$0xff]
  %v315 = vld [vmem:[%s0 + $0x968] sm:$0xff]
  %v316 = vld [vmem:[%s0 + $0x970] sm:$0xff]
  %v317 = vld [vmem:[%s0 + $0x978] sm:$0xff]
  %v318 = vld [vmem:[%s0 + $0x980] sm:$0xff]
  %v319 = vld [vmem:[%s0 + $0x988] sm:$0xff]
  %v320 = vld [vmem:[%s0 + $0x990] sm:$0xff]
  %v321 = vld [vmem:[%s0 + $0x998] sm:$0xff]
  %v322 = vld [vmem:[%s0 + $0x9a0] sm:$0xff]
  %v323 = vld [vmem:[%s0 + $0x9a8] sm:$0xff]
  %v324 = vld [vmem:[%s0 + $0x9b0] sm:$0xff]
  %v325 = vld [vmem:[%s0 + $0x9b8] sm:$0xff]
  %v326 = vld [vmem:[%s0 + $0x9c0] sm:$0xff]
  %v327 = vld [vmem:[%s0 + $0x9c8] sm:$0xff]
  %v328 = vld [vmem:[%s0 + $0x9d0] sm:$0xff]
  %v329 = vld [vmem:[%s0 + $0x9d8] sm:$0xff]
  %v330 = vld [vmem:[%s0 + $0x9e0] sm:$0xff]
  %v331 = vld [vmem:[%s0 + $0x9e8] sm:$0xff]
  %v332 = vld [vmem:[%s0 + $0x9f0] sm:$0xff]
  %v333 = vld [vmem:[%s0 + $0x9f8] sm:$0xff]
  %v334 = vld [vmem:[%s0 + $0xa00] sm:$0xff]
  %v335 = vld [vmem:[%s0 + $0xa08] sm:$0xff]
  %v336 = vld [vmem:[%s0 + $0xa10] sm:$0xff]
  %v337 = vld [vmem:[%s0 + $0xa18] sm:$0xff]
  %v338 = vld [vmem:[%s0 + $0xa20] sm:$0xff]
  %v339 = vld [vmem:[%s0 + $0xa28] sm:$0xff]
  %v340 = vld [vmem:[%s0 + $0xa30] sm:$0xff]
  %v341 = vld [vmem:[%s0 + $0xa38] sm:$0xff]
  %v342 = vld [vmem:[%s0 + $0xa40] sm:$0xff]
  %v343 = vld [vmem:[%s0 + $0xa48] sm:$0xff]
  %v344 = vld [vmem:[%s0 + $0xa50] sm:$0xff]
  %v345 = vld [vmem:[%s0 + $0xa58] sm:$0xff]
  %v346 = vld [vmem:[%s0 + $0xa60] sm:$0xff]
  %v347 = vld [vmem:[%s0 + $0xa68] sm:$0xff]
  %v348 = vld [vmem:[%s0 + $0xa70] sm:$0xff]
  %v349 = vld [vmem:[%s0 + $0xa78] sm:$0xff]
  %v350 = vld [vmem:[%s0 + $0xa80] sm:$0xff]
  %v351 = vld [vmem:[%s0 + $0xa88] sm:$0xff]
  %v352 = vld [vmem:[%s0 + $0xa90] sm:$0xff]
  %v353 = vld [vmem:[%s0 + $0xa98] sm:$0xff]
  %v354 = vld [vmem:[%s0 + $0xaa0] sm:$0xff]
  %v355 = vld [vmem:[%s0 + $0xaa8] sm:$0xff]
  %v356 = vld [vmem:[%s0 + $0xab0] sm:$0xff]
  %v357 = vld [vmem:[%s0 + $0xab8] sm:$0xff]
  %v358 = vld [vmem:[%s0 + $0xac0] sm:$0xff]
  %v359 = vld [vmem:[%s0 + $0xac8] sm:$0xff]
  %v360 = vld [vmem:[%s0 + $0xad0] sm:$0xff]
  %v361 = vld [vmem:[%s0 + $0xad8] sm:$0xff]
  %v362 = vld [vmem:[%s0 + $0xae0] sm:$0xff]
  %v363 = vld [vmem:[%s0 + $0xae8] sm:$0xff]
  %v364 = vld [vmem:[%s0 + $0xaf0] sm:$0xff]
  %v365 = vld [vmem:[%s0 + $0xaf8] sm:$0xff]
  %v366 = vld [vmem:[%s0 + $0xb00] sm:$0xff]
  %v367 = vld [vmem:[%s0 + $0xb08] sm:$0xff]
  %v368 = vld [vmem:[%s0 + $0xb10] sm:$0xff]
  %v369 = vld [vmem:[%s0 + $0xb18] sm:$0xff]
  %v370 = vld [vmem:[%s0 + $0xb20] sm:$0xff]
  %v371 = vld [vmem:[%s0 + $0xb28] sm:$0xff]
  %v372 = vld [vmem:[%s0 + $0xb30] sm:$0xff]
  %v373 = vld [vmem:[%s0 + $0xb38] sm:$0xff]
  %v374 = vld [vmem:[%s0 + $0xb40] sm:$0xff]
  %v375 = vld [vmem:[%s0 + $0xb48] sm:$0xff]
  %v376 = vld [vmem:[%s0 + $0xb50] sm:$0xff]
  %v377 = vld [vmem:[%s0 + $0xb58] sm:$0xff]
  %v378 = vld [vmem:[%s0 + $0xb60] sm:$0xff]
  %v379 = vld [vmem:[%s0 + $0xb68] sm:$0xff]
  %v380 = vld [vmem:[%s0 + $0xb70] sm:$0xff]
  %v381 = vld [vmem:[%s0 + $0xb78] sm:$0xff]
  %v382 = vld [vmem:[%s0 + $0xb80] sm:$0xff]
  %v383 = vld [vmem:[%s0 + $0xb88] sm:$0xff]
  %v384 = vld [vmem:[%s0 + $0xb90] sm:$0xff]
  %v385 = vld [vmem:[%s0 + $0xb98] sm:$0xff]
  %v386 = vld [vmem:[%s0 + $0xba0] sm:$0xff]
  %v387 = vld [vmem:[%s0 + $0xba8] sm:$0xff]
  %v388 = vld [vmem:[%s0 + $0xbb0] sm:$0xff]
  %v389 = vld [vmem:[%s0 + $0xbb8] sm:$0xff]
  %v390 = vld [vmem:[%s0 + $0xbc0] sm:$0xff]
  %v391 = vld [vmem:[%s0 + $0xbc8] sm:$0xff]
  %v392 = vld [vmem:[%s0 + $0xbd0] sm:$0xff]
  %v393 = vld [vmem:[%s0 + $0xbd8] sm:$0xff]
  %v394 = vld [vmem:[%s0 + $0xbe0] sm:$0xff]
  %v395 = vld [vmem:[%s0 + $0xbe8] sm:$0xff]
  %v396 = vld [vmem:[%s0 + $0xbf0] sm:$0xff]
  %v397 = vld [vmem:[%s0 + $0xbf8] sm:$0xff]
  %v398 = vld [vmem:[%s0 + $0xc00] sm:$0xff]
  %v399 = vld [vmem:[%s0 + $0xc08] sm:$0xff]
  %v400 = vld [vmem:[%s0 + $0xc10] sm:$0xff]
  %v401 = vld [vmem:[%s0 + $0xc18] sm:$0xff]
  %v402 = vld [vmem:[%s0 + $0xc20] sm:$0xff]
  %v403 = vld [vmem:[%s0 + $0xc28] sm:$0xff]
  %v404 = vld [vmem:[%s0 + $0xc30] sm:$0xff]
  %v405 = vld [vmem:[%s0 + $0xc38] sm:$0xff]
  %v406 = vld [vmem:[%s0 + $0xc40] sm:$0xff]
  %v407 = vld [vmem:[%s0 + $0xc48] sm:$0xff]
  %v408 = vld [vmem:[%s0 + $0xc50] sm:$0xff]
  %v409 = vld [vmem:[%s0 + $0xc58] sm:$0xff]
  %v410 = vld [vmem:[%s0 + $0xc60] sm:$0xff]
  %v411 = vld [vmem:[%s0 + $0xc68] sm:$0xff]
  %v412 = vld [vmem:[%s0 + $0xc70] sm:$0xff]
  %v413 = vld [vmem:[%s0 + $0xc78] sm:$0xff]
  %v414 = vld [vmem:[%s0 + $0xc80] sm:$0xff]
  %v415 = vld [vmem:[%s0 + $0xc88] sm:$0xff]
  %v416 = vld [vmem:[%s0 + $0xc90] sm:$0xff]
  %v417 = vld [vmem:[%s0 + $0xc98] sm:$0xff]
  %v418 = vld [vmem:[%s0 + $0xca0] sm:$0xff]
  %v419 = vld [vmem:[%s0 + $0xca8] sm:$0xff]
  %v420 = vld [vmem:[%s0 + $0xcb0] sm:$0xff]
  %v421 = vld [vmem:[%s0 + $0xcb8] sm:$0xff]
  %v422 = vld [vmem:[%s0 + $0xcc0] sm:$0xff]
  %v423 = vld [vmem:[%s0 + $0xcc8] sm:$0xff]
  %v424 = vld [vmem:[%s0 + $0xcd0] sm:$0xff]
  %v425 = vld [vmem:[%s0 + $0xcd8] sm:$0xff]
  %v426 = vld [vmem:[%s0 + $0xce0] sm:$0xff]
  %v427 = vld [vmem:[%s0 + $0xce8] sm:$0xff]
  %v428 = vld [vmem:[%s0 + $0xcf0] sm:$0xff]
  %v429 = vld [vmem:[%s0 + $0xcf8] sm:$0xff]
  %v430 = vld [vmem:[%s0 + $0xd00] sm:$0xff]
  %v431 = vld [vmem:[%s0 + $0xd08] sm:$0xff]
  %v432 = vld [vmem:[%s0 + $0xd10] sm:$0xff]
  %v433 = vld [vmem:[%s0 + $0xd18] sm:$0xff]
  %v434 = vld [vmem:[%s0 + $0xd20] sm:$0xff]
  %v435 = vld [vmem:[%s0 + $0xd28] sm:$0xff]
  %v436 = vld [vmem:[%s0 + $0xd30] sm:$0xff]
  %v437 = vld [vmem:[%s0 + $0xd38] sm:$0xff]
  %v438 = vld [vmem:[%s0 + $0xd40] sm:$0xff]
  %v439 = vld [vmem:[%s0 + $0xd48] sm:$0xff]
  %v440 = vld [vmem:[%s0 + $0xd50] sm:$0xff]
  %v441 = vld [vmem:[%s0 + $0xd58] sm:$0xff]
  %v442 = vld [vmem:[%s0 + $0xd60] sm:$0xff]
  %v443 = vld [vmem:[%s0 + $0xd68] sm:$0xff]
  %v444 = vld [vmem:[%s0 + $0xd70] sm:$0xff]
  %v445 = vld [vmem:[%s0 + $0xd78] sm:$0xff]
  %v446 = vld [vmem:[%s0 + $0xd80] sm:$0xff]
  %v447 = vld [vmem:[%s0 + $0xd88] sm:$0xff]
  %v448 = vld [vmem:[%s0 + $0xd90] sm:$0xff]
  %v449 = vld [vmem:[%s0 + $0xd98] sm:$0xff]
  %v450 = vld [vmem:[%s0 + $0xda0] sm:$0xff]
  %v451 = vld [vmem:[%s0 + $0xda8] sm:$0xff]
  %v452 = vld [vmem:[%s0 + $0xdb0] sm:$0xff]
  %v453 = vld [vmem:[%s0 + $0xdb8] sm:$0xff]
  %v454 = vld [vmem:[%s0 + $0xdc0] sm:$0xff]
  %v455 = vld [vmem:[%s0 + $0xdc8] sm:$0xff]
  %v456 = vld [vmem:[%s0 + $0xdd0] sm:$0xff]
  %v457 = vld [vmem:[%s0 + $0xdd8] sm:$0xff]
  %v458 = vld [vmem:[%s0 + $0xde0] sm:$0xff]
  %v459 = vld [vmem:[%s0 + $0xde8] sm:$0xff]
  %v460 = vld [vmem:[%s0 + $0xdf0] sm:$0xff]
  %v461 = vld [vmem:[%s0 + $0xdf8] sm:$0xff]
  %v462 = vld [vmem:[%s0 + $0xe00] sm:$0xff]
  %v463 = vld [vmem:[%s0 + $0xe08] sm:$0xff]
  %v464 = vld [vmem:[%s0 + $0xe10] sm:$0xff]
  %v465 = vld [vmem:[%s0 + $0xe18] sm:$0xff]
  %v466 = vld [vmem:[%s0 + $0xe20] sm:$0xff]
  %v467 = vld [vmem:[%s0 + $0xe28] sm:$0xff]
  %v468 = vld [vmem:[%s0 + $0xe30] sm:$0xff]
  %v469 = vld [vmem:[%s0 + $0xe38] sm:$0xff]
  %v470 = vld [vmem:[%s0 + $0xe40] sm:$0xff]
  %v471 = vld [vmem:[%s0 + $0xe48] sm:$0xff]
  %v472 = vld [vmem:[%s0 + $0xe50] sm:$0xff]
  %v473 = vld [vmem:[%s0 + $0xe58] sm:$0xff]
  %v474 = vld [vmem:[%s0 + $0xe60] sm:$0xff]
  %v475 = vld [vmem:[%s0 + $0xe68] sm:$0xff]
  %v476 = vld [vmem:[%s0 + $0xe70] sm:$0xff]
  %v477 = vld [vmem:[%s0 + $0xe78] sm:$0xff]
  %v478 = vld [vmem:[%s0 + $0xe80] sm:$0xff]
  %v479 = vld [vmem:[%s0 + $0xe88] sm:$0xff]
  %v480 = vld [vmem:[%s0 + $0xe90] sm:$0xff]
  %v481 = vld [vmem:[%s0 + $0xe98] sm:$0xff]
  %v482 = vld [vmem:[%s0 + $0xea0] sm:$0xff]
  %v483 = vld [vmem:[%s0 + $0xea8] sm:$0xff]
  %v484 = vld [vmem:[%s0 + $0xeb0] sm:$0xff]
  %v485 = vld [vmem:[%s0 + $0xeb8] sm:$0xff]
  %v486 = vld [vmem:[%s0 + $0xec0] sm:$0xff]
  %v487 = vld [vmem:[%s0 + $0xec8] sm:$0xff]
  %v488 = vld [vmem:[%s0 + $0xed0] sm:$0xff]
  %v489 = vld [vmem:[%s0 + $0xed8] sm:$0xff]
  %v490 = vld [vmem:[%s0 + $0xee0] sm:$0xff]
  %v491 = vld [vmem:[%s0 + $0xee8] sm:$0xff]
  %v492 = vld [vmem:[%s0 + $0xef0] sm:$0xff]
  %v493 = vld [vmem:[%s0 + $0xef8] sm:$0xff]
  %v494 = vld [vmem:[%s0 + $0xf00] sm:$0xff]
  %v495 = vld [vmem:[%s0 + $0xf08] sm:$0xff]
  %v496 = vld [vmem:[%s0 + $0xf10] sm:$0xff]
  %v497 = vld [vmem:[%s0 + $0xf18] sm:$0xff]
  %v498 = vld [vmem:[%s0 + $0xf20] sm:$0xff]
  %v499 = vld [vmem:[%s0 + $0xf28] sm:$0xff]
  %v500 = vld [vmem:[%s0 + $0xf30] sm:$0xff]
  %v501 = vld [vmem:[%s0 + $0xf38] sm:$0xff]
  %v502 = vld [vmem:[%s0 + $0xf40] sm:$0xff]
  %v503 = vld [vmem:[%s0 + $0xf48] sm:$0xff]
  %v504 = vld [vmem:[%s0 + $0xf50] sm:$0xff]
  %v505 = vld [vmem:[%s0 + $0xf58] sm:$0xff]
  %v506 = vld [vmem:[%s0 + $0xf60] sm:$0xff]
  %v507 = vld [vmem:[%s0 + $0xf68] sm:$0xff]
  %v508 = vld [vmem:[%s0 + $0xf70] sm:$0xff]
  %v509 = vld [vmem:[%s0 + $0xf78] sm:$0xff]
  %v510 = vld [vmem:[%s0 + $0xf80] sm:$0xff]
  %v511 = vld [vmem:[%s0 + $0xf88] sm:$0xff]
  %v512 = vld [vmem:[%s0 + $0xf90] sm:$0xff]
  %v513 = vld [vmem:[%s0 + $0xf98] sm:$0xff]
  %v514 = vld [vmem:[%s0 + $0xfa0] sm:$0xff]
  %v515 = vld [vmem:[%s0 + $0xfa8] sm:$0xff]
  %v516 = vld [vmem:[%s0 + $0xfb0] sm:$0xff]
  %v517 = vld [vmem:[%s0 + $0xfb8] sm:$0xff]
  %v518 = vld [vmem:[%s0 + $0xfc0] sm:$0xff]
  %v519 = vld [vmem:[%s0 + $0xfc8] sm:$0xff]
  %v520 = vld [vmem:[%s0 + $0xfd0] sm:$0xff]
  %v521 = vld [vmem:[%s0 + $0xfd8] sm:$0xff]
  %v522 = vld [vmem:[%s0 + $0xfe0] sm:$0xff]
  %v523 = vld [vmem:[%s0 + $0xfe8] sm:$0xff]
  %v524 = vld [vmem:[%s0 + $0xff0] sm:$0xff]
  %v525 = vld [vmem:[%s0 + $0xff8] sm:$0xff]
  %v526 = vld [vmem:[%s0 + $0x1000] sm:$0xff]
  %v527 = vld [vmem:[%s0 + $0x1008] sm:$0xff]
  %v528 = vld [vmem:[%s0 + $0x1010] sm:$0xff]
  %v529 = vld [vmem:[%s0 + $0x1018] sm:$0xff]
  %v530 = vld [vmem:[%s0 + $0x1020] sm:$0xff]
  %v531 = vld [vmem:[%s0 + $0x1028] sm:$0xff]
  %v532 = vld [vmem:[%s0 + $0x1030] sm:$0xff]
  %v533 = vld [vmem:[%s0 + $0x1038] sm:$0xff]
  %v534 = vld [vmem:[%s0 + $0x1040] sm:$0xff]
  %v535 = vld [vmem:[%s0 + $0x1048] sm:$0xff]
  %v536 = vld [vmem:[%s0 + $0x1050] sm:$0xff]
  %v537 = vld [vmem:[%s0 + $0x1058] sm:$0xff]
  %v538 = vld [vmem:[%s0 + $0x1060] sm:$0xff]
  %v539 = vld [vmem:[%s0 + $0x1068] sm:$0xff]
  %v540 = vld [vmem:[%s0 + $0x1070] sm:$0xff]
  %v541 = vld [vmem:[%s0 + $0x1078] sm:$0xff]
  %v542 = vld [vmem:[%s0 + $0x1080] sm:$0xff]
  %v543 = vld [vmem:[%s0 + $0x1088] sm:$0xff]
  %v544 = vld [vmem:[%s0 + $0x1090] sm:$0xff]
  %v545 = vld [vmem:[%s0 + $0x1098] sm:$0xff]
  %v546 = vld [vmem:[%s0 + $0x10a0] sm:$0xff]
  %v547 = vld [vmem:[%s0 + $0x10a8] sm:$0xff]
  %v548 = vld [vmem:[%s0 + $0x10b0] sm:$0xff]
  %v549 = vld [vmem:[%s0 + $0x10b8] sm:$0xff]
  %v550 = vld [vmem:[%s0 + $0x10c0] sm:$0xff]
  %v551 = vld [vmem:[%s0 + $0x10c8] sm:$0xff]
  %v552 = vld [vmem:[%s0 + $0x10d0] sm:$0xff]
  %v553 = vld [vmem:[%s0 + $0x10d8] sm:$0xff]
  %v554 = vld [vmem:[%s0 + $0x10e0] sm:$0xff]
  %v555 = vld [vmem:[%s0 + $0x10e8] sm:$0xff]
  %v556 = vld [vmem:[%s0 + $0x10f0] sm:$0xff]
  %v557 = vld [vmem:[%s0 + $0x10f8] sm:$0xff]
  %v558 = vld [vmem:[%s0 + $0x1100] sm:$0xff]
  %v559 = vld [vmem:[%s0 + $0x1108] sm:$0xff]
  %v560 = vld [vmem:[%s0 + $0x1110] sm:$0xff]
  %v561 = vld [vmem:[%s0 + $0x1118] sm:$0xff]
  %v562 = vld [vmem:[%s0 + $0x1120] sm:$0xff]
  %v563 = vld [vmem:[%s0 + $0x1128] sm:$0xff]
  %v564 = vld [vmem:[%s0 + $0x1130] sm:$0xff]
  %v565 = vld [vmem:[%s0 + $0x1138] sm:$0xff]
  %v566 = vld [vmem:[%s0 + $0x1140] sm:$0xff]
  %v567 = vld [vmem:[%s0 + $0x1148] sm:$0xff]
  %v568 = vld [vmem:[%s0 + $0x1150] sm:$0xff]
  %v569 = vld [vmem:[%s0 + $0x1158] sm:$0xff]
  %v570 = vld [vmem:[%s0 + $0x1160] sm:$0xff]
  %v571 = vld [vmem:[%s0 + $0x1168] sm:$0xff]
  %v572 = vld [vmem:[%s0 + $0x1170] sm:$0xff]
  %v573 = vld [vmem:[%s0 + $0x1178] sm:$0xff]
  %v574 = vld [vmem:[%s0 + $0x1180] sm:$0xff]
  %v575 = vld [vmem:[%s0 + $0x1188] sm:$0xff]
  %v576 = vld [vmem:[%s0 + $0x1190] sm:$0xff]
  %v577 = vld [vmem:[%s0 + $0x1198] sm:$0xff]
  %v578 = vld [vmem:[%s0 + $0x11a0] sm:$0xff]
  %v579 = vld [vmem:[%s0 + $0x11a8] sm:$0xff]
  %v580 = vld [vmem:[%s0 + $0x11b0] sm:$0xff]
  %v581 = vld [vmem:[%s0 + $0x11b8] sm:$0xff]
  %v582 = vld [vmem:[%s0 + $0x11c0] sm:$0xff]
  %v583 = vld [vmem:[%s0 + $0x11c8] sm:$0xff]
  %v584 = vld [vmem:[%s0 + $0x11d0] sm:$0xff]
  %v585 = vld [vmem:[%s0 + $0x11d8] sm:$0xff]
  %v586 = vld [vmem:[%s0 + $0x11e0] sm:$0xff]
  %v587 = vld [vmem:[%s0 + $0x11e8] sm:$0xff]
  %v588 = vld [vmem:[%s0 + $0x11f0] sm:$0xff]
  %v589 = vld [vmem:[%s0 + $0x11f8] sm:$0xff]
  %v590 = vld [vmem:[%s1] sm:$0xff]
  %v591 = vld [vmem:[%s1 + $0x8] sm:$0xff]
  %v592 = vld [vmem:[%s1 + $0x10] sm:$0xff]
  %v593 = vld [vmem:[%s1 + $0x18] sm:$0xff]
  %v594 = vld [vmem:[%s1 + $0x20] sm:$0xff]
  %v595 = vld [vmem:[%s1 + $0x28] sm:$0xff]
  %v596 = vld [vmem:[%s1 + $0x30] sm:$0xff]
  %v597 = vld [vmem:[%s1 + $0x38] sm:$0xff]
  %v598 = vld [vmem:[%s1 + $0x40] sm:$0xff]
  %v599 = vld [vmem:[%s1 + $0x48] sm:$0xff]
  %v600 = vld [vmem:[%s1 + $0x50] sm:$0xff]
  %v601 = vld [vmem:[%s1 + $0x58] sm:$0xff]
  %v602 = vld [vmem:[%s1 + $0x60] sm:$0xff]
  %v603 = vld [vmem:[%s1 + $0x68] sm:$0xff]
  %v604 = vld [vmem:[%s1 + $0x70] sm:$0xff]
  %v605 = vld [vmem:[%s1 + $0x78] sm:$0xff]
  %v606 = vld [vmem:[%s1 + $0x80] sm:$0xff]
  %v607 = vld [vmem:[%s1 + $0x88] sm:$0xff]
  %v608 = vld [vmem:[%s1 + $0x90] sm:$0xff]
  %v609 = vld [vmem:[%s1 + $0x98] sm:$0xff]
  %v610 = vld [vmem:[%s1 + $0xa0] sm:$0xff]
  %v611 = vld [vmem:[%s1 + $0xa8] sm:$0xff]
  %v612 = vld [vmem:[%s1 + $0xb0] sm:$0xff]
  %v613 = vld [vmem:[%s1 + $0xb8] sm:$0xff]
  %v614 = vld [vmem:[%s1 + $0xc0] sm:$0xff]
  %v615 = vld [vmem:[%s1 + $0xc8] sm:$0xff]
  %v616 = vld [vmem:[%s1 + $0xd0] sm:$0xff]
  %v617 = vld [vmem:[%s1 + $0xd8] sm:$0xff]
  %v618 = vld [vmem:[%s1 + $0xe0] sm:$0xff]
  %v619 = vld [vmem:[%s1 + $0xe8] sm:$0xff]
  %v620 = vld [vmem:[%s1 + $0xf0] sm:$0xff]
  %v621 = vld [vmem:[%s1 + $0xf8] sm:$0xff]
  %v622 = vld [vmem:[%s1 + $0x100] sm:$0xff]
  %v623 = vld [vmem:[%s1 + $0x108] sm:$0xff]
  %v624 = vld [vmem:[%s1 + $0x110] sm:$0xff]
  %v625 = vld [vmem:[%s1 + $0x118] sm:$0xff]
  %v626 = vld [vmem:[%s1 + $0x120] sm:$0xff]
  %v627 = vld [vmem:[%s1 + $0x128] sm:$0xff]
  %v628 = vld [vmem:[%s1 + $0x130] sm:$0xff]
  %v629 = vld [vmem:[%s1 + $0x138] sm:$0xff]
  %v630 = vld [vmem:[%s1 + $0x140] sm:$0xff]
  %v631 = vld [vmem:[%s1 + $0x148] sm:$0xff]
  %v632 = vld [vmem:[%s1 + $0x150] sm:$0xff]
  %v633 = vld [vmem:[%s1 + $0x158] sm:$0xff]
  %v634 = vld [vmem:[%s1 + $0x160] sm:$0xff]
  %v635 = vld [vmem:[%s1 + $0x168] sm:$0xff]
  %v636 = vld [vmem:[%s1 + $0x170] sm:$0xff]
  %v637 = vld [vmem:[%s1 + $0x178] sm:$0xff]
  %v638 = vld [vmem:[%s1 + $0x180] sm:$0xff]
  %v639 = vld [vmem:[%s1 + $0x188] sm:$0xff]
  %v640 = vld [vmem:[%s1 + $0x190] sm:$0xff]
  %v641 = vld [vmem:[%s1 + $0x198] sm:$0xff]
  %v642 = vld [vmem:[%s1 + $0x1a0] sm:$0xff]
  %v643 = vld [vmem:[%s1 + $0x1a8] sm:$0xff]
  %v644 = vld [vmem:[%s1 + $0x1b0] sm:$0xff]
  %v645 = vld [vmem:[%s1 + $0x1b8] sm:$0xff]
  %v646 = vld [vmem:[%s1 + $0x1c0] sm:$0xff]
  %v647 = vld [vmem:[%s1 + $0x1c8] sm:$0xff]
  %v648 = vld [vmem:[%s1 + $0x1d0] sm:$0xff]
  %v649 = vld [vmem:[%s1 + $0x1d8] sm:$0xff]
  %v650 = vld [vmem:[%s1 + $0x1e0] sm:$0xff]
  %v651 = vld [vmem:[%s1 + $0x1e8] sm:$0xff]
  %v652 = vld [vmem:[%s1 + $0x1f0] sm:$0xff]
  %v653 = vld [vmem:[%s1 + $0x1f8] sm:$0xff]
  %v654 = vld [vmem:[%s1 + $0x200] sm:$0xff]
  %v655 = vld [vmem:[%s1 + $0x208] sm:$0xff]
  %v656 = vld [vmem:[%s1 + $0x210] sm:$0xff]
  %v657 = vld [vmem:[%s1 + $0x218] sm:$0xff]
  %v658 = vld [vmem:[%s1 + $0x220] sm:$0xff]
  %v659 = vld [vmem:[%s1 + $0x228] sm:$0xff]
  %v660 = vld [vmem:[%s1 + $0x230] sm:$0xff]
  %v661 = vld [vmem:[%s1 + $0x238] sm:$0xff]
  %v662 = vld [vmem:[%s1 + $0x240] sm:$0xff]
  %v663 = vld [vmem:[%s1 + $0x248] sm:$0xff]
  %v664 = vld [vmem:[%s1 + $0x250] sm:$0xff]
  %v665 = vld [vmem:[%s1 + $0x258] sm:$0xff]
  %v666 = vld [vmem:[%s1 + $0x260] sm:$0xff]
  %v667 = vld [vmem:[%s1 + $0x268] sm:$0xff]
  %v668 = vld [vmem:[%s1 + $0x270] sm:$0xff]
  %v669 = vld [vmem:[%s1 + $0x278] sm:$0xff]
  %v670 = vld [vmem:[%s1 + $0x280] sm:$0xff]
  %v671 = vld [vmem:[%s1 + $0x288] sm:$0xff]
  %v672 = vld [vmem:[%s1 + $0x290] sm:$0xff]
  %v673 = vld [vmem:[%s1 + $0x298] sm:$0xff]
  %v674 = vld [vmem:[%s1 + $0x2a0] sm:$0xff]
  %v675 = vld [vmem:[%s1 + $0x2a8] sm:$0xff]
  %v676 = vld [vmem:[%s1 + $0x2b0] sm:$0xff]
  %v677 = vld [vmem:[%s1 + $0x2b8] sm:$0xff]
  %v678 = vld [vmem:[%s1 + $0x2c0] sm:$0xff]
  %v679 = vld [vmem:[%s1 + $0x2c8] sm:$0xff]
  %v680 = vld [vmem:[%s1 + $0x2d0] sm:$0xff]
  %v681 = vld [vmem:[%s1 + $0x2d8] sm:$0xff]
  %v682 = vld [vmem:[%s1 + $0x2e0] sm:$0xff]
  %v683 = vld [vmem:[%s1 + $0x2e8] sm:$0xff]
  %v684 = vld [vmem:[%s1 + $0x2f0] sm:$0xff]
  %v685 = vld [vmem:[%s1 + $0x2f8] sm:$0xff]
  %v686 = vld [vmem:[%s1 + $0x300] sm:$0xff]
  %v687 = vld [vmem:[%s1 + $0x308] sm:$0xff]
  %v688 = vld [vmem:[%s1 + $0x310] sm:$0xff]
  %v689 = vld [vmem:[%s1 + $0x318] sm:$0xff]
  %v690 = vld [vmem:[%s1 + $0x320] sm:$0xff]
  %v691 = vld [vmem:[%s1 + $0x328] sm:$0xff]
  %v692 = vld [vmem:[%s1 + $0x330] sm:$0xff]
  %v693 = vld [vmem:[%s1 + $0x338] sm:$0xff]
  %v694 = vld [vmem:[%s1 + $0x340] sm:$0xff]
  %v695 = vld [vmem:[%s1 + $0x348] sm:$0xff]
  %v696 = vld [vmem:[%s1 + $0x350] sm:$0xff]
  %v697 = vld [vmem:[%s1 + $0x358] sm:$0xff]
  %v698 = vld [vmem:[%s1 + $0x360] sm:$0xff]
  %v699 = vld [vmem:[%s1 + $0x368] sm:$0xff]
  %v700 = vld [vmem:[%s1 + $0x370] sm:$0xff]
  %v701 = vld [vmem:[%s1 + $0x378] sm:$0xff]
  %v702 = vld [vmem:[%s1 + $0x380] sm:$0xff]
  %v703 = vld [vmem:[%s1 + $0x388] sm:$0xff]
  %v704 = vld [vmem:[%s1 + $0x390] sm:$0xff]
  %v705 = vld [vmem:[%s1 + $0x398] sm:$0xff]
  %v706 = vld [vmem:[%s1 + $0x3a0] sm:$0xff]
  %v707 = vld [vmem:[%s1 + $0x3a8] sm:$0xff]
  %v708 = vld [vmem:[%s1 + $0x3b0] sm:$0xff]
  %v709 = vld [vmem:[%s1 + $0x3b8] sm:$0xff]
  %v710 = vld [vmem:[%s1 + $0x3c0] sm:$0xff]
  %v711 = vld [vmem:[%s1 + $0x3c8] sm:$0xff]
  %v712 = vld [vmem:[%s1 + $0x3d0] sm:$0xff]
  %v713 = vld [vmem:[%s1 + $0x3d8] sm:$0xff]
  %v714 = vld [vmem:[%s1 + $0x3e0] sm:$0xff]
  %v715 = vld [vmem:[%s1 + $0x3e8] sm:$0xff]
  %v716 = vld [vmem:[%s1 + $0x3f0] sm:$0xff]
  %v717 = vld [vmem:[%s1 + $0x3f8] sm:$0xff]
  %v718 = vld [vmem:[%s1 + $0x400] sm:$0xff]
  %v719 = vld [vmem:[%s1 + $0x408] sm:$0xff]
  %v720 = vld [vmem:[%s1 + $0x410] sm:$0xff]
  %v721 = vld [vmem:[%s1 + $0x418] sm:$0xff]
  %v722 = vld [vmem:[%s1 + $0x420] sm:$0xff]
  %v723 = vld [vmem:[%s1 + $0x428] sm:$0xff]
  %v724 = vld [vmem:[%s1 + $0x430] sm:$0xff]
  %v725 = vld [vmem:[%s1 + $0x438] sm:$0xff]
  %v726 = vld [vmem:[%s1 + $0x440] sm:$0xff]
  %v727 = vld [vmem:[%s1 + $0x448] sm:$0xff]
  %v728 = vld [vmem:[%s1 + $0x450] sm:$0xff]
  %v729 = vld [vmem:[%s1 + $0x458] sm:$0xff]
  %v730 = vld [vmem:[%s1 + $0x460] sm:$0xff]
  %v731 = vld [vmem:[%s1 + $0x468] sm:$0xff]
  %v732 = vld [vmem:[%s1 + $0x470] sm:$0xff]
  %v733 = vld [vmem:[%s1 + $0x478] sm:$0xff]
  %734 = vmatpush.msra.mxu0 %v605
  %735 = vmatpush.msra.mxu0 %v604
  %736 = vmatpush.msra.mxu0 %v603
  %737 = vmatpush.msra.mxu0 %v602
  %738 = vmatpush.msra.mxu0 %v601
  %739 = vmatpush.msra.mxu0 %v600
  %740 = vmatpush.msra.mxu0 %v599
  %741 = vmatpush.msra.mxu0 %v598
  %742 = vmatpush.msra.mxu0 %v597
  %743 = vmatpush.msra.mxu0 %v596
  %744 = vmatpush.msra.mxu0 %v595
  %745 = vmatpush.msra.mxu0 %v594
  %746 = vmatpush.msra.mxu0 %v593
  %747 = vmatpush.msra.mxu0 %v592
  %748 = vmatpush.msra.mxu0 %v591
  %749 = vmatpush.msra.mxu0 %v590
  %750 = vmatmul.f32.gmra.mxu0 %v14
  %v751 = vpop.f32.mrf.mxu0
  %v752 = vadd.f32 0.0, %v751
  %753 = vmatmul.f32.gmra.mxu0 %v23
  %v754 = vpop.f32.mrf.mxu0
  %v755 = vadd.f32 0.0, %v754
  %756 = vmatmul.f32.gmra.mxu0 %v32
  %v757 = vpop.f32.mrf.mxu0
  %v758 = vadd.f32 0.0, %v757
  %759 = vmatmul.f32.gmra.mxu0 %v41
  %v760 = vpop.f32.mrf.mxu0
  %v761 = vadd.f32 0.0, %v760
  %762 = vmatmul.f32.gmra.mxu0 %v50
  %v763 = vpop.f32.mrf.mxu0
  %v764 = vadd.f32 0.0, %v763
  %765 = vmatmul.f32.gmra.mxu0 %v59
  %v766 = vpop.f32.mrf.mxu0
  %v767 = vadd.f32 0.0, %v766
  %768 = vmatmul.f32.gmra.mxu0 %v68
  %v769 = vpop.f32.mrf.mxu0
  %v770 = vadd.f32 0.0, %v769
  %771 = vmatmul.f32.gmra.mxu0 %v77
  %v772 = vpop.f32.mrf.mxu0
  %v773 = vadd.f32 0.0, %v772
  %774 = vmatmul.f32.gmra.mxu0 %v86
  %v775 = vpop.f32.mrf.mxu0
  %v776 = vadd.f32 0.0, %v775
  %777 = vmatmul.f32.gmra.mxu0 %v95
  %v778 = vpop.f32.mrf.mxu0
  %v779 = vadd.f32 0.0, %v778
  %780 = vmatmul.f32.gmra.mxu0 %v104
  %v781 = vpop.f32.mrf.mxu0
  %v782 = vadd.f32 0.0, %v781
  %783 = vmatmul.f32.gmra.mxu0 %v113
  %v784 = vpop.f32.mrf.mxu0
  %v785 = vadd.f32 0.0, %v784
  %786 = vmatmul.f32.gmra.mxu0 %v122
  %v787 = vpop.f32.mrf.mxu0
  %v788 = vadd.f32 0.0, %v787
  %789 = vmatmul.f32.gmra.mxu0 %v131
  %v790 = vpop.f32.mrf.mxu0
  %v791 = vadd.f32 0.0, %v790
  %792 = vmatmul.f32.gmra.mxu0 %v140
  %v793 = vpop.f32.mrf.mxu0
  %v794 = vadd.f32 0.0, %v793
  %795 = vmatmul.f32.gmra.mxu0 %v149
  %v796 = vpop.f32.mrf.mxu0
  %v797 = vadd.f32 0.0, %v796
  %798 = vmatmul.f32.gmra.mxu0 %v158
  %v799 = vpop.f32.mrf.mxu0
  %v800 = vadd.f32 0.0, %v799
  %801 = vmatmul.f32.gmra.mxu0 %v167
  %v802 = vpop.f32.mrf.mxu0
  %v803 = vadd.f32 0.0, %v802
  %804 = vmatmul.f32.gmra.mxu0 %v176
  %v805 = vpop.f32.mrf.mxu0
  %v806 = vadd.f32 0.0, %v805
  %807 = vmatmul.f32.gmra.mxu0 %v185
  %v808 = vpop.f32.mrf.mxu0
  %v809 = vadd.f32 0.0, %v808
  %810 = vmatmul.f32.gmra.mxu0 %v194
  %v811 = vpop.f32.mrf.mxu0
  %v812 = vadd.f32 0.0, %v811
  %813 = vmatmul.f32.gmra.mxu0 %v203
  %v814 = vpop.f32.mrf.mxu0
  %v815 = vadd.f32 0.0, %v814
  %816 = vmatmul.f32.gmra.mxu0 %v212
  %v817 = vpop.f32.mrf.mxu0
  %v818 = vadd.f32 0.0, %v817
  %819 = vmatmul.f32.gmra.mxu0 %v221
  %v820 = vpop.f32.mrf.mxu0
  %v821 = vadd.f32 0.0, %v820
  %822 = vmatmul.f32.gmra.mxu0 %v230
  %v823 = vpop.f32.mrf.mxu0
  %v824 = vadd.f32 0.0, %v823
  %825 = vmatmul.f32.gmra.mxu0 %v239
  %v826 = vpop.f32.mrf.mxu0
  %v827 = vadd.f32 0.0, %v826
  %828 = vmatmul.f32.gmra.mxu0 %v248
  %v829 = vpop.f32.mrf.mxu0
  %v830 = vadd.f32 0.0, %v829
  %831 = vmatmul.f32.gmra.mxu0 %v257
  %v832 = vpop.f32.mrf.mxu0
  %v833 = vadd.f32 0.0, %v832
  %834 = vmatmul.f32.gmra.mxu0 %v266
  %v835 = vpop.f32.mrf.mxu0
  %v836 = vadd.f32 0.0, %v835
  %837 = vmatmul.f32.gmra.mxu0 %v275
  %v838 = vpop.f32.mrf.mxu0
  %v839 = vadd.f32 0.0, %v838
  %840 = vmatmul.f32.gmra.mxu0 %v284
  %v841 = vpop.f32.mrf.mxu0
  %v842 = vadd.f32 0.0, %v841
  %843 = vmatmul.f32.gmra.mxu0 %v293
  %v844 = vpop.f32.mrf.mxu0
  %v845 = vadd.f32 0.0, %v844
  %846 = vmatmul.f32.gmra.mxu0 %v302
  %v847 = vpop.f32.mrf.mxu0
  %v848 = vadd.f32 0.0, %v847
  %849 = vmatmul.f32.gmra.mxu0 %v311
  %v850 = vpop.f32.mrf.mxu0
  %v851 = vadd.f32 0.0, %v850
  %852 = vmatmul.f32.gmra.mxu0 %v320
  %v853 = vpop.f32.mrf.mxu0
  %v854 = vadd.f32 0.0, %v853
  %855 = vmatmul.f32.gmra.mxu0 %v329
  %v856 = vpop.f32.mrf.mxu0
  %v857 = vadd.f32 0.0, %v856
  %858 = vmatmul.f32.gmra.mxu0 %v338
  %v859 = vpop.f32.mrf.mxu0
  %v860 = vadd.f32 0.0, %v859
  %861 = vmatmul.f32.gmra.mxu0 %v347
  %v862 = vpop.f32.mrf.mxu0
  %v863 = vadd.f32 0.0, %v862
  %864 = vmatmul.f32.gmra.mxu0 %v356
  %v865 = vpop.f32.mrf.mxu0
  %v866 = vadd.f32 0.0, %v865
  %867 = vmatmul.f32.gmra.mxu0 %v365
  %v868 = vpop.f32.mrf.mxu0
  %v869 = vadd.f32 0.0, %v868
  %870 = vmatmul.f32.gmra.mxu0 %v374
  %v871 = vpop.f32.mrf.mxu0
  %v872 = vadd.f32 0.0, %v871
  %873 = vmatmul.f32.gmra.mxu0 %v383
  %v874 = vpop.f32.mrf.mxu0
  %v875 = vadd.f32 0.0, %v874
  %876 = vmatmul.f32.gmra.mxu0 %v392
  %v877 = vpop.f32.mrf.mxu0
  %v878 = vadd.f32 0.0, %v877
  %879 = vmatmul.f32.gmra.mxu0 %v401
  %v880 = vpop.f32.mrf.mxu0
  %v881 = vadd.f32 0.0, %v880
  %882 = vmatmul.f32.gmra.mxu0 %v410
  %v883 = vpop.f32.mrf.mxu0
  %v884 = vadd.f32 0.0, %v883
  %885 = vmatmul.f32.gmra.mxu0 %v419
  %v886 = vpop.f32.mrf.mxu0
  %v887 = vadd.f32 0.0, %v886
  %888 = vmatmul.f32.gmra.mxu0 %v428
  %v889 = vpop.f32.mrf.mxu0
  %v890 = vadd.f32 0.0, %v889
  %891 = vmatmul.f32.gmra.mxu0 %v437
  %v892 = vpop.f32.mrf.mxu0
  %v893 = vadd.f32 0.0, %v892
  %894 = vmatmul.f32.gmra.mxu0 %v446
  %v895 = vpop.f32.mrf.mxu0
  %v896 = vadd.f32 0.0, %v895
  %897 = vmatmul.f32.gmra.mxu0 %v455
  %v898 = vpop.f32.mrf.mxu0
  %v899 = vadd.f32 0.0, %v898
  %900 = vmatmul.f32.gmra.mxu0 %v464
  %v901 = vpop.f32.mrf.mxu0
  %v902 = vadd.f32 0.0, %v901
  %903 = vmatmul.f32.gmra.mxu0 %v473
  %v904 = vpop.f32.mrf.mxu0
  %v905 = vadd.f32 0.0, %v904
  %906 = vmatmul.f32.gmra.mxu0 %v482
  %v907 = vpop.f32.mrf.mxu0
  %v908 = vadd.f32 0.0, %v907
  %909 = vmatmul.f32.gmra.mxu0 %v491
  %v910 = vpop.f32.mrf.mxu0
  %v911 = vadd.f32 0.0, %v910
  %912 = vmatmul.f32.gmra.mxu0 %v500
  %v913 = vpop.f32.mrf.mxu0
  %v914 = vadd.f32 0.0, %v913
  %915 = vmatmul.f32.gmra.mxu0 %v509
  %v916 = vpop.f32.mrf.mxu0
  %v917 = vadd.f32 0.0, %v916
  %918 = vmatmul.f32.gmra.mxu0 %v518
  %v919 = vpop.f32.mrf.mxu0
  %v920 = vadd.f32 0.0, %v919
  %921 = vmatmul.f32.gmra.mxu0 %v527
  %v922 = vpop.f32.mrf.mxu0
  %v923 = vadd.f32 0.0, %v922
  %924 = vmatmul.f32.gmra.mxu0 %v536
  %v925 = vpop.f32.mrf.mxu0
  %v926 = vadd.f32 0.0, %v925
  %927 = vmatmul.f32.gmra.mxu0 %v545
  %v928 = vpop.f32.mrf.mxu0
  %v929 = vadd.f32 0.0, %v928
  %930 = vmatmul.f32.gmra.mxu0 %v554
  %v931 = vpop.f32.mrf.mxu0
  %v932 = vadd.f32 0.0, %v931
  %933 = vmatmul.f32.gmra.mxu0 %v563
  %v934 = vpop.f32.mrf.mxu0
  %v935 = vadd.f32 0.0, %v934
  %936 = vmatmul.f32.gmra.mxu0 %v572
  %v937 = vpop.f32.mrf.mxu0
  %v938 = vadd.f32 0.0, %v937
  %939 = vmatmul.f32.gmra.mxu0 %v581
  %v940 = vpop.f32.mrf.mxu0
  %v941 = vadd.f32 0.0, %v940
  %942 = vdwg.mxu0
  %943 = vmatpush.msra.mxu0 %v621
  %944 = vmatpush.msra.mxu0 %v620
  %945 = vmatpush.msra.mxu0 %v619
  %946 = vmatpush.msra.mxu0 %v618
  %947 = vmatpush.msra.mxu0 %v617
  %948 = vmatpush.msra.mxu0 %v616
  %949 = vmatpush.msra.mxu0 %v615
  %950 = vmatpush.msra.mxu0 %v614
  %951 = vmatpush.msra.mxu0 %v613
  %952 = vmatpush.msra.mxu0 %v612
  %953 = vmatpush.msra.mxu0 %v611
  %954 = vmatpush.msra.mxu0 %v610
  %955 = vmatpush.msra.mxu0 %v609
  %956 = vmatpush.msra.mxu0 %v608
  %957 = vmatpush.msra.mxu0 %v607
  %958 = vmatpush.msra.mxu0 %v606
  %959 = vmatmul.f32.gmra.mxu0 %v15
  %v960 = vpop.f32.mrf.mxu0
  %v961 = vadd.f32 %v752, %v960
  %962 = vmatmul.f32.gmra.mxu0 %v24
  %v963 = vpop.f32.mrf.mxu0
  %v964 = vadd.f32 %v755, %v963
  %965 = vmatmul.f32.gmra.mxu0 %v33
  %v966 = vpop.f32.mrf.mxu0
  %v967 = vadd.f32 %v758, %v966
  %968 = vmatmul.f32.gmra.mxu0 %v42
  %v969 = vpop.f32.mrf.mxu0
  %v970 = vadd.f32 %v761, %v969
  %971 = vmatmul.f32.gmra.mxu0 %v51
  %v972 = vpop.f32.mrf.mxu0
  %v973 = vadd.f32 %v764, %v972
  %974 = vmatmul.f32.gmra.mxu0 %v60
  %v975 = vpop.f32.mrf.mxu0
  %v976 = vadd.f32 %v767, %v975
  %977 = vmatmul.f32.gmra.mxu0 %v69
  %v978 = vpop.f32.mrf.mxu0
  %v979 = vadd.f32 %v770, %v978
  %980 = vmatmul.f32.gmra.mxu0 %v78
  %v981 = vpop.f32.mrf.mxu0
  %v982 = vadd.f32 %v773, %v981
  %983 = vmatmul.f32.gmra.mxu0 %v87
  %v984 = vpop.f32.mrf.mxu0
  %v985 = vadd.f32 %v776, %v984
  %986 = vmatmul.f32.gmra.mxu0 %v96
  %v987 = vpop.f32.mrf.mxu0
  %v988 = vadd.f32 %v779, %v987
  %989 = vmatmul.f32.gmra.mxu0 %v105
  %v990 = vpop.f32.mrf.mxu0
  %v991 = vadd.f32 %v782, %v990
  %992 = vmatmul.f32.gmra.mxu0 %v114
  %v993 = vpop.f32.mrf.mxu0
  %v994 = vadd.f32 %v785, %v993
  %995 = vmatmul.f32.gmra.mxu0 %v123
  %v996 = vpop.f32.mrf.mxu0
  %v997 = vadd.f32 %v788, %v996
  %998 = vmatmul.f32.gmra.mxu0 %v132
  %v999 = vpop.f32.mrf.mxu0
  %v1000 = vadd.f32 %v791, %v999
  %1001 = vmatmul.f32.gmra.mxu0 %v141
  %v1002 = vpop.f32.mrf.mxu0
  %v1003 = vadd.f32 %v794, %v1002
  %1004 = vmatmul.f32.gmra.mxu0 %v150
  %v1005 = vpop.f32.mrf.mxu0
  %v1006 = vadd.f32 %v797, %v1005
  %1007 = vmatmul.f32.gmra.mxu0 %v159
  %v1008 = vpop.f32.mrf.mxu0
  %v1009 = vadd.f32 %v800, %v1008
  %1010 = vmatmul.f32.gmra.mxu0 %v168
  %v1011 = vpop.f32.mrf.mxu0
  %v1012 = vadd.f32 %v803, %v1011
  %1013 = vmatmul.f32.gmra.mxu0 %v177
  %v1014 = vpop.f32.mrf.mxu0
  %v1015 = vadd.f32 %v806, %v1014
  %1016 = vmatmul.f32.gmra.mxu0 %v186
  %v1017 = vpop.f32.mrf.mxu0
  %v1018 = vadd.f32 %v809, %v1017
  %1019 = vmatmul.f32.gmra.mxu0 %v195
  %v1020 = vpop.f32.mrf.mxu0
  %v1021 = vadd.f32 %v812, %v1020
  %1022 = vmatmul.f32.gmra.mxu0 %v204
  %v1023 = vpop.f32.mrf.mxu0
  %v1024 = vadd.f32 %v815, %v1023
  %1025 = vmatmul.f32.gmra.mxu0 %v213
  %v1026 = vpop.f32.mrf.mxu0
  %v1027 = vadd.f32 %v818, %v1026
  %1028 = vmatmul.f32.gmra.mxu0 %v222
  %v1029 = vpop.f32.mrf.mxu0
  %v1030 = vadd.f32 %v821, %v1029
  %1031 = vmatmul.f32.gmra.mxu0 %v231
  %v1032 = vpop.f32.mrf.mxu0
  %v1033 = vadd.f32 %v824, %v1032
  %1034 = vmatmul.f32.gmra.mxu0 %v240
  %v1035 = vpop.f32.mrf.mxu0
  %v1036 = vadd.f32 %v827, %v1035
  %1037 = vmatmul.f32.gmra.mxu0 %v249
  %v1038 = vpop.f32.mrf.mxu0
  %v1039 = vadd.f32 %v830, %v1038
  %1040 = vmatmul.f32.gmra.mxu0 %v258
  %v1041 = vpop.f32.mrf.mxu0
  %v1042 = vadd.f32 %v833, %v1041
  %1043 = vmatmul.f32.gmra.mxu0 %v267
  %v1044 = vpop.f32.mrf.mxu0
  %v1045 = vadd.f32 %v836, %v1044
  %1046 = vmatmul.f32.gmra.mxu0 %v276
  %v1047 = vpop.f32.mrf.mxu0
  %v1048 = vadd.f32 %v839, %v1047
  %1049 = vmatmul.f32.gmra.mxu0 %v285
  %v1050 = vpop.f32.mrf.mxu0
  %v1051 = vadd.f32 %v842, %v1050
  %1052 = vmatmul.f32.gmra.mxu0 %v294
  %v1053 = vpop.f32.mrf.mxu0
  %v1054 = vadd.f32 %v845, %v1053
  %1055 = vmatmul.f32.gmra.mxu0 %v303
  %v1056 = vpop.f32.mrf.mxu0
  %v1057 = vadd.f32 %v848, %v1056
  %1058 = vmatmul.f32.gmra.mxu0 %v312
  %v1059 = vpop.f32.mrf.mxu0
  %v1060 = vadd.f32 %v851, %v1059
  %1061 = vmatmul.f32.gmra.mxu0 %v321
  %v1062 = vpop.f32.mrf.mxu0
  %v1063 = vadd.f32 %v854, %v1062
  %1064 = vmatmul.f32.gmra.mxu0 %v330
  %v1065 = vpop.f32.mrf.mxu0
  %v1066 = vadd.f32 %v857, %v1065
  %1067 = vmatmul.f32.gmra.mxu0 %v339
  %v1068 = vpop.f32.mrf.mxu0
  %v1069 = vadd.f32 %v860, %v1068
  %1070 = vmatmul.f32.gmra.mxu0 %v348
  %v1071 = vpop.f32.mrf.mxu0
  %v1072 = vadd.f32 %v863, %v1071
  %1073 = vmatmul.f32.gmra.mxu0 %v357
  %v1074 = vpop.f32.mrf.mxu0
  %v1075 = vadd.f32 %v866, %v1074
  %1076 = vmatmul.f32.gmra.mxu0 %v366
  %v1077 = vpop.f32.mrf.mxu0
  %v1078 = vadd.f32 %v869, %v1077
  %1079 = vmatmul.f32.gmra.mxu0 %v375
  %v1080 = vpop.f32.mrf.mxu0
  %v1081 = vadd.f32 %v872, %v1080
  %1082 = vmatmul.f32.gmra.mxu0 %v384
  %v1083 = vpop.f32.mrf.mxu0
  %v1084 = vadd.f32 %v875, %v1083
  %1085 = vmatmul.f32.gmra.mxu0 %v393
  %v1086 = vpop.f32.mrf.mxu0
  %v1087 = vadd.f32 %v878, %v1086
  %1088 = vmatmul.f32.gmra.mxu0 %v402
  %v1089 = vpop.f32.mrf.mxu0
  %v1090 = vadd.f32 %v881, %v1089
  %1091 = vmatmul.f32.gmra.mxu0 %v411
  %v1092 = vpop.f32.mrf.mxu0
  %v1093 = vadd.f32 %v884, %v1092
  %1094 = vmatmul.f32.gmra.mxu0 %v420
  %v1095 = vpop.f32.mrf.mxu0
  %v1096 = vadd.f32 %v887, %v1095
  %1097 = vmatmul.f32.gmra.mxu0 %v429
  %v1098 = vpop.f32.mrf.mxu0
  %v1099 = vadd.f32 %v890, %v1098
  %1100 = vmatmul.f32.gmra.mxu0 %v438
  %v1101 = vpop.f32.mrf.mxu0
  %v1102 = vadd.f32 %v893, %v1101
  %1103 = vmatmul.f32.gmra.mxu0 %v447
  %v1104 = vpop.f32.mrf.mxu0
  %v1105 = vadd.f32 %v896, %v1104
  %1106 = vmatmul.f32.gmra.mxu0 %v456
  %v1107 = vpop.f32.mrf.mxu0
  %v1108 = vadd.f32 %v899, %v1107
  %1109 = vmatmul.f32.gmra.mxu0 %v465
  %v1110 = vpop.f32.mrf.mxu0
  %v1111 = vadd.f32 %v902, %v1110
  %1112 = vmatmul.f32.gmra.mxu0 %v474
  %v1113 = vpop.f32.mrf.mxu0
  %v1114 = vadd.f32 %v905, %v1113
  %1115 = vmatmul.f32.gmra.mxu0 %v483
  %v1116 = vpop.f32.mrf.mxu0
  %v1117 = vadd.f32 %v908, %v1116
  %1118 = vmatmul.f32.gmra.mxu0 %v492
  %v1119 = vpop.f32.mrf.mxu0
  %v1120 = vadd.f32 %v911, %v1119
  %1121 = vmatmul.f32.gmra.mxu0 %v501
  %v1122 = vpop.f32.mrf.mxu0
  %v1123 = vadd.f32 %v914, %v1122
  %1124 = vmatmul.f32.gmra.mxu0 %v510
  %v1125 = vpop.f32.mrf.mxu0
  %v1126 = vadd.f32 %v917, %v1125
  %1127 = vmatmul.f32.gmra.mxu0 %v519
  %v1128 = vpop.f32.mrf.mxu0
  %v1129 = vadd.f32 %v920, %v1128
  %1130 = vmatmul.f32.gmra.mxu0 %v528
  %v1131 = vpop.f32.mrf.mxu0
  %v1132 = vadd.f32 %v923, %v1131
  %1133 = vmatmul.f32.gmra.mxu0 %v537
  %v1134 = vpop.f32.mrf.mxu0
  %v1135 = vadd.f32 %v926, %v1134
  %1136 = vmatmul.f32.gmra.mxu0 %v546
  %v1137 = vpop.f32.mrf.mxu0
  %v1138 = vadd.f32 %v929, %v1137
  %1139 = vmatmul.f32.gmra.mxu0 %v555
  %v1140 = vpop.f32.mrf.mxu0
  %v1141 = vadd.f32 %v932, %v1140
  %1142 = vmatmul.f32.gmra.mxu0 %v564
  %v1143 = vpop.f32.mrf.mxu0
  %v1144 = vadd.f32 %v935, %v1143
  %1145 = vmatmul.f32.gmra.mxu0 %v573
  %v1146 = vpop.f32.mrf.mxu0
  %v1147 = vadd.f32 %v938, %v1146
  %1148 = vmatmul.f32.gmra.mxu0 %v582
  %v1149 = vpop.f32.mrf.mxu0
  %v1150 = vadd.f32 %v941, %v1149
  %1151 = vdwg.mxu0
  %1152 = vmatpush.msra.mxu0 %v637
  %1153 = vmatpush.msra.mxu0 %v636
  %1154 = vmatpush.msra.mxu0 %v635
  %1155 = vmatpush.msra.mxu0 %v634
  %1156 = vmatpush.msra.mxu0 %v633
  %1157 = vmatpush.msra.mxu0 %v632
  %1158 = vmatpush.msra.mxu0 %v631
  %1159 = vmatpush.msra.mxu0 %v630
  %1160 = vmatpush.msra.mxu0 %v629
  %1161 = vmatpush.msra.mxu0 %v628
  %1162 = vmatpush.msra.mxu0 %v627
  %1163 = vmatpush.msra.mxu0 %v626
  %1164 = vmatpush.msra.mxu0 %v625
  %1165 = vmatpush.msra.mxu0 %v624
  %1166 = vmatpush.msra.mxu0 %v623
  %1167 = vmatpush.msra.mxu0 %v622
  %1168 = vmatmul.f32.gmra.mxu0 %v16
  %v1169 = vpop.f32.mrf.mxu0
  %v1170 = vadd.f32 %v961, %v1169
  %1171 = vmatmul.f32.gmra.mxu0 %v25
  %v1172 = vpop.f32.mrf.mxu0
  %v1173 = vadd.f32 %v964, %v1172
  %1174 = vmatmul.f32.gmra.mxu0 %v34
  %v1175 = vpop.f32.mrf.mxu0
  %v1176 = vadd.f32 %v967, %v1175
  %1177 = vmatmul.f32.gmra.mxu0 %v43
  %v1178 = vpop.f32.mrf.mxu0
  %v1179 = vadd.f32 %v970, %v1178
  %1180 = vmatmul.f32.gmra.mxu0 %v52
  %v1181 = vpop.f32.mrf.mxu0
  %v1182 = vadd.f32 %v973, %v1181
  %1183 = vmatmul.f32.gmra.mxu0 %v61
  %v1184 = vpop.f32.mrf.mxu0
  %v1185 = vadd.f32 %v976, %v1184
  %1186 = vmatmul.f32.gmra.mxu0 %v70
  %v1187 = vpop.f32.mrf.mxu0
  %v1188 = vadd.f32 %v979, %v1187
  %1189 = vmatmul.f32.gmra.mxu0 %v79
  %v1190 = vpop.f32.mrf.mxu0
  %v1191 = vadd.f32 %v982, %v1190
  %1192 = vmatmul.f32.gmra.mxu0 %v88
  %v1193 = vpop.f32.mrf.mxu0
  %v1194 = vadd.f32 %v985, %v1193
  %1195 = vmatmul.f32.gmra.mxu0 %v97
  %v1196 = vpop.f32.mrf.mxu0
  %v1197 = vadd.f32 %v988, %v1196
  %1198 = vmatmul.f32.gmra.mxu0 %v106
  %v1199 = vpop.f32.mrf.mxu0
  %v1200 = vadd.f32 %v991, %v1199
  %1201 = vmatmul.f32.gmra.mxu0 %v115
  %v1202 = vpop.f32.mrf.mxu0
  %v1203 = vadd.f32 %v994, %v1202
  %1204 = vmatmul.f32.gmra.mxu0 %v124
  %v1205 = vpop.f32.mrf.mxu0
  %v1206 = vadd.f32 %v997, %v1205
  %1207 = vmatmul.f32.gmra.mxu0 %v133
  %v1208 = vpop.f32.mrf.mxu0
  %v1209 = vadd.f32 %v1000, %v1208
  %1210 = vmatmul.f32.gmra.mxu0 %v142
  %v1211 = vpop.f32.mrf.mxu0
  %v1212 = vadd.f32 %v1003, %v1211
  %1213 = vmatmul.f32.gmra.mxu0 %v151
  %v1214 = vpop.f32.mrf.mxu0
  %v1215 = vadd.f32 %v1006, %v1214
  %1216 = vmatmul.f32.gmra.mxu0 %v160
  %v1217 = vpop.f32.mrf.mxu0
  %v1218 = vadd.f32 %v1009, %v1217
  %1219 = vmatmul.f32.gmra.mxu0 %v169
  %v1220 = vpop.f32.mrf.mxu0
  %v1221 = vadd.f32 %v1012, %v1220
  %1222 = vmatmul.f32.gmra.mxu0 %v178
  %v1223 = vpop.f32.mrf.mxu0
  %v1224 = vadd.f32 %v1015, %v1223
  %1225 = vmatmul.f32.gmra.mxu0 %v187
  %v1226 = vpop.f32.mrf.mxu0
  %v1227 = vadd.f32 %v1018, %v1226
  %1228 = vmatmul.f32.gmra.mxu0 %v196
  %v1229 = vpop.f32.mrf.mxu0
  %v1230 = vadd.f32 %v1021, %v1229
  %1231 = vmatmul.f32.gmra.mxu0 %v205
  %v1232 = vpop.f32.mrf.mxu0
  %v1233 = vadd.f32 %v1024, %v1232
  %1234 = vmatmul.f32.gmra.mxu0 %v214
  %v1235 = vpop.f32.mrf.mxu0
  %v1236 = vadd.f32 %v1027, %v1235
  %1237 = vmatmul.f32.gmra.mxu0 %v223
  %v1238 = vpop.f32.mrf.mxu0
  %v1239 = vadd.f32 %v1030, %v1238
  %1240 = vmatmul.f32.gmra.mxu0 %v232
  %v1241 = vpop.f32.mrf.mxu0
  %v1242 = vadd.f32 %v1033, %v1241
  %1243 = vmatmul.f32.gmra.mxu0 %v241
  %v1244 = vpop.f32.mrf.mxu0
  %v1245 = vadd.f32 %v1036, %v1244
  %1246 = vmatmul.f32.gmra.mxu0 %v250
  %v1247 = vpop.f32.mrf.mxu0
  %v1248 = vadd.f32 %v1039, %v1247
  %1249 = vmatmul.f32.gmra.mxu0 %v259
  %v1250 = vpop.f32.mrf.mxu0
  %v1251 = vadd.f32 %v1042, %v1250
  %1252 = vmatmul.f32.gmra.mxu0 %v268
  %v1253 = vpop.f32.mrf.mxu0
  %v1254 = vadd.f32 %v1045, %v1253
  %1255 = vmatmul.f32.gmra.mxu0 %v277
  %v1256 = vpop.f32.mrf.mxu0
  %v1257 = vadd.f32 %v1048, %v1256
  %1258 = vmatmul.f32.gmra.mxu0 %v286
  %v1259 = vpop.f32.mrf.mxu0
  %v1260 = vadd.f32 %v1051, %v1259
  %1261 = vmatmul.f32.gmra.mxu0 %v295
  %v1262 = vpop.f32.mrf.mxu0
  %v1263 = vadd.f32 %v1054, %v1262
  %1264 = vmatmul.f32.gmra.mxu0 %v304
  %v1265 = vpop.f32.mrf.mxu0
  %v1266 = vadd.f32 %v1057, %v1265
  %1267 = vmatmul.f32.gmra.mxu0 %v313
  %v1268 = vpop.f32.mrf.mxu0
  %v1269 = vadd.f32 %v1060, %v1268
  %1270 = vmatmul.f32.gmra.mxu0 %v322
  %v1271 = vpop.f32.mrf.mxu0
  %v1272 = vadd.f32 %v1063, %v1271
  %1273 = vmatmul.f32.gmra.mxu0 %v331
  %v1274 = vpop.f32.mrf.mxu0
  %v1275 = vadd.f32 %v1066, %v1274
  %1276 = vmatmul.f32.gmra.mxu0 %v340
  %v1277 = vpop.f32.mrf.mxu0
  %v1278 = vadd.f32 %v1069, %v1277
  %1279 = vmatmul.f32.gmra.mxu0 %v349
  %v1280 = vpop.f32.mrf.mxu0
  %v1281 = vadd.f32 %v1072, %v1280
  %1282 = vmatmul.f32.gmra.mxu0 %v358
  %v1283 = vpop.f32.mrf.mxu0
  %v1284 = vadd.f32 %v1075, %v1283
  %1285 = vmatmul.f32.gmra.mxu0 %v367
  %v1286 = vpop.f32.mrf.mxu0
  %v1287 = vadd.f32 %v1078, %v1286
  %1288 = vmatmul.f32.gmra.mxu0 %v376
  %v1289 = vpop.f32.mrf.mxu0
  %v1290 = vadd.f32 %v1081, %v1289
  %1291 = vmatmul.f32.gmra.mxu0 %v385
  %v1292 = vpop.f32.mrf.mxu0
  %v1293 = vadd.f32 %v1084, %v1292
  %1294 = vmatmul.f32.gmra.mxu0 %v394
  %v1295 = vpop.f32.mrf.mxu0
  %v1296 = vadd.f32 %v1087, %v1295
  %1297 = vmatmul.f32.gmra.mxu0 %v403
  %v1298 = vpop.f32.mrf.mxu0
  %v1299 = vadd.f32 %v1090, %v1298
  %1300 = vmatmul.f32.gmra.mxu0 %v412
  %v1301 = vpop.f32.mrf.mxu0
  %v1302 = vadd.f32 %v1093, %v1301
  %1303 = vmatmul.f32.gmra.mxu0 %v421
  %v1304 = vpop.f32.mrf.mxu0
  %v1305 = vadd.f32 %v1096, %v1304
  %1306 = vmatmul.f32.gmra.mxu0 %v430
  %v1307 = vpop.f32.mrf.mxu0
  %v1308 = vadd.f32 %v1099, %v1307
  %1309 = vmatmul.f32.gmra.mxu0 %v439
  %v1310 = vpop.f32.mrf.mxu0
  %v1311 = vadd.f32 %v1102, %v1310
  %1312 = vmatmul.f32.gmra.mxu0 %v448
  %v1313 = vpop.f32.mrf.mxu0
  %v1314 = vadd.f32 %v1105, %v1313
  %1315 = vmatmul.f32.gmra.mxu0 %v457
  %v1316 = vpop.f32.mrf.mxu0
  %v1317 = vadd.f32 %v1108, %v1316
  %1318 = vmatmul.f32.gmra.mxu0 %v466
  %v1319 = vpop.f32.mrf.mxu0
  %v1320 = vadd.f32 %v1111, %v1319
  %1321 = vmatmul.f32.gmra.mxu0 %v475
  %v1322 = vpop.f32.mrf.mxu0
  %v1323 = vadd.f32 %v1114, %v1322
  %1324 = vmatmul.f32.gmra.mxu0 %v484
  %v1325 = vpop.f32.mrf.mxu0
  %v1326 = vadd.f32 %v1117, %v1325
  %1327 = vmatmul.f32.gmra.mxu0 %v493
  %v1328 = vpop.f32.mrf.mxu0
  %v1329 = vadd.f32 %v1120, %v1328
  %1330 = vmatmul.f32.gmra.mxu0 %v502
  %v1331 = vpop.f32.mrf.mxu0
  %v1332 = vadd.f32 %v1123, %v1331
  %1333 = vmatmul.f32.gmra.mxu0 %v511
  %v1334 = vpop.f32.mrf.mxu0
  %v1335 = vadd.f32 %v1126, %v1334
  %1336 = vmatmul.f32.gmra.mxu0 %v520
  %v1337 = vpop.f32.mrf.mxu0
  %v1338 = vadd.f32 %v1129, %v1337
  %1339 = vmatmul.f32.gmra.mxu0 %v529
  %v1340 = vpop.f32.mrf.mxu0
  %v1341 = vadd.f32 %v1132, %v1340
  %1342 = vmatmul.f32.gmra.mxu0 %v538
  %v1343 = vpop.f32.mrf.mxu0
  %v1344 = vadd.f32 %v1135, %v1343
  %1345 = vmatmul.f32.gmra.mxu0 %v547
  %v1346 = vpop.f32.mrf.mxu0
  %v1347 = vadd.f32 %v1138, %v1346
  %1348 = vmatmul.f32.gmra.mxu0 %v556
  %v1349 = vpop.f32.mrf.mxu0
  %v1350 = vadd.f32 %v1141, %v1349
  %1351 = vmatmul.f32.gmra.mxu0 %v565
  %v1352 = vpop.f32.mrf.mxu0
  %v1353 = vadd.f32 %v1144, %v1352
  %1354 = vmatmul.f32.gmra.mxu0 %v574
  %v1355 = vpop.f32.mrf.mxu0
  %v1356 = vadd.f32 %v1147, %v1355
  %1357 = vmatmul.f32.gmra.mxu0 %v583
  %v1358 = vpop.f32.mrf.mxu0
  %v1359 = vadd.f32 %v1150, %v1358
  %1360 = vdwg.mxu0
  %1361 = vmatpush.msra.mxu0 %v653
  %1362 = vmatpush.msra.mxu0 %v652
  %1363 = vmatpush.msra.mxu0 %v651
  %1364 = vmatpush.msra.mxu0 %v650
  %1365 = vmatpush.msra.mxu0 %v649
  %1366 = vmatpush.msra.mxu0 %v648
  %1367 = vmatpush.msra.mxu0 %v647
  %1368 = vmatpush.msra.mxu0 %v646
  %1369 = vmatpush.msra.mxu0 %v645
  %1370 = vmatpush.msra.mxu0 %v644
  %1371 = vmatpush.msra.mxu0 %v643
  %1372 = vmatpush.msra.mxu0 %v642
  %1373 = vmatpush.msra.mxu0 %v641
  %1374 = vmatpush.msra.mxu0 %v640
  %1375 = vmatpush.msra.mxu0 %v639
  %1376 = vmatpush.msra.mxu0 %v638
  %1377 = vmatmul.f32.gmra.mxu0 %v17
  %v1378 = vpop.f32.mrf.mxu0
  %v1379 = vadd.f32 %v1170, %v1378
  %1380 = vmatmul.f32.gmra.mxu0 %v26
  %v1381 = vpop.f32.mrf.mxu0
  %v1382 = vadd.f32 %v1173, %v1381
  %1383 = vmatmul.f32.gmra.mxu0 %v35
  %v1384 = vpop.f32.mrf.mxu0
  %v1385 = vadd.f32 %v1176, %v1384
  %1386 = vmatmul.f32.gmra.mxu0 %v44
  %v1387 = vpop.f32.mrf.mxu0
  %v1388 = vadd.f32 %v1179, %v1387
  %1389 = vmatmul.f32.gmra.mxu0 %v53
  %v1390 = vpop.f32.mrf.mxu0
  %v1391 = vadd.f32 %v1182, %v1390
  %1392 = vmatmul.f32.gmra.mxu0 %v62
  %v1393 = vpop.f32.mrf.mxu0
  %v1394 = vadd.f32 %v1185, %v1393
  %1395 = vmatmul.f32.gmra.mxu0 %v71
  %v1396 = vpop.f32.mrf.mxu0
  %v1397 = vadd.f32 %v1188, %v1396
  %1398 = vmatmul.f32.gmra.mxu0 %v80
  %v1399 = vpop.f32.mrf.mxu0
  %v1400 = vadd.f32 %v1191, %v1399
  %1401 = vmatmul.f32.gmra.mxu0 %v89
  %v1402 = vpop.f32.mrf.mxu0
  %v1403 = vadd.f32 %v1194, %v1402
  %1404 = vmatmul.f32.gmra.mxu0 %v98
  %v1405 = vpop.f32.mrf.mxu0
  %v1406 = vadd.f32 %v1197, %v1405
  %1407 = vmatmul.f32.gmra.mxu0 %v107
  %v1408 = vpop.f32.mrf.mxu0
  %v1409 = vadd.f32 %v1200, %v1408
  %1410 = vmatmul.f32.gmra.mxu0 %v116
  %v1411 = vpop.f32.mrf.mxu0
  %v1412 = vadd.f32 %v1203, %v1411
  %1413 = vmatmul.f32.gmra.mxu0 %v125
  %v1414 = vpop.f32.mrf.mxu0
  %v1415 = vadd.f32 %v1206, %v1414
  %1416 = vmatmul.f32.gmra.mxu0 %v134
  %v1417 = vpop.f32.mrf.mxu0
  %v1418 = vadd.f32 %v1209, %v1417
  %1419 = vmatmul.f32.gmra.mxu0 %v143
  %v1420 = vpop.f32.mrf.mxu0
  %v1421 = vadd.f32 %v1212, %v1420
  %1422 = vmatmul.f32.gmra.mxu0 %v152
  %v1423 = vpop.f32.mrf.mxu0
  %v1424 = vadd.f32 %v1215, %v1423
  %1425 = vmatmul.f32.gmra.mxu0 %v161
  %v1426 = vpop.f32.mrf.mxu0
  %v1427 = vadd.f32 %v1218, %v1426
  %1428 = vmatmul.f32.gmra.mxu0 %v170
  %v1429 = vpop.f32.mrf.mxu0
  %v1430 = vadd.f32 %v1221, %v1429
  %1431 = vmatmul.f32.gmra.mxu0 %v179
  %v1432 = vpop.f32.mrf.mxu0
  %v1433 = vadd.f32 %v1224, %v1432
  %1434 = vmatmul.f32.gmra.mxu0 %v188
  %v1435 = vpop.f32.mrf.mxu0
  %v1436 = vadd.f32 %v1227, %v1435
  %1437 = vmatmul.f32.gmra.mxu0 %v197
  %v1438 = vpop.f32.mrf.mxu0
  %v1439 = vadd.f32 %v1230, %v1438
  %1440 = vmatmul.f32.gmra.mxu0 %v206
  %v1441 = vpop.f32.mrf.mxu0
  %v1442 = vadd.f32 %v1233, %v1441
  %1443 = vmatmul.f32.gmra.mxu0 %v215
  %v1444 = vpop.f32.mrf.mxu0
  %v1445 = vadd.f32 %v1236, %v1444
  %1446 = vmatmul.f32.gmra.mxu0 %v224
  %v1447 = vpop.f32.mrf.mxu0
  %v1448 = vadd.f32 %v1239, %v1447
  %1449 = vmatmul.f32.gmra.mxu0 %v233
  %v1450 = vpop.f32.mrf.mxu0
  %v1451 = vadd.f32 %v1242, %v1450
  %1452 = vmatmul.f32.gmra.mxu0 %v242
  %v1453 = vpop.f32.mrf.mxu0
  %v1454 = vadd.f32 %v1245, %v1453
  %1455 = vmatmul.f32.gmra.mxu0 %v251
  %v1456 = vpop.f32.mrf.mxu0
  %v1457 = vadd.f32 %v1248, %v1456
  %1458 = vmatmul.f32.gmra.mxu0 %v260
  %v1459 = vpop.f32.mrf.mxu0
  %v1460 = vadd.f32 %v1251, %v1459
  %1461 = vmatmul.f32.gmra.mxu0 %v269
  %v1462 = vpop.f32.mrf.mxu0
  %v1463 = vadd.f32 %v1254, %v1462
  %1464 = vmatmul.f32.gmra.mxu0 %v278
  %v1465 = vpop.f32.mrf.mxu0
  %v1466 = vadd.f32 %v1257, %v1465
  %1467 = vmatmul.f32.gmra.mxu0 %v287
  %v1468 = vpop.f32.mrf.mxu0
  %v1469 = vadd.f32 %v1260, %v1468
  %1470 = vmatmul.f32.gmra.mxu0 %v296
  %v1471 = vpop.f32.mrf.mxu0
  %v1472 = vadd.f32 %v1263, %v1471
  %1473 = vmatmul.f32.gmra.mxu0 %v305
  %v1474 = vpop.f32.mrf.mxu0
  %v1475 = vadd.f32 %v1266, %v1474
  %1476 = vmatmul.f32.gmra.mxu0 %v314
  %v1477 = vpop.f32.mrf.mxu0
  %v1478 = vadd.f32 %v1269, %v1477
  %1479 = vmatmul.f32.gmra.mxu0 %v323
  %v1480 = vpop.f32.mrf.mxu0
  %v1481 = vadd.f32 %v1272, %v1480
  %1482 = vmatmul.f32.gmra.mxu0 %v332
  %v1483 = vpop.f32.mrf.mxu0
  %v1484 = vadd.f32 %v1275, %v1483
  %1485 = vmatmul.f32.gmra.mxu0 %v341
  %v1486 = vpop.f32.mrf.mxu0
  %v1487 = vadd.f32 %v1278, %v1486
  %1488 = vmatmul.f32.gmra.mxu0 %v350
  %v1489 = vpop.f32.mrf.mxu0
  %v1490 = vadd.f32 %v1281, %v1489
  %1491 = vmatmul.f32.gmra.mxu0 %v359
  %v1492 = vpop.f32.mrf.mxu0
  %v1493 = vadd.f32 %v1284, %v1492
  %1494 = vmatmul.f32.gmra.mxu0 %v368
  %v1495 = vpop.f32.mrf.mxu0
  %v1496 = vadd.f32 %v1287, %v1495
  %1497 = vmatmul.f32.gmra.mxu0 %v377
  %v1498 = vpop.f32.mrf.mxu0
  %v1499 = vadd.f32 %v1290, %v1498
  %1500 = vmatmul.f32.gmra.mxu0 %v386
  %v1501 = vpop.f32.mrf.mxu0
  %v1502 = vadd.f32 %v1293, %v1501
  %1503 = vmatmul.f32.gmra.mxu0 %v395
  %v1504 = vpop.f32.mrf.mxu0
  %v1505 = vadd.f32 %v1296, %v1504
  %1506 = vmatmul.f32.gmra.mxu0 %v404
  %v1507 = vpop.f32.mrf.mxu0
  %v1508 = vadd.f32 %v1299, %v1507
  %1509 = vmatmul.f32.gmra.mxu0 %v413
  %v1510 = vpop.f32.mrf.mxu0
  %v1511 = vadd.f32 %v1302, %v1510
  %1512 = vmatmul.f32.gmra.mxu0 %v422
  %v1513 = vpop.f32.mrf.mxu0
  %v1514 = vadd.f32 %v1305, %v1513
  %1515 = vmatmul.f32.gmra.mxu0 %v431
  %v1516 = vpop.f32.mrf.mxu0
  %v1517 = vadd.f32 %v1308, %v1516
  %1518 = vmatmul.f32.gmra.mxu0 %v440
  %v1519 = vpop.f32.mrf.mxu0
  %v1520 = vadd.f32 %v1311, %v1519
  %1521 = vmatmul.f32.gmra.mxu0 %v449
  %v1522 = vpop.f32.mrf.mxu0
  %v1523 = vadd.f32 %v1314, %v1522
  %1524 = vmatmul.f32.gmra.mxu0 %v458
  %v1525 = vpop.f32.mrf.mxu0
  %v1526 = vadd.f32 %v1317, %v1525
  %1527 = vmatmul.f32.gmra.mxu0 %v467
  %v1528 = vpop.f32.mrf.mxu0
  %v1529 = vadd.f32 %v1320, %v1528
  %1530 = vmatmul.f32.gmra.mxu0 %v476
  %v1531 = vpop.f32.mrf.mxu0
  %v1532 = vadd.f32 %v1323, %v1531
  %1533 = vmatmul.f32.gmra.mxu0 %v485
  %v1534 = vpop.f32.mrf.mxu0
  %v1535 = vadd.f32 %v1326, %v1534
  %1536 = vmatmul.f32.gmra.mxu0 %v494
  %v1537 = vpop.f32.mrf.mxu0
  %v1538 = vadd.f32 %v1329, %v1537
  %1539 = vmatmul.f32.gmra.mxu0 %v503
  %v1540 = vpop.f32.mrf.mxu0
  %v1541 = vadd.f32 %v1332, %v1540
  %1542 = vmatmul.f32.gmra.mxu0 %v512
  %v1543 = vpop.f32.mrf.mxu0
  %v1544 = vadd.f32 %v1335, %v1543
  %1545 = vmatmul.f32.gmra.mxu0 %v521
  %v1546 = vpop.f32.mrf.mxu0
  %v1547 = vadd.f32 %v1338, %v1546
  %1548 = vmatmul.f32.gmra.mxu0 %v530
  %v1549 = vpop.f32.mrf.mxu0
  %v1550 = vadd.f32 %v1341, %v1549
  %1551 = vmatmul.f32.gmra.mxu0 %v539
  %v1552 = vpop.f32.mrf.mxu0
  %v1553 = vadd.f32 %v1344, %v1552
  %1554 = vmatmul.f32.gmra.mxu0 %v548
  %v1555 = vpop.f32.mrf.mxu0
  %v1556 = vadd.f32 %v1347, %v1555
  %1557 = vmatmul.f32.gmra.mxu0 %v557
  %v1558 = vpop.f32.mrf.mxu0
  %v1559 = vadd.f32 %v1350, %v1558
  %1560 = vmatmul.f32.gmra.mxu0 %v566
  %v1561 = vpop.f32.mrf.mxu0
  %v1562 = vadd.f32 %v1353, %v1561
  %1563 = vmatmul.f32.gmra.mxu0 %v575
  %v1564 = vpop.f32.mrf.mxu0
  %v1565 = vadd.f32 %v1356, %v1564
  %1566 = vmatmul.f32.gmra.mxu0 %v584
  %v1567 = vpop.f32.mrf.mxu0
  %v1568 = vadd.f32 %v1359, %v1567
  %1569 = vdwg.mxu0
  %1570 = vmatpush.msra.mxu0 %v669
  %1571 = vmatpush.msra.mxu0 %v668
  %1572 = vmatpush.msra.mxu0 %v667
  %1573 = vmatpush.msra.mxu0 %v666
  %1574 = vmatpush.msra.mxu0 %v665
  %1575 = vmatpush.msra.mxu0 %v664
  %1576 = vmatpush.msra.mxu0 %v663
  %1577 = vmatpush.msra.mxu0 %v662
  %1578 = vmatpush.msra.mxu0 %v661
  %1579 = vmatpush.msra.mxu0 %v660
  %1580 = vmatpush.msra.mxu0 %v659
  %1581 = vmatpush.msra.mxu0 %v658
  %1582 = vmatpush.msra.mxu0 %v657
  %1583 = vmatpush.msra.mxu0 %v656
  %1584 = vmatpush.msra.mxu0 %v655
  %1585 = vmatpush.msra.mxu0 %v654
  %1586 = vmatmul.f32.gmra.mxu0 %v18
  %v1587 = vpop.f32.mrf.mxu0
  %v1588 = vadd.f32 %v1379, %v1587
  %1589 = vmatmul.f32.gmra.mxu0 %v27
  %v1590 = vpop.f32.mrf.mxu0
  %v1591 = vadd.f32 %v1382, %v1590
  %1592 = vmatmul.f32.gmra.mxu0 %v36
  %v1593 = vpop.f32.mrf.mxu0
  %v1594 = vadd.f32 %v1385, %v1593
  %1595 = vmatmul.f32.gmra.mxu0 %v45
  %v1596 = vpop.f32.mrf.mxu0
  %v1597 = vadd.f32 %v1388, %v1596
  %1598 = vmatmul.f32.gmra.mxu0 %v54
  %v1599 = vpop.f32.mrf.mxu0
  %v1600 = vadd.f32 %v1391, %v1599
  %1601 = vmatmul.f32.gmra.mxu0 %v63
  %v1602 = vpop.f32.mrf.mxu0
  %v1603 = vadd.f32 %v1394, %v1602
  %1604 = vmatmul.f32.gmra.mxu0 %v72
  %v1605 = vpop.f32.mrf.mxu0
  %v1606 = vadd.f32 %v1397, %v1605
  %1607 = vmatmul.f32.gmra.mxu0 %v81
  %v1608 = vpop.f32.mrf.mxu0
  %v1609 = vadd.f32 %v1400, %v1608
  %1610 = vmatmul.f32.gmra.mxu0 %v90
  %v1611 = vpop.f32.mrf.mxu0
  %v1612 = vadd.f32 %v1403, %v1611
  %1613 = vmatmul.f32.gmra.mxu0 %v99
  %v1614 = vpop.f32.mrf.mxu0
  %v1615 = vadd.f32 %v1406, %v1614
  %1616 = vmatmul.f32.gmra.mxu0 %v108
  %v1617 = vpop.f32.mrf.mxu0
  %v1618 = vadd.f32 %v1409, %v1617
  %1619 = vmatmul.f32.gmra.mxu0 %v117
  %v1620 = vpop.f32.mrf.mxu0
  %v1621 = vadd.f32 %v1412, %v1620
  %1622 = vmatmul.f32.gmra.mxu0 %v126
  %v1623 = vpop.f32.mrf.mxu0
  %v1624 = vadd.f32 %v1415, %v1623
  %1625 = vmatmul.f32.gmra.mxu0 %v135
  %v1626 = vpop.f32.mrf.mxu0
  %v1627 = vadd.f32 %v1418, %v1626
  %1628 = vmatmul.f32.gmra.mxu0 %v144
  %v1629 = vpop.f32.mrf.mxu0
  %v1630 = vadd.f32 %v1421, %v1629
  %1631 = vmatmul.f32.gmra.mxu0 %v153
  %v1632 = vpop.f32.mrf.mxu0
  %v1633 = vadd.f32 %v1424, %v1632
  %1634 = vmatmul.f32.gmra.mxu0 %v162
  %v1635 = vpop.f32.mrf.mxu0
  %v1636 = vadd.f32 %v1427, %v1635
  %1637 = vmatmul.f32.gmra.mxu0 %v171
  %v1638 = vpop.f32.mrf.mxu0
  %v1639 = vadd.f32 %v1430, %v1638
  %1640 = vmatmul.f32.gmra.mxu0 %v180
  %v1641 = vpop.f32.mrf.mxu0
  %v1642 = vadd.f32 %v1433, %v1641
  %1643 = vmatmul.f32.gmra.mxu0 %v189
  %v1644 = vpop.f32.mrf.mxu0
  %v1645 = vadd.f32 %v1436, %v1644
  %1646 = vmatmul.f32.gmra.mxu0 %v198
  %v1647 = vpop.f32.mrf.mxu0
  %v1648 = vadd.f32 %v1439, %v1647
  %1649 = vmatmul.f32.gmra.mxu0 %v207
  %v1650 = vpop.f32.mrf.mxu0
  %v1651 = vadd.f32 %v1442, %v1650
  %1652 = vmatmul.f32.gmra.mxu0 %v216
  %v1653 = vpop.f32.mrf.mxu0
  %v1654 = vadd.f32 %v1445, %v1653
  %1655 = vmatmul.f32.gmra.mxu0 %v225
  %v1656 = vpop.f32.mrf.mxu0
  %v1657 = vadd.f32 %v1448, %v1656
  %1658 = vmatmul.f32.gmra.mxu0 %v234
  %v1659 = vpop.f32.mrf.mxu0
  %v1660 = vadd.f32 %v1451, %v1659
  %1661 = vmatmul.f32.gmra.mxu0 %v243
  %v1662 = vpop.f32.mrf.mxu0
  %v1663 = vadd.f32 %v1454, %v1662
  %1664 = vmatmul.f32.gmra.mxu0 %v252
  %v1665 = vpop.f32.mrf.mxu0
  %v1666 = vadd.f32 %v1457, %v1665
  %1667 = vmatmul.f32.gmra.mxu0 %v261
  %v1668 = vpop.f32.mrf.mxu0
  %v1669 = vadd.f32 %v1460, %v1668
  %1670 = vmatmul.f32.gmra.mxu0 %v270
  %v1671 = vpop.f32.mrf.mxu0
  %v1672 = vadd.f32 %v1463, %v1671
  %1673 = vmatmul.f32.gmra.mxu0 %v279
  %v1674 = vpop.f32.mrf.mxu0
  %v1675 = vadd.f32 %v1466, %v1674
  %1676 = vmatmul.f32.gmra.mxu0 %v288
  %v1677 = vpop.f32.mrf.mxu0
  %v1678 = vadd.f32 %v1469, %v1677
  %1679 = vmatmul.f32.gmra.mxu0 %v297
  %v1680 = vpop.f32.mrf.mxu0
  %v1681 = vadd.f32 %v1472, %v1680
  %1682 = vmatmul.f32.gmra.mxu0 %v306
  %v1683 = vpop.f32.mrf.mxu0
  %v1684 = vadd.f32 %v1475, %v1683
  %1685 = vmatmul.f32.gmra.mxu0 %v315
  %v1686 = vpop.f32.mrf.mxu0
  %v1687 = vadd.f32 %v1478, %v1686
  %1688 = vmatmul.f32.gmra.mxu0 %v324
  %v1689 = vpop.f32.mrf.mxu0
  %v1690 = vadd.f32 %v1481, %v1689
  %1691 = vmatmul.f32.gmra.mxu0 %v333
  %v1692 = vpop.f32.mrf.mxu0
  %v1693 = vadd.f32 %v1484, %v1692
  %1694 = vmatmul.f32.gmra.mxu0 %v342
  %v1695 = vpop.f32.mrf.mxu0
  %v1696 = vadd.f32 %v1487, %v1695
  %1697 = vmatmul.f32.gmra.mxu0 %v351
  %v1698 = vpop.f32.mrf.mxu0
  %v1699 = vadd.f32 %v1490, %v1698
  %1700 = vmatmul.f32.gmra.mxu0 %v360
  %v1701 = vpop.f32.mrf.mxu0
  %v1702 = vadd.f32 %v1493, %v1701
  %1703 = vmatmul.f32.gmra.mxu0 %v369
  %v1704 = vpop.f32.mrf.mxu0
  %v1705 = vadd.f32 %v1496, %v1704
  %1706 = vmatmul.f32.gmra.mxu0 %v378
  %v1707 = vpop.f32.mrf.mxu0
  %v1708 = vadd.f32 %v1499, %v1707
  %1709 = vmatmul.f32.gmra.mxu0 %v387
  %v1710 = vpop.f32.mrf.mxu0
  %v1711 = vadd.f32 %v1502, %v1710
  %1712 = vmatmul.f32.gmra.mxu0 %v396
  %v1713 = vpop.f32.mrf.mxu0
  %v1714 = vadd.f32 %v1505, %v1713
  %1715 = vmatmul.f32.gmra.mxu0 %v405
  %v1716 = vpop.f32.mrf.mxu0
  %v1717 = vadd.f32 %v1508, %v1716
  %1718 = vmatmul.f32.gmra.mxu0 %v414
  %v1719 = vpop.f32.mrf.mxu0
  %v1720 = vadd.f32 %v1511, %v1719
  %1721 = vmatmul.f32.gmra.mxu0 %v423
  %v1722 = vpop.f32.mrf.mxu0
  %v1723 = vadd.f32 %v1514, %v1722
  %1724 = vmatmul.f32.gmra.mxu0 %v432
  %v1725 = vpop.f32.mrf.mxu0
  %v1726 = vadd.f32 %v1517, %v1725
  %1727 = vmatmul.f32.gmra.mxu0 %v441
  %v1728 = vpop.f32.mrf.mxu0
  %v1729 = vadd.f32 %v1520, %v1728
  %1730 = vmatmul.f32.gmra.mxu0 %v450
  %v1731 = vpop.f32.mrf.mxu0
  %v1732 = vadd.f32 %v1523, %v1731
  %1733 = vmatmul.f32.gmra.mxu0 %v459
  %v1734 = vpop.f32.mrf.mxu0
  %v1735 = vadd.f32 %v1526, %v1734
  %1736 = vmatmul.f32.gmra.mxu0 %v468
  %v1737 = vpop.f32.mrf.mxu0
  %v1738 = vadd.f32 %v1529, %v1737
  %1739 = vmatmul.f32.gmra.mxu0 %v477
  %v1740 = vpop.f32.mrf.mxu0
  %v1741 = vadd.f32 %v1532, %v1740
  %1742 = vmatmul.f32.gmra.mxu0 %v486
  %v1743 = vpop.f32.mrf.mxu0
  %v1744 = vadd.f32 %v1535, %v1743
  %1745 = vmatmul.f32.gmra.mxu0 %v495
  %v1746 = vpop.f32.mrf.mxu0
  %v1747 = vadd.f32 %v1538, %v1746
  %1748 = vmatmul.f32.gmra.mxu0 %v504
  %v1749 = vpop.f32.mrf.mxu0
  %v1750 = vadd.f32 %v1541, %v1749
  %1751 = vmatmul.f32.gmra.mxu0 %v513
  %v1752 = vpop.f32.mrf.mxu0
  %v1753 = vadd.f32 %v1544, %v1752
  %1754 = vmatmul.f32.gmra.mxu0 %v522
  %v1755 = vpop.f32.mrf.mxu0
  %v1756 = vadd.f32 %v1547, %v1755
  %1757 = vmatmul.f32.gmra.mxu0 %v531
  %v1758 = vpop.f32.mrf.mxu0
  %v1759 = vadd.f32 %v1550, %v1758
  %1760 = vmatmul.f32.gmra.mxu0 %v540
  %v1761 = vpop.f32.mrf.mxu0
  %v1762 = vadd.f32 %v1553, %v1761
  %1763 = vmatmul.f32.gmra.mxu0 %v549
  %v1764 = vpop.f32.mrf.mxu0
  %v1765 = vadd.f32 %v1556, %v1764
  %1766 = vmatmul.f32.gmra.mxu0 %v558
  %v1767 = vpop.f32.mrf.mxu0
  %v1768 = vadd.f32 %v1559, %v1767
  %1769 = vmatmul.f32.gmra.mxu0 %v567
  %v1770 = vpop.f32.mrf.mxu0
  %v1771 = vadd.f32 %v1562, %v1770
  %1772 = vmatmul.f32.gmra.mxu0 %v576
  %v1773 = vpop.f32.mrf.mxu0
  %v1774 = vadd.f32 %v1565, %v1773
  %1775 = vmatmul.f32.gmra.mxu0 %v585
  %v1776 = vpop.f32.mrf.mxu0
  %v1777 = vadd.f32 %v1568, %v1776
  %1778 = vdwg.mxu0
  %1779 = vmatpush.msra.mxu0 %v685
  %1780 = vmatpush.msra.mxu0 %v684
  %1781 = vmatpush.msra.mxu0 %v683
  %1782 = vmatpush.msra.mxu0 %v682
  %1783 = vmatpush.msra.mxu0 %v681
  %1784 = vmatpush.msra.mxu0 %v680
  %1785 = vmatpush.msra.mxu0 %v679
  %1786 = vmatpush.msra.mxu0 %v678
  %1787 = vmatpush.msra.mxu0 %v677
  %1788 = vmatpush.msra.mxu0 %v676
  %1789 = vmatpush.msra.mxu0 %v675
  %1790 = vmatpush.msra.mxu0 %v674
  %1791 = vmatpush.msra.mxu0 %v673
  %1792 = vmatpush.msra.mxu0 %v672
  %1793 = vmatpush.msra.mxu0 %v671
  %1794 = vmatpush.msra.mxu0 %v670
  %1795 = vmatmul.f32.gmra.mxu0 %v19
  %v1796 = vpop.f32.mrf.mxu0
  %v1797 = vadd.f32 %v1588, %v1796
  %1798 = vmatmul.f32.gmra.mxu0 %v28
  %v1799 = vpop.f32.mrf.mxu0
  %v1800 = vadd.f32 %v1591, %v1799
  %1801 = vmatmul.f32.gmra.mxu0 %v37
  %v1802 = vpop.f32.mrf.mxu0
  %v1803 = vadd.f32 %v1594, %v1802
  %1804 = vmatmul.f32.gmra.mxu0 %v46
  %v1805 = vpop.f32.mrf.mxu0
  %v1806 = vadd.f32 %v1597, %v1805
  %1807 = vmatmul.f32.gmra.mxu0 %v55
  %v1808 = vpop.f32.mrf.mxu0
  %v1809 = vadd.f32 %v1600, %v1808
  %1810 = vmatmul.f32.gmra.mxu0 %v64
  %v1811 = vpop.f32.mrf.mxu0
  %v1812 = vadd.f32 %v1603, %v1811
  %1813 = vmatmul.f32.gmra.mxu0 %v73
  %v1814 = vpop.f32.mrf.mxu0
  %v1815 = vadd.f32 %v1606, %v1814
  %1816 = vmatmul.f32.gmra.mxu0 %v82
  %v1817 = vpop.f32.mrf.mxu0
  %v1818 = vadd.f32 %v1609, %v1817
  %1819 = vmatmul.f32.gmra.mxu0 %v91
  %v1820 = vpop.f32.mrf.mxu0
  %v1821 = vadd.f32 %v1612, %v1820
  %1822 = vmatmul.f32.gmra.mxu0 %v100
  %v1823 = vpop.f32.mrf.mxu0
  %v1824 = vadd.f32 %v1615, %v1823
  %1825 = vmatmul.f32.gmra.mxu0 %v109
  %v1826 = vpop.f32.mrf.mxu0
  %v1827 = vadd.f32 %v1618, %v1826
  %1828 = vmatmul.f32.gmra.mxu0 %v118
  %v1829 = vpop.f32.mrf.mxu0
  %v1830 = vadd.f32 %v1621, %v1829
  %1831 = vmatmul.f32.gmra.mxu0 %v127
  %v1832 = vpop.f32.mrf.mxu0
  %v1833 = vadd.f32 %v1624, %v1832
  %1834 = vmatmul.f32.gmra.mxu0 %v136
  %v1835 = vpop.f32.mrf.mxu0
  %v1836 = vadd.f32 %v1627, %v1835
  %1837 = vmatmul.f32.gmra.mxu0 %v145
  %v1838 = vpop.f32.mrf.mxu0
  %v1839 = vadd.f32 %v1630, %v1838
  %1840 = vmatmul.f32.gmra.mxu0 %v154
  %v1841 = vpop.f32.mrf.mxu0
  %v1842 = vadd.f32 %v1633, %v1841
  %1843 = vmatmul.f32.gmra.mxu0 %v163
  %v1844 = vpop.f32.mrf.mxu0
  %v1845 = vadd.f32 %v1636, %v1844
  %1846 = vmatmul.f32.gmra.mxu0 %v172
  %v1847 = vpop.f32.mrf.mxu0
  %v1848 = vadd.f32 %v1639, %v1847
  %1849 = vmatmul.f32.gmra.mxu0 %v181
  %v1850 = vpop.f32.mrf.mxu0
  %v1851 = vadd.f32 %v1642, %v1850
  %1852 = vmatmul.f32.gmra.mxu0 %v190
  %v1853 = vpop.f32.mrf.mxu0
  %v1854 = vadd.f32 %v1645, %v1853
  %1855 = vmatmul.f32.gmra.mxu0 %v199
  %v1856 = vpop.f32.mrf.mxu0
  %v1857 = vadd.f32 %v1648, %v1856
  %1858 = vmatmul.f32.gmra.mxu0 %v208
  %v1859 = vpop.f32.mrf.mxu0
  %v1860 = vadd.f32 %v1651, %v1859
  %1861 = vmatmul.f32.gmra.mxu0 %v217
  %v1862 = vpop.f32.mrf.mxu0
  %v1863 = vadd.f32 %v1654, %v1862
  %1864 = vmatmul.f32.gmra.mxu0 %v226
  %v1865 = vpop.f32.mrf.mxu0
  %v1866 = vadd.f32 %v1657, %v1865
  %1867 = vmatmul.f32.gmra.mxu0 %v235
  %v1868 = vpop.f32.mrf.mxu0
  %v1869 = vadd.f32 %v1660, %v1868
  %1870 = vmatmul.f32.gmra.mxu0 %v244
  %v1871 = vpop.f32.mrf.mxu0
  %v1872 = vadd.f32 %v1663, %v1871
  %1873 = vmatmul.f32.gmra.mxu0 %v253
  %v1874 = vpop.f32.mrf.mxu0
  %v1875 = vadd.f32 %v1666, %v1874
  %1876 = vmatmul.f32.gmra.mxu0 %v262
  %v1877 = vpop.f32.mrf.mxu0
  %v1878 = vadd.f32 %v1669, %v1877
  %1879 = vmatmul.f32.gmra.mxu0 %v271
  %v1880 = vpop.f32.mrf.mxu0
  %v1881 = vadd.f32 %v1672, %v1880
  %1882 = vmatmul.f32.gmra.mxu0 %v280
  %v1883 = vpop.f32.mrf.mxu0
  %v1884 = vadd.f32 %v1675, %v1883
  %1885 = vmatmul.f32.gmra.mxu0 %v289
  %v1886 = vpop.f32.mrf.mxu0
  %v1887 = vadd.f32 %v1678, %v1886
  %1888 = vmatmul.f32.gmra.mxu0 %v298
  %v1889 = vpop.f32.mrf.mxu0
  %v1890 = vadd.f32 %v1681, %v1889
  %1891 = vmatmul.f32.gmra.mxu0 %v307
  %v1892 = vpop.f32.mrf.mxu0
  %v1893 = vadd.f32 %v1684, %v1892
  %1894 = vmatmul.f32.gmra.mxu0 %v316
  %v1895 = vpop.f32.mrf.mxu0
  %v1896 = vadd.f32 %v1687, %v1895
  %1897 = vmatmul.f32.gmra.mxu0 %v325
  %v1898 = vpop.f32.mrf.mxu0
  %v1899 = vadd.f32 %v1690, %v1898
  %1900 = vmatmul.f32.gmra.mxu0 %v334
  %v1901 = vpop.f32.mrf.mxu0
  %v1902 = vadd.f32 %v1693, %v1901
  %1903 = vmatmul.f32.gmra.mxu0 %v343
  %v1904 = vpop.f32.mrf.mxu0
  %v1905 = vadd.f32 %v1696, %v1904
  %1906 = vmatmul.f32.gmra.mxu0 %v352
  %v1907 = vpop.f32.mrf.mxu0
  %v1908 = vadd.f32 %v1699, %v1907
  %1909 = vmatmul.f32.gmra.mxu0 %v361
  %v1910 = vpop.f32.mrf.mxu0
  %v1911 = vadd.f32 %v1702, %v1910
  %1912 = vmatmul.f32.gmra.mxu0 %v370
  %v1913 = vpop.f32.mrf.mxu0
  %v1914 = vadd.f32 %v1705, %v1913
  %1915 = vmatmul.f32.gmra.mxu0 %v379
  %v1916 = vpop.f32.mrf.mxu0
  %v1917 = vadd.f32 %v1708, %v1916
  %1918 = vmatmul.f32.gmra.mxu0 %v388
  %v1919 = vpop.f32.mrf.mxu0
  %v1920 = vadd.f32 %v1711, %v1919
  %1921 = vmatmul.f32.gmra.mxu0 %v397
  %v1922 = vpop.f32.mrf.mxu0
  %v1923 = vadd.f32 %v1714, %v1922
  %1924 = vmatmul.f32.gmra.mxu0 %v406
  %v1925 = vpop.f32.mrf.mxu0
  %v1926 = vadd.f32 %v1717, %v1925
  %1927 = vmatmul.f32.gmra.mxu0 %v415
  %v1928 = vpop.f32.mrf.mxu0
  %v1929 = vadd.f32 %v1720, %v1928
  %1930 = vmatmul.f32.gmra.mxu0 %v424
  %v1931 = vpop.f32.mrf.mxu0
  %v1932 = vadd.f32 %v1723, %v1931
  %1933 = vmatmul.f32.gmra.mxu0 %v433
  %v1934 = vpop.f32.mrf.mxu0
  %v1935 = vadd.f32 %v1726, %v1934
  %1936 = vmatmul.f32.gmra.mxu0 %v442
  %v1937 = vpop.f32.mrf.mxu0
  %v1938 = vadd.f32 %v1729, %v1937
  %1939 = vmatmul.f32.gmra.mxu0 %v451
  %v1940 = vpop.f32.mrf.mxu0
  %v1941 = vadd.f32 %v1732, %v1940
  %1942 = vmatmul.f32.gmra.mxu0 %v460
  %v1943 = vpop.f32.mrf.mxu0
  %v1944 = vadd.f32 %v1735, %v1943
  %1945 = vmatmul.f32.gmra.mxu0 %v469
  %v1946 = vpop.f32.mrf.mxu0
  %v1947 = vadd.f32 %v1738, %v1946
  %1948 = vmatmul.f32.gmra.mxu0 %v478
  %v1949 = vpop.f32.mrf.mxu0
  %v1950 = vadd.f32 %v1741, %v1949
  %1951 = vmatmul.f32.gmra.mxu0 %v487
  %v1952 = vpop.f32.mrf.mxu0
  %v1953 = vadd.f32 %v1744, %v1952
  %1954 = vmatmul.f32.gmra.mxu0 %v496
  %v1955 = vpop.f32.mrf.mxu0
  %v1956 = vadd.f32 %v1747, %v1955
  %1957 = vmatmul.f32.gmra.mxu0 %v505
  %v1958 = vpop.f32.mrf.mxu0
  %v1959 = vadd.f32 %v1750, %v1958
  %1960 = vmatmul.f32.gmra.mxu0 %v514
  %v1961 = vpop.f32.mrf.mxu0
  %v1962 = vadd.f32 %v1753, %v1961
  %1963 = vmatmul.f32.gmra.mxu0 %v523
  %v1964 = vpop.f32.mrf.mxu0
  %v1965 = vadd.f32 %v1756, %v1964
  %1966 = vmatmul.f32.gmra.mxu0 %v532
  %v1967 = vpop.f32.mrf.mxu0
  %v1968 = vadd.f32 %v1759, %v1967
  %1969 = vmatmul.f32.gmra.mxu0 %v541
  %v1970 = vpop.f32.mrf.mxu0
  %v1971 = vadd.f32 %v1762, %v1970
  %1972 = vmatmul.f32.gmra.mxu0 %v550
  %v1973 = vpop.f32.mrf.mxu0
  %v1974 = vadd.f32 %v1765, %v1973
  %1975 = vmatmul.f32.gmra.mxu0 %v559
  %v1976 = vpop.f32.mrf.mxu0
  %v1977 = vadd.f32 %v1768, %v1976
  %1978 = vmatmul.f32.gmra.mxu0 %v568
  %v1979 = vpop.f32.mrf.mxu0
  %v1980 = vadd.f32 %v1771, %v1979
  %1981 = vmatmul.f32.gmra.mxu0 %v577
  %v1982 = vpop.f32.mrf.mxu0
  %v1983 = vadd.f32 %v1774, %v1982
  %1984 = vmatmul.f32.gmra.mxu0 %v586
  %v1985 = vpop.f32.mrf.mxu0
  %v1986 = vadd.f32 %v1777, %v1985
  %1987 = vdwg.mxu0
  %1988 = vmatpush.msra.mxu0 %v701
  %1989 = vmatpush.msra.mxu0 %v700
  %1990 = vmatpush.msra.mxu0 %v699
  %1991 = vmatpush.msra.mxu0 %v698
  %1992 = vmatpush.msra.mxu0 %v697
  %1993 = vmatpush.msra.mxu0 %v696
  %1994 = vmatpush.msra.mxu0 %v695
  %1995 = vmatpush.msra.mxu0 %v694
  %1996 = vmatpush.msra.mxu0 %v693
  %1997 = vmatpush.msra.mxu0 %v692
  %1998 = vmatpush.msra.mxu0 %v691
  %1999 = vmatpush.msra.mxu0 %v690
  %2000 = vmatpush.msra.mxu0 %v689
  %2001 = vmatpush.msra.mxu0 %v688
  %2002 = vmatpush.msra.mxu0 %v687
  %2003 = vmatpush.msra.mxu0 %v686
  %2004 = vmatmul.f32.gmra.mxu0 %v20
  %v2005 = vpop.f32.mrf.mxu0
  %v2006 = vadd.f32 %v1797, %v2005
  %2007 = vmatmul.f32.gmra.mxu0 %v29
  %v2008 = vpop.f32.mrf.mxu0
  %v2009 = vadd.f32 %v1800, %v2008
  %2010 = vmatmul.f32.gmra.mxu0 %v38
  %v2011 = vpop.f32.mrf.mxu0
  %v2012 = vadd.f32 %v1803, %v2011
  %2013 = vmatmul.f32.gmra.mxu0 %v47
  %v2014 = vpop.f32.mrf.mxu0
  %v2015 = vadd.f32 %v1806, %v2014
  %2016 = vmatmul.f32.gmra.mxu0 %v56
  %v2017 = vpop.f32.mrf.mxu0
  %v2018 = vadd.f32 %v1809, %v2017
  %2019 = vmatmul.f32.gmra.mxu0 %v65
  %v2020 = vpop.f32.mrf.mxu0
  %v2021 = vadd.f32 %v1812, %v2020
  %2022 = vmatmul.f32.gmra.mxu0 %v74
  %v2023 = vpop.f32.mrf.mxu0
  %v2024 = vadd.f32 %v1815, %v2023
  %2025 = vmatmul.f32.gmra.mxu0 %v83
  %v2026 = vpop.f32.mrf.mxu0
  %v2027 = vadd.f32 %v1818, %v2026
  %2028 = vmatmul.f32.gmra.mxu0 %v92
  %v2029 = vpop.f32.mrf.mxu0
  %v2030 = vadd.f32 %v1821, %v2029
  %2031 = vmatmul.f32.gmra.mxu0 %v101
  %v2032 = vpop.f32.mrf.mxu0
  %v2033 = vadd.f32 %v1824, %v2032
  %2034 = vmatmul.f32.gmra.mxu0 %v110
  %v2035 = vpop.f32.mrf.mxu0
  %v2036 = vadd.f32 %v1827, %v2035
  %2037 = vmatmul.f32.gmra.mxu0 %v119
  %v2038 = vpop.f32.mrf.mxu0
  %v2039 = vadd.f32 %v1830, %v2038
  %2040 = vmatmul.f32.gmra.mxu0 %v128
  %v2041 = vpop.f32.mrf.mxu0
  %v2042 = vadd.f32 %v1833, %v2041
  %2043 = vmatmul.f32.gmra.mxu0 %v137
  %v2044 = vpop.f32.mrf.mxu0
  %v2045 = vadd.f32 %v1836, %v2044
  %2046 = vmatmul.f32.gmra.mxu0 %v146
  %v2047 = vpop.f32.mrf.mxu0
  %v2048 = vadd.f32 %v1839, %v2047
  %2049 = vmatmul.f32.gmra.mxu0 %v155
  %v2050 = vpop.f32.mrf.mxu0
  %v2051 = vadd.f32 %v1842, %v2050
  %2052 = vmatmul.f32.gmra.mxu0 %v164
  %v2053 = vpop.f32.mrf.mxu0
  %v2054 = vadd.f32 %v1845, %v2053
  %2055 = vmatmul.f32.gmra.mxu0 %v173
  %v2056 = vpop.f32.mrf.mxu0
  %v2057 = vadd.f32 %v1848, %v2056
  %2058 = vmatmul.f32.gmra.mxu0 %v182
  %v2059 = vpop.f32.mrf.mxu0
  %v2060 = vadd.f32 %v1851, %v2059
  %2061 = vmatmul.f32.gmra.mxu0 %v191
  %v2062 = vpop.f32.mrf.mxu0
  %v2063 = vadd.f32 %v1854, %v2062
  %2064 = vmatmul.f32.gmra.mxu0 %v200
  %v2065 = vpop.f32.mrf.mxu0
  %v2066 = vadd.f32 %v1857, %v2065
  %2067 = vmatmul.f32.gmra.mxu0 %v209
  %v2068 = vpop.f32.mrf.mxu0
  %v2069 = vadd.f32 %v1860, %v2068
  %2070 = vmatmul.f32.gmra.mxu0 %v218
  %v2071 = vpop.f32.mrf.mxu0
  %v2072 = vadd.f32 %v1863, %v2071
  %2073 = vmatmul.f32.gmra.mxu0 %v227
  %v2074 = vpop.f32.mrf.mxu0
  %v2075 = vadd.f32 %v1866, %v2074
  %2076 = vmatmul.f32.gmra.mxu0 %v236
  %v2077 = vpop.f32.mrf.mxu0
  %v2078 = vadd.f32 %v1869, %v2077
  %2079 = vmatmul.f32.gmra.mxu0 %v245
  %v2080 = vpop.f32.mrf.mxu0
  %v2081 = vadd.f32 %v1872, %v2080
  %2082 = vmatmul.f32.gmra.mxu0 %v254
  %v2083 = vpop.f32.mrf.mxu0
  %v2084 = vadd.f32 %v1875, %v2083
  %2085 = vmatmul.f32.gmra.mxu0 %v263
  %v2086 = vpop.f32.mrf.mxu0
  %v2087 = vadd.f32 %v1878, %v2086
  %2088 = vmatmul.f32.gmra.mxu0 %v272
  %v2089 = vpop.f32.mrf.mxu0
  %v2090 = vadd.f32 %v1881, %v2089
  %2091 = vmatmul.f32.gmra.mxu0 %v281
  %v2092 = vpop.f32.mrf.mxu0
  %v2093 = vadd.f32 %v1884, %v2092
  %2094 = vmatmul.f32.gmra.mxu0 %v290
  %v2095 = vpop.f32.mrf.mxu0
  %v2096 = vadd.f32 %v1887, %v2095
  %2097 = vmatmul.f32.gmra.mxu0 %v299
  %v2098 = vpop.f32.mrf.mxu0
  %v2099 = vadd.f32 %v1890, %v2098
  %2100 = vmatmul.f32.gmra.mxu0 %v308
  %v2101 = vpop.f32.mrf.mxu0
  %v2102 = vadd.f32 %v1893, %v2101
  %2103 = vmatmul.f32.gmra.mxu0 %v317
  %v2104 = vpop.f32.mrf.mxu0
  %v2105 = vadd.f32 %v1896, %v2104
  %2106 = vmatmul.f32.gmra.mxu0 %v326
  %v2107 = vpop.f32.mrf.mxu0
  %v2108 = vadd.f32 %v1899, %v2107
  %2109 = vmatmul.f32.gmra.mxu0 %v335
  %v2110 = vpop.f32.mrf.mxu0
  %v2111 = vadd.f32 %v1902, %v2110
  %2112 = vmatmul.f32.gmra.mxu0 %v344
  %v2113 = vpop.f32.mrf.mxu0
  %v2114 = vadd.f32 %v1905, %v2113
  %2115 = vmatmul.f32.gmra.mxu0 %v353
  %v2116 = vpop.f32.mrf.mxu0
  %v2117 = vadd.f32 %v1908, %v2116
  %2118 = vmatmul.f32.gmra.mxu0 %v362
  %v2119 = vpop.f32.mrf.mxu0
  %v2120 = vadd.f32 %v1911, %v2119
  %2121 = vmatmul.f32.gmra.mxu0 %v371
  %v2122 = vpop.f32.mrf.mxu0
  %v2123 = vadd.f32 %v1914, %v2122
  %2124 = vmatmul.f32.gmra.mxu0 %v380
  %v2125 = vpop.f32.mrf.mxu0
  %v2126 = vadd.f32 %v1917, %v2125
  %2127 = vmatmul.f32.gmra.mxu0 %v389
  %v2128 = vpop.f32.mrf.mxu0
  %v2129 = vadd.f32 %v1920, %v2128
  %2130 = vmatmul.f32.gmra.mxu0 %v398
  %v2131 = vpop.f32.mrf.mxu0
  %v2132 = vadd.f32 %v1923, %v2131
  %2133 = vmatmul.f32.gmra.mxu0 %v407
  %v2134 = vpop.f32.mrf.mxu0
  %v2135 = vadd.f32 %v1926, %v2134
  %2136 = vmatmul.f32.gmra.mxu0 %v416
  %v2137 = vpop.f32.mrf.mxu0
  %v2138 = vadd.f32 %v1929, %v2137
  %2139 = vmatmul.f32.gmra.mxu0 %v425
  %v2140 = vpop.f32.mrf.mxu0
  %v2141 = vadd.f32 %v1932, %v2140
  %2142 = vmatmul.f32.gmra.mxu0 %v434
  %v2143 = vpop.f32.mrf.mxu0
  %v2144 = vadd.f32 %v1935, %v2143
  %2145 = vmatmul.f32.gmra.mxu0 %v443
  %v2146 = vpop.f32.mrf.mxu0
  %v2147 = vadd.f32 %v1938, %v2146
  %2148 = vmatmul.f32.gmra.mxu0 %v452
  %v2149 = vpop.f32.mrf.mxu0
  %v2150 = vadd.f32 %v1941, %v2149
  %2151 = vmatmul.f32.gmra.mxu0 %v461
  %v2152 = vpop.f32.mrf.mxu0
  %v2153 = vadd.f32 %v1944, %v2152
  %2154 = vmatmul.f32.gmra.mxu0 %v470
  %v2155 = vpop.f32.mrf.mxu0
  %v2156 = vadd.f32 %v1947, %v2155
  %2157 = vmatmul.f32.gmra.mxu0 %v479
  %v2158 = vpop.f32.mrf.mxu0
  %v2159 = vadd.f32 %v1950, %v2158
  %2160 = vmatmul.f32.gmra.mxu0 %v488
  %v2161 = vpop.f32.mrf.mxu0
  %v2162 = vadd.f32 %v1953, %v2161
  %2163 = vmatmul.f32.gmra.mxu0 %v497
  %v2164 = vpop.f32.mrf.mxu0
  %v2165 = vadd.f32 %v1956, %v2164
  %2166 = vmatmul.f32.gmra.mxu0 %v506
  %v2167 = vpop.f32.mrf.mxu0
  %v2168 = vadd.f32 %v1959, %v2167
  %2169 = vmatmul.f32.gmra.mxu0 %v515
  %v2170 = vpop.f32.mrf.mxu0
  %v2171 = vadd.f32 %v1962, %v2170
  %2172 = vmatmul.f32.gmra.mxu0 %v524
  %v2173 = vpop.f32.mrf.mxu0
  %v2174 = vadd.f32 %v1965, %v2173
  %2175 = vmatmul.f32.gmra.mxu0 %v533
  %v2176 = vpop.f32.mrf.mxu0
  %v2177 = vadd.f32 %v1968, %v2176
  %2178 = vmatmul.f32.gmra.mxu0 %v542
  %v2179 = vpop.f32.mrf.mxu0
  %v2180 = vadd.f32 %v1971, %v2179
  %2181 = vmatmul.f32.gmra.mxu0 %v551
  %v2182 = vpop.f32.mrf.mxu0
  %v2183 = vadd.f32 %v1974, %v2182
  %2184 = vmatmul.f32.gmra.mxu0 %v560
  %v2185 = vpop.f32.mrf.mxu0
  %v2186 = vadd.f32 %v1977, %v2185
  %2187 = vmatmul.f32.gmra.mxu0 %v569
  %v2188 = vpop.f32.mrf.mxu0
  %v2189 = vadd.f32 %v1980, %v2188
  %2190 = vmatmul.f32.gmra.mxu0 %v578
  %v2191 = vpop.f32.mrf.mxu0
  %v2192 = vadd.f32 %v1983, %v2191
  %2193 = vmatmul.f32.gmra.mxu0 %v587
  %v2194 = vpop.f32.mrf.mxu0
  %v2195 = vadd.f32 %v1986, %v2194
  %2196 = vdwg.mxu0
  %2197 = vmatpush.msra.mxu0 %v717
  %2198 = vmatpush.msra.mxu0 %v716
  %2199 = vmatpush.msra.mxu0 %v715
  %2200 = vmatpush.msra.mxu0 %v714
  %2201 = vmatpush.msra.mxu0 %v713
  %2202 = vmatpush.msra.mxu0 %v712
  %2203 = vmatpush.msra.mxu0 %v711
  %2204 = vmatpush.msra.mxu0 %v710
  %2205 = vmatpush.msra.mxu0 %v709
  %2206 = vmatpush.msra.mxu0 %v708
  %2207 = vmatpush.msra.mxu0 %v707
  %2208 = vmatpush.msra.mxu0 %v706
  %2209 = vmatpush.msra.mxu0 %v705
  %2210 = vmatpush.msra.mxu0 %v704
  %2211 = vmatpush.msra.mxu0 %v703
  %2212 = vmatpush.msra.mxu0 %v702
  %2213 = vmatmul.f32.gmra.mxu0 %v21
  %v2214 = vpop.f32.mrf.mxu0
  %v2215 = vadd.f32 %v2006, %v2214
  %2216 = vmatmul.f32.gmra.mxu0 %v30
  %v2217 = vpop.f32.mrf.mxu0
  %v2218 = vadd.f32 %v2009, %v2217
  %2219 = vmatmul.f32.gmra.mxu0 %v39
  %v2220 = vpop.f32.mrf.mxu0
  %v2221 = vadd.f32 %v2012, %v2220
  %2222 = vmatmul.f32.gmra.mxu0 %v48
  %v2223 = vpop.f32.mrf.mxu0
  %v2224 = vadd.f32 %v2015, %v2223
  %2225 = vmatmul.f32.gmra.mxu0 %v57
  %v2226 = vpop.f32.mrf.mxu0
  %v2227 = vadd.f32 %v2018, %v2226
  %2228 = vmatmul.f32.gmra.mxu0 %v66
  %v2229 = vpop.f32.mrf.mxu0
  %v2230 = vadd.f32 %v2021, %v2229
  %2231 = vmatmul.f32.gmra.mxu0 %v75
  %v2232 = vpop.f32.mrf.mxu0
  %v2233 = vadd.f32 %v2024, %v2232
  %2234 = vmatmul.f32.gmra.mxu0 %v84
  %v2235 = vpop.f32.mrf.mxu0
  %v2236 = vadd.f32 %v2027, %v2235
  %2237 = vmatmul.f32.gmra.mxu0 %v93
  %v2238 = vpop.f32.mrf.mxu0
  %v2239 = vadd.f32 %v2030, %v2238
  %2240 = vmatmul.f32.gmra.mxu0 %v102
  %v2241 = vpop.f32.mrf.mxu0
  %v2242 = vadd.f32 %v2033, %v2241
  %2243 = vmatmul.f32.gmra.mxu0 %v111
  %v2244 = vpop.f32.mrf.mxu0
  %v2245 = vadd.f32 %v2036, %v2244
  %2246 = vmatmul.f32.gmra.mxu0 %v120
  %v2247 = vpop.f32.mrf.mxu0
  %v2248 = vadd.f32 %v2039, %v2247
  %2249 = vmatmul.f32.gmra.mxu0 %v129
  %v2250 = vpop.f32.mrf.mxu0
  %v2251 = vadd.f32 %v2042, %v2250
  %2252 = vmatmul.f32.gmra.mxu0 %v138
  %v2253 = vpop.f32.mrf.mxu0
  %v2254 = vadd.f32 %v2045, %v2253
  %2255 = vmatmul.f32.gmra.mxu0 %v147
  %v2256 = vpop.f32.mrf.mxu0
  %v2257 = vadd.f32 %v2048, %v2256
  %2258 = vmatmul.f32.gmra.mxu0 %v156
  %v2259 = vpop.f32.mrf.mxu0
  %v2260 = vadd.f32 %v2051, %v2259
  %2261 = vmatmul.f32.gmra.mxu0 %v165
  %v2262 = vpop.f32.mrf.mxu0
  %v2263 = vadd.f32 %v2054, %v2262
  %2264 = vmatmul.f32.gmra.mxu0 %v174
  %v2265 = vpop.f32.mrf.mxu0
  %v2266 = vadd.f32 %v2057, %v2265
  %2267 = vmatmul.f32.gmra.mxu0 %v183
  %v2268 = vpop.f32.mrf.mxu0
  %v2269 = vadd.f32 %v2060, %v2268
  %2270 = vmatmul.f32.gmra.mxu0 %v192
  %v2271 = vpop.f32.mrf.mxu0
  %v2272 = vadd.f32 %v2063, %v2271
  %2273 = vmatmul.f32.gmra.mxu0 %v201
  %v2274 = vpop.f32.mrf.mxu0
  %v2275 = vadd.f32 %v2066, %v2274
  %2276 = vmatmul.f32.gmra.mxu0 %v210
  %v2277 = vpop.f32.mrf.mxu0
  %v2278 = vadd.f32 %v2069, %v2277
  %2279 = vmatmul.f32.gmra.mxu0 %v219
  %v2280 = vpop.f32.mrf.mxu0
  %v2281 = vadd.f32 %v2072, %v2280
  %2282 = vmatmul.f32.gmra.mxu0 %v228
  %v2283 = vpop.f32.mrf.mxu0
  %v2284 = vadd.f32 %v2075, %v2283
  %2285 = vmatmul.f32.gmra.mxu0 %v237
  %v2286 = vpop.f32.mrf.mxu0
  %v2287 = vadd.f32 %v2078, %v2286
  %2288 = vmatmul.f32.gmra.mxu0 %v246
  %v2289 = vpop.f32.mrf.mxu0
  %v2290 = vadd.f32 %v2081, %v2289
  %2291 = vmatmul.f32.gmra.mxu0 %v255
  %v2292 = vpop.f32.mrf.mxu0
  %v2293 = vadd.f32 %v2084, %v2292
  %2294 = vmatmul.f32.gmra.mxu0 %v264
  %v2295 = vpop.f32.mrf.mxu0
  %v2296 = vadd.f32 %v2087, %v2295
  %2297 = vmatmul.f32.gmra.mxu0 %v273
  %v2298 = vpop.f32.mrf.mxu0
  %v2299 = vadd.f32 %v2090, %v2298
  %2300 = vmatmul.f32.gmra.mxu0 %v282
  %v2301 = vpop.f32.mrf.mxu0
  %v2302 = vadd.f32 %v2093, %v2301
  %2303 = vmatmul.f32.gmra.mxu0 %v291
  %v2304 = vpop.f32.mrf.mxu0
  %v2305 = vadd.f32 %v2096, %v2304
  %2306 = vmatmul.f32.gmra.mxu0 %v300
  %v2307 = vpop.f32.mrf.mxu0
  %v2308 = vadd.f32 %v2099, %v2307
  %2309 = vmatmul.f32.gmra.mxu0 %v309
  %v2310 = vpop.f32.mrf.mxu0
  %v2311 = vadd.f32 %v2102, %v2310
  %2312 = vmatmul.f32.gmra.mxu0 %v318
  %v2313 = vpop.f32.mrf.mxu0
  %v2314 = vadd.f32 %v2105, %v2313
  %2315 = vmatmul.f32.gmra.mxu0 %v327
  %v2316 = vpop.f32.mrf.mxu0
  %v2317 = vadd.f32 %v2108, %v2316
  %2318 = vmatmul.f32.gmra.mxu0 %v336
  %v2319 = vpop.f32.mrf.mxu0
  %v2320 = vadd.f32 %v2111, %v2319
  %2321 = vmatmul.f32.gmra.mxu0 %v345
  %v2322 = vpop.f32.mrf.mxu0
  %v2323 = vadd.f32 %v2114, %v2322
  %2324 = vmatmul.f32.gmra.mxu0 %v354
  %v2325 = vpop.f32.mrf.mxu0
  %v2326 = vadd.f32 %v2117, %v2325
  %2327 = vmatmul.f32.gmra.mxu0 %v363
  %v2328 = vpop.f32.mrf.mxu0
  %v2329 = vadd.f32 %v2120, %v2328
  %2330 = vmatmul.f32.gmra.mxu0 %v372
  %v2331 = vpop.f32.mrf.mxu0
  %v2332 = vadd.f32 %v2123, %v2331
  %2333 = vmatmul.f32.gmra.mxu0 %v381
  %v2334 = vpop.f32.mrf.mxu0
  %v2335 = vadd.f32 %v2126, %v2334
  %2336 = vmatmul.f32.gmra.mxu0 %v390
  %v2337 = vpop.f32.mrf.mxu0
  %v2338 = vadd.f32 %v2129, %v2337
  %2339 = vmatmul.f32.gmra.mxu0 %v399
  %v2340 = vpop.f32.mrf.mxu0
  %v2341 = vadd.f32 %v2132, %v2340
  %2342 = vmatmul.f32.gmra.mxu0 %v408
  %v2343 = vpop.f32.mrf.mxu0
  %v2344 = vadd.f32 %v2135, %v2343
  %2345 = vmatmul.f32.gmra.mxu0 %v417
  %v2346 = vpop.f32.mrf.mxu0
  %v2347 = vadd.f32 %v2138, %v2346
  %2348 = vmatmul.f32.gmra.mxu0 %v426
  %v2349 = vpop.f32.mrf.mxu0
  %v2350 = vadd.f32 %v2141, %v2349
  %2351 = vmatmul.f32.gmra.mxu0 %v435
  %v2352 = vpop.f32.mrf.mxu0
  %v2353 = vadd.f32 %v2144, %v2352
  %2354 = vmatmul.f32.gmra.mxu0 %v444
  %v2355 = vpop.f32.mrf.mxu0
  %v2356 = vadd.f32 %v2147, %v2355
  %2357 = vmatmul.f32.gmra.mxu0 %v453
  %v2358 = vpop.f32.mrf.mxu0
  %v2359 = vadd.f32 %v2150, %v2358
  %2360 = vmatmul.f32.gmra.mxu0 %v462
  %v2361 = vpop.f32.mrf.mxu0
  %v2362 = vadd.f32 %v2153, %v2361
  %2363 = vmatmul.f32.gmra.mxu0 %v471
  %v2364 = vpop.f32.mrf.mxu0
  %v2365 = vadd.f32 %v2156, %v2364
  %2366 = vmatmul.f32.gmra.mxu0 %v480
  %v2367 = vpop.f32.mrf.mxu0
  %v2368 = vadd.f32 %v2159, %v2367
  %2369 = vmatmul.f32.gmra.mxu0 %v489
  %v2370 = vpop.f32.mrf.mxu0
  %v2371 = vadd.f32 %v2162, %v2370
  %2372 = vmatmul.f32.gmra.mxu0 %v498
  %v2373 = vpop.f32.mrf.mxu0
  %v2374 = vadd.f32 %v2165, %v2373
  %2375 = vmatmul.f32.gmra.mxu0 %v507
  %v2376 = vpop.f32.mrf.mxu0
  %v2377 = vadd.f32 %v2168, %v2376
  %2378 = vmatmul.f32.gmra.mxu0 %v516
  %v2379 = vpop.f32.mrf.mxu0
  %v2380 = vadd.f32 %v2171, %v2379
  %2381 = vmatmul.f32.gmra.mxu0 %v525
  %v2382 = vpop.f32.mrf.mxu0
  %v2383 = vadd.f32 %v2174, %v2382
  %2384 = vmatmul.f32.gmra.mxu0 %v534
  %v2385 = vpop.f32.mrf.mxu0
  %v2386 = vadd.f32 %v2177, %v2385
  %2387 = vmatmul.f32.gmra.mxu0 %v543
  %v2388 = vpop.f32.mrf.mxu0
  %v2389 = vadd.f32 %v2180, %v2388
  %2390 = vmatmul.f32.gmra.mxu0 %v552
  %v2391 = vpop.f32.mrf.mxu0
  %v2392 = vadd.f32 %v2183, %v2391
  %2393 = vmatmul.f32.gmra.mxu0 %v561
  %v2394 = vpop.f32.mrf.mxu0
  %v2395 = vadd.f32 %v2186, %v2394
  %2396 = vmatmul.f32.gmra.mxu0 %v570
  %v2397 = vpop.f32.mrf.mxu0
  %v2398 = vadd.f32 %v2189, %v2397
  %2399 = vmatmul.f32.gmra.mxu0 %v579
  %v2400 = vpop.f32.mrf.mxu0
  %v2401 = vadd.f32 %v2192, %v2400
  %2402 = vmatmul.f32.gmra.mxu0 %v588
  %v2403 = vpop.f32.mrf.mxu0
  %v2404 = vadd.f32 %v2195, %v2403
  %2405 = vdwg.mxu0
  %2406 = vmatpush.msra.mxu0 %v733
  %2407 = vmatpush.msra.mxu0 %v732
  %2408 = vmatpush.msra.mxu0 %v731
  %2409 = vmatpush.msra.mxu0 %v730
  %2410 = vmatpush.msra.mxu0 %v729
  %2411 = vmatpush.msra.mxu0 %v728
  %2412 = vmatpush.msra.mxu0 %v727
  %2413 = vmatpush.msra.mxu0 %v726
  %2414 = vmatpush.msra.mxu0 %v725
  %2415 = vmatpush.msra.mxu0 %v724
  %2416 = vmatpush.msra.mxu0 %v723
  %2417 = vmatpush.msra.mxu0 %v722
  %2418 = vmatpush.msra.mxu0 %v721
  %2419 = vmatpush.msra.mxu0 %v720
  %2420 = vmatpush.msra.mxu0 %v719
  %2421 = vmatpush.msra.mxu0 %v718
  %2422 = vmatmul.f32.gmra.mxu0 %v22
  %v2423 = vpop.f32.mrf.mxu0
  %v2424 = vadd.f32 %v2215, %v2423
  %2425 = vmatmul.f32.gmra.mxu0 %v31
  %v2426 = vpop.f32.mrf.mxu0
  %v2427 = vadd.f32 %v2218, %v2426
  %2428 = vmatmul.f32.gmra.mxu0 %v40
  %v2429 = vpop.f32.mrf.mxu0
  %v2430 = vadd.f32 %v2221, %v2429
  %2431 = vmatmul.f32.gmra.mxu0 %v49
  %v2432 = vpop.f32.mrf.mxu0
  %v2433 = vadd.f32 %v2224, %v2432
  %2434 = vmatmul.f32.gmra.mxu0 %v58
  %v2435 = vpop.f32.mrf.mxu0
  %v2436 = vadd.f32 %v2227, %v2435
  %2437 = vmatmul.f32.gmra.mxu0 %v67
  %v2438 = vpop.f32.mrf.mxu0
  %v2439 = vadd.f32 %v2230, %v2438
  %2440 = vmatmul.f32.gmra.mxu0 %v76
  %v2441 = vpop.f32.mrf.mxu0
  %v2442 = vadd.f32 %v2233, %v2441
  %2443 = vmatmul.f32.gmra.mxu0 %v85
  %v2444 = vpop.f32.mrf.mxu0
  %v2445 = vadd.f32 %v2236, %v2444
  %2446 = vmatmul.f32.gmra.mxu0 %v94
  %v2447 = vpop.f32.mrf.mxu0
  %v2448 = vadd.f32 %v2239, %v2447
  %2449 = vmatmul.f32.gmra.mxu0 %v103
  %v2450 = vpop.f32.mrf.mxu0
  %v2451 = vadd.f32 %v2242, %v2450
  %2452 = vmatmul.f32.gmra.mxu0 %v112
  %v2453 = vpop.f32.mrf.mxu0
  %v2454 = vadd.f32 %v2245, %v2453
  %2455 = vmatmul.f32.gmra.mxu0 %v121
  %v2456 = vpop.f32.mrf.mxu0
  %v2457 = vadd.f32 %v2248, %v2456
  %2458 = vmatmul.f32.gmra.mxu0 %v130
  %v2459 = vpop.f32.mrf.mxu0
  %v2460 = vadd.f32 %v2251, %v2459
  %2461 = vmatmul.f32.gmra.mxu0 %v139
  %v2462 = vpop.f32.mrf.mxu0
  %v2463 = vadd.f32 %v2254, %v2462
  %2464 = vmatmul.f32.gmra.mxu0 %v148
  %v2465 = vpop.f32.mrf.mxu0
  %v2466 = vadd.f32 %v2257, %v2465
  %2467 = vmatmul.f32.gmra.mxu0 %v157
  %v2468 = vpop.f32.mrf.mxu0
  %v2469 = vadd.f32 %v2260, %v2468
  %2470 = vmatmul.f32.gmra.mxu0 %v166
  %v2471 = vpop.f32.mrf.mxu0
  %v2472 = vadd.f32 %v2263, %v2471
  %2473 = vmatmul.f32.gmra.mxu0 %v175
  %v2474 = vpop.f32.mrf.mxu0
  %v2475 = vadd.f32 %v2266, %v2474
  %2476 = vmatmul.f32.gmra.mxu0 %v184
  %v2477 = vpop.f32.mrf.mxu0
  %v2478 = vadd.f32 %v2269, %v2477
  %2479 = vmatmul.f32.gmra.mxu0 %v193
  %v2480 = vpop.f32.mrf.mxu0
  %v2481 = vadd.f32 %v2272, %v2480
  %2482 = vmatmul.f32.gmra.mxu0 %v202
  %v2483 = vpop.f32.mrf.mxu0
  %v2484 = vadd.f32 %v2275, %v2483
  %2485 = vmatmul.f32.gmra.mxu0 %v211
  %v2486 = vpop.f32.mrf.mxu0
  %v2487 = vadd.f32 %v2278, %v2486
  %2488 = vmatmul.f32.gmra.mxu0 %v220
  %v2489 = vpop.f32.mrf.mxu0
  %v2490 = vadd.f32 %v2281, %v2489
  %2491 = vmatmul.f32.gmra.mxu0 %v229
  %v2492 = vpop.f32.mrf.mxu0
  %v2493 = vadd.f32 %v2284, %v2492
  %2494 = vmatmul.f32.gmra.mxu0 %v238
  %v2495 = vpop.f32.mrf.mxu0
  %v2496 = vadd.f32 %v2287, %v2495
  %2497 = vmatmul.f32.gmra.mxu0 %v247
  %v2498 = vpop.f32.mrf.mxu0
  %v2499 = vadd.f32 %v2290, %v2498
  %2500 = vmatmul.f32.gmra.mxu0 %v256
  %v2501 = vpop.f32.mrf.mxu0
  %v2502 = vadd.f32 %v2293, %v2501
  %2503 = vmatmul.f32.gmra.mxu0 %v265
  %v2504 = vpop.f32.mrf.mxu0
  %v2505 = vadd.f32 %v2296, %v2504
  %2506 = vmatmul.f32.gmra.mxu0 %v274
  %v2507 = vpop.f32.mrf.mxu0
  %v2508 = vadd.f32 %v2299, %v2507
  %2509 = vmatmul.f32.gmra.mxu0 %v283
  %v2510 = vpop.f32.mrf.mxu0
  %v2511 = vadd.f32 %v2302, %v2510
  %2512 = vmatmul.f32.gmra.mxu0 %v292
  %v2513 = vpop.f32.mrf.mxu0
  %v2514 = vadd.f32 %v2305, %v2513
  %2515 = vmatmul.f32.gmra.mxu0 %v301
  %v2516 = vpop.f32.mrf.mxu0
  %v2517 = vadd.f32 %v2308, %v2516
  %2518 = vmatmul.f32.gmra.mxu0 %v310
  %v2519 = vpop.f32.mrf.mxu0
  %v2520 = vadd.f32 %v2311, %v2519
  %2521 = vmatmul.f32.gmra.mxu0 %v319
  %v2522 = vpop.f32.mrf.mxu0
  %v2523 = vadd.f32 %v2314, %v2522
  %2524 = vmatmul.f32.gmra.mxu0 %v328
  %v2525 = vpop.f32.mrf.mxu0
  %v2526 = vadd.f32 %v2317, %v2525
  %2527 = vmatmul.f32.gmra.mxu0 %v337
  %v2528 = vpop.f32.mrf.mxu0
  %v2529 = vadd.f32 %v2320, %v2528
  %2530 = vmatmul.f32.gmra.mxu0 %v346
  %v2531 = vpop.f32.mrf.mxu0
  %v2532 = vadd.f32 %v2323, %v2531
  %2533 = vmatmul.f32.gmra.mxu0 %v355
  %v2534 = vpop.f32.mrf.mxu0
  %v2535 = vadd.f32 %v2326, %v2534
  %2536 = vmatmul.f32.gmra.mxu0 %v364
  %v2537 = vpop.f32.mrf.mxu0
  %v2538 = vadd.f32 %v2329, %v2537
  %2539 = vmatmul.f32.gmra.mxu0 %v373
  %v2540 = vpop.f32.mrf.mxu0
  %v2541 = vadd.f32 %v2332, %v2540
  %2542 = vmatmul.f32.gmra.mxu0 %v382
  %v2543 = vpop.f32.mrf.mxu0
  %v2544 = vadd.f32 %v2335, %v2543
  %2545 = vmatmul.f32.gmra.mxu0 %v391
  %v2546 = vpop.f32.mrf.mxu0
  %v2547 = vadd.f32 %v2338, %v2546
  %2548 = vmatmul.f32.gmra.mxu0 %v400
  %v2549 = vpop.f32.mrf.mxu0
  %v2550 = vadd.f32 %v2341, %v2549
  %2551 = vmatmul.f32.gmra.mxu0 %v409
  %v2552 = vpop.f32.mrf.mxu0
  %v2553 = vadd.f32 %v2344, %v2552
  %2554 = vmatmul.f32.gmra.mxu0 %v418
  %v2555 = vpop.f32.mrf.mxu0
  %v2556 = vadd.f32 %v2347, %v2555
  %2557 = vmatmul.f32.gmra.mxu0 %v427
  %v2558 = vpop.f32.mrf.mxu0
  %v2559 = vadd.f32 %v2350, %v2558
  %2560 = vmatmul.f32.gmra.mxu0 %v436
  %v2561 = vpop.f32.mrf.mxu0
  %v2562 = vadd.f32 %v2353, %v2561
  %2563 = vmatmul.f32.gmra.mxu0 %v445
  %v2564 = vpop.f32.mrf.mxu0
  %v2565 = vadd.f32 %v2356, %v2564
  %2566 = vmatmul.f32.gmra.mxu0 %v454
  %v2567 = vpop.f32.mrf.mxu0
  %v2568 = vadd.f32 %v2359, %v2567
  %2569 = vmatmul.f32.gmra.mxu0 %v463
  %v2570 = vpop.f32.mrf.mxu0
  %v2571 = vadd.f32 %v2362, %v2570
  %2572 = vmatmul.f32.gmra.mxu0 %v472
  %v2573 = vpop.f32.mrf.mxu0
  %v2574 = vadd.f32 %v2365, %v2573
  %2575 = vmatmul.f32.gmra.mxu0 %v481
  %v2576 = vpop.f32.mrf.mxu0
  %v2577 = vadd.f32 %v2368, %v2576
  %2578 = vmatmul.f32.gmra.mxu0 %v490
  %v2579 = vpop.f32.mrf.mxu0
  %v2580 = vadd.f32 %v2371, %v2579
  %2581 = vmatmul.f32.gmra.mxu0 %v499
  %v2582 = vpop.f32.mrf.mxu0
  %v2583 = vadd.f32 %v2374, %v2582
  %2584 = vmatmul.f32.gmra.mxu0 %v508
  %v2585 = vpop.f32.mrf.mxu0
  %v2586 = vadd.f32 %v2377, %v2585
  %2587 = vmatmul.f32.gmra.mxu0 %v517
  %v2588 = vpop.f32.mrf.mxu0
  %v2589 = vadd.f32 %v2380, %v2588
  %2590 = vmatmul.f32.gmra.mxu0 %v526
  %v2591 = vpop.f32.mrf.mxu0
  %v2592 = vadd.f32 %v2383, %v2591
  %2593 = vmatmul.f32.gmra.mxu0 %v535
  %v2594 = vpop.f32.mrf.mxu0
  %v2595 = vadd.f32 %v2386, %v2594
  %2596 = vmatmul.f32.gmra.mxu0 %v544
  %v2597 = vpop.f32.mrf.mxu0
  %v2598 = vadd.f32 %v2389, %v2597
  %2599 = vmatmul.f32.gmra.mxu0 %v553
  %v2600 = vpop.f32.mrf.mxu0
  %v2601 = vadd.f32 %v2392, %v2600
  %2602 = vmatmul.f32.gmra.mxu0 %v562
  %v2603 = vpop.f32.mrf.mxu0
  %v2604 = vadd.f32 %v2395, %v2603
  %2605 = vmatmul.f32.gmra.mxu0 %v571
  %v2606 = vpop.f32.mrf.mxu0
  %v2607 = vadd.f32 %v2398, %v2606
  %2608 = vmatmul.f32.gmra.mxu0 %v580
  %v2609 = vpop.f32.mrf.mxu0
  %v2610 = vadd.f32 %v2401, %v2609
  %2611 = vmatmul.f32.gmra.mxu0 %v589
  %v2612 = vpop.f32.mrf.mxu0
  %v2613 = vadd.f32 %v2404, %v2612
  %2614 = vdwg.mxu0
  %v2615 = vld [vmem:[%s2] sm:$0x3]
  %v2616 = vperm.slane %v2615, 0
  %v2617 = vmul.f32 %v2424, %v2616
  %v2618 = vmul.f32 %v2427, %v2616
  %v2619 = vmul.f32 %v2430, %v2616
  %v2620 = vmul.f32 %v2433, %v2616
  %v2621 = vmul.f32 %v2436, %v2616
  %v2622 = vmul.f32 %v2439, %v2616
  %v2623 = vmul.f32 %v2442, %v2616
  %v2624 = vmul.f32 %v2445, %v2616
  %v2625 = vmul.f32 %v2448, %v2616
  %v2626 = vmul.f32 %v2451, %v2616
  %v2627 = vmul.f32 %v2454, %v2616
  %v2628 = vmul.f32 %v2457, %v2616
  %v2629 = vmul.f32 %v2460, %v2616
  %v2630 = vmul.f32 %v2463, %v2616
  %v2631 = vmul.f32 %v2466, %v2616
  %v2632 = vmul.f32 %v2469, %v2616
  %v2633 = vmul.f32 %v2472, %v2616
  %v2634 = vmul.f32 %v2475, %v2616
  %v2635 = vmul.f32 %v2478, %v2616
  %v2636 = vmul.f32 %v2481, %v2616
  %v2637 = vmul.f32 %v2484, %v2616
  %v2638 = vmul.f32 %v2487, %v2616
  %v2639 = vmul.f32 %v2490, %v2616
  %v2640 = vmul.f32 %v2493, %v2616
  %v2641 = vmul.f32 %v2496, %v2616
  %v2642 = vmul.f32 %v2499, %v2616
  %v2643 = vmul.f32 %v2502, %v2616
  %v2644 = vmul.f32 %v2505, %v2616
  %v2645 = vmul.f32 %v2508, %v2616
  %v2646 = vmul.f32 %v2511, %v2616
  %v2647 = vmul.f32 %v2514, %v2616
  %v2648 = vmul.f32 %v2517, %v2616
  %v2649 = vmul.f32 %v2520, %v2616
  %v2650 = vmul.f32 %v2523, %v2616
  %v2651 = vmul.f32 %v2526, %v2616
  %v2652 = vmul.f32 %v2529, %v2616
  %v2653 = vmul.f32 %v2532, %v2616
  %v2654 = vmul.f32 %v2535, %v2616
  %v2655 = vmul.f32 %v2538, %v2616
  %v2656 = vmul.f32 %v2541, %v2616
  %v2657 = vmul.f32 %v2544, %v2616
  %v2658 = vmul.f32 %v2547, %v2616
  %v2659 = vmul.f32 %v2550, %v2616
  %v2660 = vmul.f32 %v2553, %v2616
  %v2661 = vmul.f32 %v2556, %v2616
  %v2662 = vmul.f32 %v2559, %v2616
  %v2663 = vmul.f32 %v2562, %v2616
  %v2664 = vmul.f32 %v2565, %v2616
  %v2665 = vmul.f32 %v2568, %v2616
  %v2666 = vmul.f32 %v2571, %v2616
  %v2667 = vmul.f32 %v2574, %v2616
  %v2668 = vmul.f32 %v2577, %v2616
  %v2669 = vmul.f32 %v2580, %v2616
  %v2670 = vmul.f32 %v2583, %v2616
  %v2671 = vmul.f32 %v2586, %v2616
  %v2672 = vmul.f32 %v2589, %v2616
  %v2673 = vmul.f32 %v2592, %v2616
  %v2674 = vmul.f32 %v2595, %v2616
  %v2675 = vmul.f32 %v2598, %v2616
  %v2676 = vmul.f32 %v2601, %v2616
  %v2677 = vmul.f32 %v2604, %v2616
  %v2678 = vmul.f32 %v2607, %v2616
  %v2679 = vmul.f32 %v2610, %v2616
  %v2680 = vmul.f32 %v2613, %v2616
  %v2681 = vperm.slane %v2615, 1
  %v2682 = vadd.f32 %v2617, %v2681
  %v2683 = vadd.f32 %v2618, %v2681
  %v2684 = vadd.f32 %v2619, %v2681
  %v2685 = vadd.f32 %v2620, %v2681
  %v2686 = vadd.f32 %v2621, %v2681
  %v2687 = vadd.f32 %v2622, %v2681
  %v2688 = vadd.f32 %v2623, %v2681
  %v2689 = vadd.f32 %v2624, %v2681
  %v2690 = vadd.f32 %v2625, %v2681
  %v2691 = vadd.f32 %v2626, %v2681
  %v2692 = vadd.f32 %v2627, %v2681
  %v2693 = vadd.f32 %v2628, %v2681
  %v2694 = vadd.f32 %v2629, %v2681
  %v2695 = vadd.f32 %v2630, %v2681
  %v2696 = vadd.f32 %v2631, %v2681
  %v2697 = vadd.f32 %v2632, %v2681
  %v2698 = vadd.f32 %v2633, %v2681
  %v2699 = vadd.f32 %v2634, %v2681
  %v2700 = vadd.f32 %v2635, %v2681
  %v2701 = vadd.f32 %v2636, %v2681
  %v2702 = vadd.f32 %v2637, %v2681
  %v2703 = vadd.f32 %v2638, %v2681
  %v2704 = vadd.f32 %v2639, %v2681
  %v2705 = vadd.f32 %v2640, %v2681
  %v2706 = vadd.f32 %v2641, %v2681
  %v2707 = vadd.f32 %v2642, %v2681
  %v2708 = vadd.f32 %v2643, %v2681
  %v2709 = vadd.f32 %v2644, %v2681
  %v2710 = vadd.f32 %v2645, %v2681
  %v2711 = vadd.f32 %v2646, %v2681
  %v2712 = vadd.f32 %v2647, %v2681
  %v2713 = vadd.f32 %v2648, %v2681
  %v2714 = vadd.f32 %v2649, %v2681
  %v2715 = vadd.f32 %v2650, %v2681
  %v2716 = vadd.f32 %v2651, %v2681
  %v2717 = vadd.f32 %v2652, %v2681
  %v2718 = vadd.f32 %v2653, %v2681
  %v2719 = vadd.f32 %v2654, %v2681
  %v2720 = vadd.f32 %v2655, %v2681
  %v2721 = vadd.f32 %v2656, %v2681
  %v2722 = vadd.f32 %v2657, %v2681
  %v2723 = vadd.f32 %v2658, %v2681
  %v2724 = vadd.f32 %v2659, %v2681
  %v2725 = vadd.f32 %v2660, %v2681
  %v2726 = vadd.f32 %v2661, %v2681
  %v2727 = vadd.f32 %v2662, %v2681
  %v2728 = vadd.f32 %v2663, %v2681
  %v2729 = vadd.f32 %v2664, %v2681
  %v2730 = vadd.f32 %v2665, %v2681
  %v2731 = vadd.f32 %v2666, %v2681
  %v2732 = vadd.f32 %v2667, %v2681
  %v2733 = vadd.f32 %v2668, %v2681
  %v2734 = vadd.f32 %v2669, %v2681
  %v2735 = vadd.f32 %v2670, %v2681
  %v2736 = vadd.f32 %v2671, %v2681
  %v2737 = vadd.f32 %v2672, %v2681
  %v2738 = vadd.f32 %v2673, %v2681
  %v2739 = vadd.f32 %v2674, %v2681
  %v2740 = vadd.f32 %v2675, %v2681
  %v2741 = vadd.f32 %v2676, %v2681
  %v2742 = vadd.f32 %v2677, %v2681
  %v2743 = vadd.f32 %v2678, %v2681
  %v2744 = vadd.f32 %v2679, %v2681
  %v2745 = vadd.f32 %v2680, %v2681
  %v2746 = vmax.f32 %v2682, 0.0
  %v2747 = vmax.f32 %v2683, 0.0
  %v2748 = vmax.f32 %v2684, 0.0
  %v2749 = vmax.f32 %v2685, 0.0
  %v2750 = vmax.f32 %v2686, 0.0
  %v2751 = vmax.f32 %v2687, 0.0
  %v2752 = vmax.f32 %v2688, 0.0
  %v2753 = vmax.f32 %v2689, 0.0
  %v2754 = vmax.f32 %v2690, 0.0
  %v2755 = vmax.f32 %v2691, 0.0
  %v2756 = vmax.f32 %v2692, 0.0
  %v2757 = vmax.f32 %v2693, 0.0
  %v2758 = vmax.f32 %v2694, 0.0
  %v2759 = vmax.f32 %v2695, 0.0
  %v2760 = vmax.f32 %v2696, 0.0
  %v2761 = vmax.f32 %v2697, 0.0
  %v2762 = vmax.f32 %v2698, 0.0
  %v2763 = vmax.f32 %v2699, 0.0
  %v2764 = vmax.f32 %v2700, 0.0
  %v2765 = vmax.f32 %v2701, 0.0
  %v2766 = vmax.f32 %v2702, 0.0
  %v2767 = vmax.f32 %v2703, 0.0
  %v2768 = vmax.f32 %v2704, 0.0
  %v2769 = vmax.f32 %v2705, 0.0
  %v2770 = vmax.f32 %v2706, 0.0
  %v2771 = vmax.f32 %v2707, 0.0
  %v2772 = vmax.f32 %v2708, 0.0
  %v2773 = vmax.f32 %v2709, 0.0
  %v2774 = vmax.f32 %v2710, 0.0
  %v2775 = vmax.f32 %v2711, 0.0
  %v2776 = vmax.f32 %v2712, 0.0
  %v2777 = vmax.f32 %v2713, 0.0
  %v2778 = vmax.f32 %v2714, 0.0
  %v2779 = vmax.f32 %v2715, 0.0
  %v2780 = vmax.f32 %v2716, 0.0
  %v2781 = vmax.f32 %v2717, 0.0
  %v2782 = vmax.f32 %v2718, 0.0
  %v2783 = vmax.f32 %v2719, 0.0
  %v2784 = vmax.f32 %v2720, 0.0
  %v2785 = vmax.f32 %v2721, 0.0
  %v2786 = vmax.f32 %v2722, 0.0
  %v2787 = vmax.f32 %v2723, 0.0
  %v2788 = vmax.f32 %v2724, 0.0
  %v2789 = vmax.f32 %v2725, 0.0
  %v2790 = vmax.f32 %v2726, 0.0
  %v2791 = vmax.f32 %v2727, 0.0
  %v2792 = vmax.f32 %v2728, 0.0
  %v2793 = vmax.f32 %v2729, 0.0
  %v2794 = vmax.f32 %v2730, 0.0
  %v2795 = vmax.f32 %v2731, 0.0
  %v2796 = vmax.f32 %v2732, 0.0
  %v2797 = vmax.f32 %v2733, 0.0
  %v2798 = vmax.f32 %v2734, 0.0
  %v2799 = vmax.f32 %v2735, 0.0
  %v2800 = vmax.f32 %v2736, 0.0
  %v2801 = vmax.f32 %v2737, 0.0
  %v2802 = vmax.f32 %v2738, 0.0
  %v2803 = vmax.f32 %v2739, 0.0
  %v2804 = vmax.f32 %v2740, 0.0
  %v2805 = vmax.f32 %v2741, 0.0
  %v2806 = vmax.f32 %v2742, 0.0
  %v2807 = vmax.f32 %v2743, 0.0
  %v2808 = vmax.f32 %v2744, 0.0
  %v2809 = vmax.f32 %v2745, 0.0
  %2810 = vst [vmem:[%s3] sm:$0xff] %v2746
  %2811 = vst [vmem:[%s3 + $0x8] sm:$0xff] %v2747
  %2812 = vst [vmem:[%s3 + $0x10] sm:$0xff] %v2748
  %2813 = vst [vmem:[%s3 + $0x18] sm:$0xff] %v2749
  %2814 = vst [vmem:[%s3 + $0x20] sm:$0xff] %v2750
  %2815 = vst [vmem:[%s3 + $0x28] sm:$0xff] %v2751
  %2816 = vst [vmem:[%s3 + $0x30] sm:$0xff] %v2752
  %2817 = vst [vmem:[%s3 + $0x38] sm:$0xff] %v2753
  %2818 = vst [vmem:[%s3 + $0x40] sm:$0xff] %v2754
  %2819 = vst [vmem:[%s3 + $0x48] sm:$0xff] %v2755
  %2820 = vst [vmem:[%s3 + $0x50] sm:$0xff] %v2756
  %2821 = vst [vmem:[%s3 + $0x58] sm:$0xff] %v2757
  %2822 = vst [vmem:[%s3 + $0x60] sm:$0xff] %v2758
  %2823 = vst [vmem:[%s3 + $0x68] sm:$0xff] %v2759
  %2824 = vst [vmem:[%s3 + $0x70] sm:$0xff] %v2760
  %2825 = vst [vmem:[%s3 + $0x78] sm:$0xff] %v2761
  %2826 = vst [vmem:[%s3 + $0x80] sm:$0xff] %v2762
  %2827 = vst [vmem:[%s3 + $0x88] sm:$0xff] %v2763
  %2828 = vst [vmem:[%s3 + $0x90] sm:$0xff] %v2764
  %2829 = vst [vmem:[%s3 + $0x98] sm:$0xff] %v2765
  %2830 = vst [vmem:[%s3 + $0xa0] sm:$0xff] %v2766
  %2831 = vst [vmem:[%s3 + $0xa8] sm:$0xff] %v2767
  %2832 = vst [vmem:[%s3 + $0xb0] sm:$0xff] %v2768
  %2833 = vst [vmem:[%s3 + $0xb8] sm:$0xff] %v2769
  %2834 = vst [vmem:[%s3 + $0xc0] sm:$0xff] %v2770
  %2835 = vst [vmem:[%s3 + $0xc8] sm:$0xff] %v2771
  %2836 = vst [vmem:[%s3 + $0xd0] sm:$0xff] %v2772
  %2837 = vst [vmem:[%s3 + $0xd8] sm:$0xff] %v2773
  %2838 = vst [vmem:[%s3 + $0xe0] sm:$0xff] %v2774
  %2839 = vst [vmem:[%s3 + $0xe8] sm:$0xff] %v2775
  %2840 = vst [vmem:[%s3 + $0xf0] sm:$0xff] %v2776
  %2841 = vst [vmem:[%s3 + $0xf8] sm:$0xff] %v2777
  %2842 = vst [vmem:[%s3 + $0x100] sm:$0xff] %v2778
  %2843 = vst [vmem:[%s3 + $0x108] sm:$0xff] %v2779
  %2844 = vst [vmem:[%s3 + $0x110] sm:$0xff] %v2780
  %2845 = vst [vmem:[%s3 + $0x118] sm:$0xff] %v2781
  %2846 = vst [vmem:[%s3 + $0x120] sm:$0xff] %v2782
  %2847 = vst [vmem:[%s3 + $0x128] sm:$0xff] %v2783
  %2848 = vst [vmem:[%s3 + $0x130] sm:$0xff] %v2784
  %2849 = vst [vmem:[%s3 + $0x138] sm:$0xff] %v2785
  %2850 = vst [vmem:[%s3 + $0x140] sm:$0xff] %v2786
  %2851 = vst [vmem:[%s3 + $0x148] sm:$0xff] %v2787
  %2852 = vst [vmem:[%s3 + $0x150] sm:$0xff] %v2788
  %2853 = vst [vmem:[%s3 + $0x158] sm:$0xff] %v2789
  %2854 = vst [vmem:[%s3 + $0x160] sm:$0xff] %v2790
  %2855 = vst [vmem:[%s3 + $0x168] sm:$0xff] %v2791
  %2856 = vst [vmem:[%s3 + $0x170] sm:$0xff] %v2792
  %2857 = vst [vmem:[%s3 + $0x178] sm:$0xff] %v2793
  %2858 = vst [vmem:[%s3 + $0x180] sm:$0xff] %v2794
  %2859 = vst [vmem:[%s3 + $0x188] sm:$0xff] %v2795
  %2860 = vst [vmem:[%s3 + $0x190] sm:$0xff] %v2796
  %2861 = vst [vmem:[%s3 + $0x198] sm:$0xff] %v2797
  %2862 = vst [vmem:[%s3 + $0x1a0] sm:$0xff] %v2798
  %2863 = vst [vmem:[%s3 + $0x1a8] sm:$0xff] %v2799
  %2864 = vst [vmem:[%s3 + $0x1b0] sm:$0xff] %v2800
  %2865 = vst [vmem:[%s3 + $0x1b8] sm:$0xff] %v2801
  %2866 = vst [vmem:[%s3 + $0x1c0] sm:$0xff] %v2802
  %2867 = vst [vmem:[%s3 + $0x1c8] sm:$0xff] %v2803
  %2868 = vst [vmem:[%s3 + $0x1d0] sm:$0xff] %v2804
  %2869 = vst [vmem:[%s3 + $0x1d8] sm:$0xff] %v2805
  %2870 = vst [vmem:[%s3 + $0x1e0] sm:$0xff] %v2806
  %2871 = vst [vmem:[%s3 + $0x1e8] sm:$0xff] %v2807
  %2872 = vst [vmem:[%s3 + $0x1f0] sm:$0xff] %v2808
  %2873 = vst [vmem:[%s3 + $0x1f8] sm:$0xff] %v2809
  // Predicated region
  $region14: #{bottleneck_forward.4} parent=0 // pred_check
    _
  $region15: #{bottleneck_forward.4} parent=0 // pred_check_branch
    %2875 = sbr.rel (0) target = $region17
  $region16: #{bottleneck_forward.4} parent=0 // pred_region
    _
  $region17: #{bottleneck_forward.4} parent=0 // pred_fallthru
    _
  // Predicated region
  $region18: #{bottleneck_forward.4} parent=0 // pred_check
    _
  $region19: #{bottleneck_forward.4} parent=0 // pred_check_branch
    %2877 = sbr.rel (0) target = $region21
  $region20: #{bottleneck_forward.4} parent=0 // pred_region
    _
  $region21: #{bottleneck_forward.4} parent=0 // pred_fallthru
    _

</llo_original>
